<compile_context>
chip_gen: v7x
topology: tpu7x:2x2x1
jax: 0.10.0
libtpu: 0.0.40
codegen_flags: <defaults>
</compile_context>

<pallas_src>
import jax
import jax.numpy as jnp
from jax import lax
from jax.experimental import pallas as pl
from jax.experimental.pallas import tpu as pltpu


_ROW_ALIGN = 16          # bf16 sublane packing: one vreg holds (16, 128) bf16
_TARGET_TILE_ROWS = 256  # batch rows per grid step (amortizes ~0.35us per-step overhead)
_LEAKY_SLOPE = 0.2
_BN_EPS = 0.8            # nn.BatchNorm2d(cout, 0.8): the 0.8 is eps (PyTorch-DCGAN quirk)


# ---------------------------------------------------------------------------
# Fused kernel: 4x [matmul -> +bias -> LeakyReLU -> BN affine] -> head -> sigmoid
# ---------------------------------------------------------------------------
def _disc_fused_kernel(x_ref,
                       m1_ref, p1_ref, m2_ref, p2_ref,
                       m3_ref, p3_ref, m4_ref, p4_ref,
                       hw_ref, hb_ref, o_ref):
    def block(h, m_ref, p_ref):
        # bf16 MXU matmul with f32 accumulation; epilogue stays in f32 (v5e has no bf16 VALU).
        acc = jnp.dot(h, m_ref[...], preferred_element_type=jnp.float32)
        acc = acc + p_ref[0:1, :]                              # conv bias
        acc = jnp.where(acc > 0, acc, _LEAKY_SLOPE * acc)      # LeakyReLU(0.2)
        # TODO(synk): nn.Dropout2d(0.25) is stochastic in train mode; eval mode is identity.
        acc = acc * p_ref[1:2, :] + p_ref[2:3, :]              # BatchNorm2d (eval) folded affine
        return acc.astype(jnp.bfloat16)

    h = x_ref[...]                       # (tile, C*H*W) bf16, NCHW-flat per image
    h = block(h, m1_ref, p1_ref)
    h = block(h, m2_ref, p2_ref)
    h = block(h, m3_ref, p3_ref)
    h = block(h, m4_ref, p4_ref)

    # Linear head as VPU multiply + lane reduction (avoids an N=1 MXU matmul);
    # exp() runs on the EUP, exact divide keeps the result strictly in [0, 1].
    logit = jnp.sum(h.astype(jnp.float32) * hw_ref[...], axis=-1, keepdims=True)
    logit = logit + hb_ref[...]
    o_ref[...] = 1.0 / (1.0 + jnp.exp(-logit))


# ---------------------------------------------------------------------------
# Tiling / VMEM helpers
# ---------------------------------------------------------------------------
def _batch_tiling(n):
    """(tile_rows, padded_batch, grid): 16-aligned rows, grid >= 2 for v7x megacore."""
    n_aligned = pl.cdiv(n, _ROW_ALIGN) * _ROW_ALIGN
    half = pl.cdiv(n_aligned, 2 * _ROW_ALIGN) * _ROW_ALIGN     # ~n/2 rounded to 16
    tile = min(_TARGET_TILE_ROWS, max(_ROW_ALIGN, half))
    n_pad = pl.cdiv(n, tile) * tile
    grid = n_pad // tile
    if grid < 2:                       # ensure both v7x TensorCores get at least one step
        n_pad, grid = 2 * tile, 2
    return tile, n_pad, grid


def _vmem_limit_bytes(tile, f_in, mats, head_w):
    """Footprint-derived scoped-VMEM limit (grid-invariant weights may be double-buffered)."""
    w_bytes = sum(m.size * m.dtype.itemsize + p.size * p.dtype.itemsize for m, p in mats)
    w_bytes += head_w.size * head_w.dtype.itemsize + 4
    io_bytes = 2 * tile * f_in * 2 + 2 * tile * 4              # double-buffered in/out tiles
    widest = max([f_in] + [m.shape[1] for m, _ in mats])
    tmp_bytes = 6 * tile * widest * 4                          # Mosaic-managed f32 temporaries
    return min(2 * w_bytes + io_bytes + tmp_bytes + (8 << 20), 56 << 20)   # < v7x 64 MiB VMEM


# ---------------------------------------------------------------------------
# Forward (all glue is shape-static; only the pallas_call touches the data)
# ---------------------------------------------------------------------------
def discriminator_forward(img_nchw, params):
    """img_nchw: (N, C, H, W) f32  ->  validity (N, 1) f32 in [0, 1]."""
    n = img_nchw.shape[0]
    # PyTorch-order (NCHW) flatten: the packed matrices consume exactly this order,
    # so there is no runtime transpose anywhere.
    x = img_nchw.reshape(n, -1).astype(jnp.bfloat16)
    f_in = x.shape[1]
    mats, head_w, head_b = params["mats"], params["head_w"], params["head_b"]

    tile, n_pad, grid = _batch_tiling(n)
    if n_pad != n:
        # < one tile of padding on the raw input only (a few KiB); needed so the grid has
        # >= 2 sublane-aligned steps even for tiny / ragged batch sizes.
        x = jnp.pad(x, ((0, n_pad - n), (0, 0)))

    operands = [x]
    in_specs = [pl.BlockSpec((tile, f_in), lambda i: (i, 0))]
    for m, p in mats:
        operands += [m, p]
        in_specs += [pl.BlockSpec(m.shape, lambda i: (0, 0)),   # grid-invariant dense conv weight
                     pl.BlockSpec(p.shape, lambda i: (0, 0))]   # fused bias / BN-scale / BN-shift
    operands += [head_w, head_b]
    in_specs += [pl.BlockSpec(head_w.shape, lambda i: (0, 0)),
                 pl.BlockSpec(head_b.shape, lambda i: (0, 0))]

    out = pl.pallas_call(
        _disc_fused_kernel,
        out_shape=jax.ShapeDtypeStruct((n_pad, 1), jnp.float32),
        grid=(grid,),
        in_specs=in_specs,
        out_specs=pl.BlockSpec((tile, 1), lambda i: (i, 0)),
        compiler_params=pltpu.CompilerParams(
            dimension_semantics=("parallel",),                  # batch tiles are independent
            vmem_limit_bytes=_vmem_limit_bytes(tile, f_in, mats, head_w),
        ),
    )(*operands)
    return out[:n]


# ---------------------------------------------------------------------------
# Parameter init (PyTorch layout) and one-time packing for the kernel
# ---------------------------------------------------------------------------
def init_raw_params(key, channels, img_size):
    """Deterministic synthetic parameters in PyTorch layout (OIHW conv, (1, F) linear)."""
    specs = [(channels, 16, False), (16, 32, True), (32, 64, True), (64, 128, True)]
    blocks = []
    for cin, cout, bn in specs:
        key, kw, kb, kg, kbe = jax.random.split(key, 5)
        blk = {"w": 0.15 * jax.random.normal(kw, (cout, cin, 3, 3), jnp.float32),
               "b": 0.15 * jax.random.normal(kb, (cout,), jnp.float32),
               "bn": bn}
        if bn:
            blk["gamma"] = 1.0 + 0.1 * jax.random.normal(kg, (cout,), jnp.float32)
            blk["beta"] = 0.1 * jax.random.normal(kbe, (cout,), jnp.float32)
            blk["mean"] = jnp.zeros((cout,), jnp.float32)   # fresh BN running stats (eval mode)
            blk["var"] = jnp.ones((cout,), jnp.float32)
        blocks.append(blk)
    ds = img_size // 2 ** 4
    key, kw, kb = jax.random.split(key, 3)
    return {"blocks": blocks,
            "lin_w": 0.15 * jax.random.normal(kw, (1, 128 * ds * ds), jnp.float32),
            "lin_b": 0.15 * jax.random.normal(kb, (1,), jnp.float32)}


def _conv_block_to_dense(blk, cin, h, w):
    """Exact lowering of Conv2d(cin, cout, 3, stride=2, pad=1) on an NCHW-flattened image
    row-vector to a dense (cin*h*w, cout*oh*ow) bf16 matrix + (3, cout*oh*ow) f32 epilogue."""
    f_in = cin * h * w
    eye = jnp.eye(f_in, dtype=jnp.float32).reshape(f_in, cin, h, w)
    y = lax.conv_general_dilated(eye, blk["w"], window_strides=(2, 2),
                                 padding=((1, 1), (1, 1)),
                                 dimension_numbers=("NCHW", "OIHW", "NCHW"))
    cout, oh, ow = y.shape[1], y.shape[2], y.shape[3]
    mat = y.reshape(f_in, cout * oh * ow).astype(jnp.bfloat16)
    if blk["bn"]:
        scale = blk["gamma"] / jnp.sqrt(blk["var"] + _BN_EPS)
        shift = blk["beta"] - blk["mean"] * scale
    else:
        scale = jnp.ones((cout,), jnp.float32)
        shift = jnp.zeros((cout,), jnp.float32)
    fused = jnp.stack([jnp.repeat(blk["b"], oh * ow),
                       jnp.repeat(scale, oh * ow),
                       jnp.repeat(shift, oh * ow)]).astype(jnp.float32)
    return mat, fused, cout, oh, ow


def pack_params(raw, channels, img_size):
    """One-time pre-packing: dense bf16 conv matrices, fused f32 epilogue rows, head params."""
    mats = []
    cin, h, w = channels, img_size, img_size
    for blk in raw["blocks"]:
        mat, fused, cout, oh, ow = _conv_block_to_dense(blk, cin, h, w)
        mats.append((mat, fused))
        cin, h, w = cout, oh, ow
    # PyTorch flattens NCHW before the Linear head -- exactly the flat order the packed
    # matrices produce, so the linear weight needs no permutation.
    return {"mats": mats,
            "head_w": raw["lin_w"].astype(jnp.float32),
            "head_b": raw["lin_b"].reshape(1, 1).astype(jnp.float32)}


# ---------------------------------------------------------------------------
# Pure-JAX reference (mirrors the PyTorch module in f32) for correctness checking
# ---------------------------------------------------------------------------
def reference_forward(img, raw):
    x = img
    for blk in raw["blocks"]:
        x = lax.conv_general_dilated(x, blk["w"], window_strides=(2, 2),
                                     padding=((1, 1), (1, 1)),
                                     dimension_numbers=("NCHW", "OIHW", "NCHW"))
        x = x + blk["b"][None, :, None, None]
        x = jnp.where(x > 0, x, _LEAKY_SLOPE * x)          # Dropout2d(0.25): eval identity
        if blk["bn"]:
            scale = blk["gamma"] / jnp.sqrt(blk["var"] + _BN_EPS)
            shift = blk["beta"] - blk["mean"] * scale
            x = x * scale[None, :, None, None] + shift[None, :, None, None]
    feat = x.reshape(x.shape[0], -1)
    logit = feat @ raw["lin_w"].T + raw["lin_b"]
    return jax.nn.sigmoid(logit)


if __name__ == "__main__":
    batch, channels, img_size = 2, 4, 16
    k_img, k_par = jax.random.split(jax.random.PRNGKey(0))
    img = jax.random.normal(k_img, (batch, channels, img_size, img_size), jnp.float32)

    raw = init_raw_params(k_par, channels, img_size)
    params = pack_params(raw, channels, img_size)

    validity = jax.jit(discriminator_forward)(img, params)
    jax.block_until_ready(validity)

    assert validity.shape == (batch, 1), validity.shape
    assert bool(jnp.all((validity >= 0.0) & (validity <= 1.0)))
    ref = reference_forward(img, raw)
    assert bool(jnp.max(jnp.abs(validity - ref)) < 0.05), (validity, ref)
    print("KERNEL_OK")
</pallas_src>

<mosaic_0001>
module attributes {stable_mosaic.version = 11 : i64} {
  func.func @_disc_fused_kernel(%arg0: i32, %arg1: memref<16x1024xbf16, #tpu.memory_space<vmem>>, %arg2: memref<1024x1024xbf16, #tpu.memory_space<vmem>>, %arg3: memref<3x1024xf32, #tpu.memory_space<vmem>>, %arg4: memref<1024x512xbf16, #tpu.memory_space<vmem>>, %arg5: memref<3x512xf32, #tpu.memory_space<vmem>>, %arg6: memref<512x256xbf16, #tpu.memory_space<vmem>>, %arg7: memref<3x256xf32, #tpu.memory_space<vmem>>, %arg8: memref<256x128xbf16, #tpu.memory_space<vmem>>, %arg9: memref<3x128xf32, #tpu.memory_space<vmem>>, %arg10: memref<1x128xf32, #tpu.memory_space<vmem>>, %arg11: memref<1x1xf32, #tpu.memory_space<vmem>>, %arg12: memref<16x1xf32, #tpu.memory_space<vmem>>) attributes {dimension_semantics = [#tpu.dimension_semantics<parallel>], iteration_bounds = array<i64: 2>, scalar_prefetch = 0 : i64, scratch_operands = 0 : i64, tpu.core_type = #tpu.core_type<tc>, window_params = [{transform_indices = @transform_0, window_bounds = array<i64: 16, 1024>}, {pipeline_mode = #tpu.pipeline_mode<synchronous>, transform_indices = @transform_1, window_bounds = array<i64: 1024, 1024>}, {pipeline_mode = #tpu.pipeline_mode<synchronous>, transform_indices = @transform_2, window_bounds = array<i64: 3, 1024>}, {pipeline_mode = #tpu.pipeline_mode<synchronous>, transform_indices = @transform_3, window_bounds = array<i64: 1024, 512>}, {pipeline_mode = #tpu.pipeline_mode<synchronous>, transform_indices = @transform_4, window_bounds = array<i64: 3, 512>}, {pipeline_mode = #tpu.pipeline_mode<synchronous>, transform_indices = @transform_5, window_bounds = array<i64: 512, 256>}, {pipeline_mode = #tpu.pipeline_mode<synchronous>, transform_indices = @transform_6, window_bounds = array<i64: 3, 256>}, {pipeline_mode = #tpu.pipeline_mode<synchronous>, transform_indices = @transform_7, window_bounds = array<i64: 256, 128>}, {pipeline_mode = #tpu.pipeline_mode<synchronous>, transform_indices = @transform_8, window_bounds = array<i64: 3, 128>}, {pipeline_mode = #tpu.pipeline_mode<synchronous>, transform_indices = @transform_9, window_bounds = array<i64: 1, 128>}, {pipeline_mode = #tpu.pipeline_mode<synchronous>, transform_indices = @transform_10, window_bounds = array<i64: 1, 1>}, {transform_indices = @transform_11, window_bounds = array<i64: 16, 1>}]} {
    %c0 = arith.constant 0 : index
    %c0_0 = arith.constant 0 : index
    %0 = vector.load %arg1[%c0, %c0_0] : memref<16x1024xbf16, #tpu.memory_space<vmem>>, vector<16x1024xbf16>
    %c0_1 = arith.constant 0 : index
    %c0_2 = arith.constant 0 : index
    %1 = vector.load %arg2[%c0_1, %c0_2] : memref<1024x1024xbf16, #tpu.memory_space<vmem>>, vector<1024x1024xbf16>
    %cst = arith.constant dense<0.000000e+00> : vector<16x1024xf32>
    %2 = tpu.matmul %0, %1, %cst {dimension_numbers = #tpu.dot_dimension_numbers<[1], [0], [0], [1], [0, 0, 1, 1], [], []>} : vector<16x1024xbf16>, vector<1024x1024xbf16>, vector<16x1024xf32> -> vector<16x1024xf32>
    %c0_3 = arith.constant 0 : index
    %c0_4 = arith.constant 0 : index
    %3 = vector.load %arg3[%c0_3, %c0_4] : memref<3x1024xf32, #tpu.memory_space<vmem>>, vector<1x1024xf32>
    %4 = vector.broadcast %3 : vector<1x1024xf32> to vector<16x1024xf32>
    %5 = arith.addf %2, %4 : vector<16x1024xf32>
    %cst_5 = arith.constant 0.000000e+00 : f32
    %6 = vector.broadcast %cst_5 : f32 to vector<16x1024xf32>
    %7 = arith.cmpf ogt, %5, %6 : vector<16x1024xf32>
    %cst_6 = arith.constant 2.000000e-01 : f32
    %8 = vector.broadcast %cst_6 : f32 to vector<16x1024xf32>
    %9 = arith.mulf %8, %5 : vector<16x1024xf32>
    %10 = arith.select %7, %5, %9 : vector<16x1024xi1>, vector<16x1024xf32>
    %c1 = arith.constant 1 : index
    %c0_7 = arith.constant 0 : index
    %11 = vector.load %arg3[%c1, %c0_7] : memref<3x1024xf32, #tpu.memory_space<vmem>>, vector<1x1024xf32>
    %12 = vector.broadcast %11 : vector<1x1024xf32> to vector<16x1024xf32>
    %13 = arith.mulf %10, %12 : vector<16x1024xf32>
    %c2 = arith.constant 2 : index
    %c0_8 = arith.constant 0 : index
    %14 = vector.load %arg3[%c2, %c0_8] : memref<3x1024xf32, #tpu.memory_space<vmem>>, vector<1x1024xf32>
    %15 = vector.broadcast %14 : vector<1x1024xf32> to vector<16x1024xf32>
    %16 = arith.addf %13, %15 : vector<16x1024xf32>
    %17 = arith.truncf %16 : vector<16x1024xf32> to vector<16x1024xbf16>
    %c0_9 = arith.constant 0 : index
    %c0_10 = arith.constant 0 : index
    %18 = vector.load %arg4[%c0_9, %c0_10] : memref<1024x512xbf16, #tpu.memory_space<vmem>>, vector<1024x512xbf16>
    %cst_11 = arith.constant dense<0.000000e+00> : vector<16x512xf32>
    %19 = tpu.matmul %17, %18, %cst_11 {dimension_numbers = #tpu.dot_dimension_numbers<[1], [0], [0], [1], [0, 0, 1, 1], [], []>} : vector<16x1024xbf16>, vector<1024x512xbf16>, vector<16x512xf32> -> vector<16x512xf32>
    %c0_12 = arith.constant 0 : index
    %c0_13 = arith.constant 0 : index
    %20 = vector.load %arg5[%c0_12, %c0_13] : memref<3x512xf32, #tpu.memory_space<vmem>>, vector<1x512xf32>
    %21 = vector.broadcast %20 : vector<1x512xf32> to vector<16x512xf32>
    %22 = arith.addf %19, %21 : vector<16x512xf32>
    %cst_14 = arith.constant 0.000000e+00 : f32
    %23 = vector.broadcast %cst_14 : f32 to vector<16x512xf32>
    %24 = arith.cmpf ogt, %22, %23 : vector<16x512xf32>
    %cst_15 = arith.constant 2.000000e-01 : f32
    %25 = vector.broadcast %cst_15 : f32 to vector<16x512xf32>
    %26 = arith.mulf %25, %22 : vector<16x512xf32>
    %27 = arith.select %24, %22, %26 : vector<16x512xi1>, vector<16x512xf32>
    %c1_16 = arith.constant 1 : index
    %c0_17 = arith.constant 0 : index
    %28 = vector.load %arg5[%c1_16, %c0_17] : memref<3x512xf32, #tpu.memory_space<vmem>>, vector<1x512xf32>
    %29 = vector.broadcast %28 : vector<1x512xf32> to vector<16x512xf32>
    %30 = arith.mulf %27, %29 : vector<16x512xf32>
    %c2_18 = arith.constant 2 : index
    %c0_19 = arith.constant 0 : index
    %31 = vector.load %arg5[%c2_18, %c0_19] : memref<3x512xf32, #tpu.memory_space<vmem>>, vector<1x512xf32>
    %32 = vector.broadcast %31 : vector<1x512xf32> to vector<16x512xf32>
    %33 = arith.addf %30, %32 : vector<16x512xf32>
    %34 = arith.truncf %33 : vector<16x512xf32> to vector<16x512xbf16>
    %c0_20 = arith.constant 0 : index
    %c0_21 = arith.constant 0 : index
    %35 = vector.load %arg6[%c0_20, %c0_21] : memref<512x256xbf16, #tpu.memory_space<vmem>>, vector<512x256xbf16>
    %cst_22 = arith.constant dense<0.000000e+00> : vector<16x256xf32>
    %36 = tpu.matmul %34, %35, %cst_22 {dimension_numbers = #tpu.dot_dimension_numbers<[1], [0], [0], [1], [0, 0, 1, 1], [], []>} : vector<16x512xbf16>, vector<512x256xbf16>, vector<16x256xf32> -> vector<16x256xf32>
    %c0_23 = arith.constant 0 : index
    %c0_24 = arith.constant 0 : index
    %37 = vector.load %arg7[%c0_23, %c0_24] : memref<3x256xf32, #tpu.memory_space<vmem>>, vector<1x256xf32>
    %38 = vector.broadcast %37 : vector<1x256xf32> to vector<16x256xf32>
    %39 = arith.addf %36, %38 : vector<16x256xf32>
    %cst_25 = arith.constant 0.000000e+00 : f32
    %40 = vector.broadcast %cst_25 : f32 to vector<16x256xf32>
    %41 = arith.cmpf ogt, %39, %40 : vector<16x256xf32>
    %cst_26 = arith.constant 2.000000e-01 : f32
    %42 = vector.broadcast %cst_26 : f32 to vector<16x256xf32>
    %43 = arith.mulf %42, %39 : vector<16x256xf32>
    %44 = arith.select %41, %39, %43 : vector<16x256xi1>, vector<16x256xf32>
    %c1_27 = arith.constant 1 : index
    %c0_28 = arith.constant 0 : index
    %45 = vector.load %arg7[%c1_27, %c0_28] : memref<3x256xf32, #tpu.memory_space<vmem>>, vector<1x256xf32>
    %46 = vector.broadcast %45 : vector<1x256xf32> to vector<16x256xf32>
    %47 = arith.mulf %44, %46 : vector<16x256xf32>
    %c2_29 = arith.constant 2 : index
    %c0_30 = arith.constant 0 : index
    %48 = vector.load %arg7[%c2_29, %c0_30] : memref<3x256xf32, #tpu.memory_space<vmem>>, vector<1x256xf32>
    %49 = vector.broadcast %48 : vector<1x256xf32> to vector<16x256xf32>
    %50 = arith.addf %47, %49 : vector<16x256xf32>
    %51 = arith.truncf %50 : vector<16x256xf32> to vector<16x256xbf16>
    %c0_31 = arith.constant 0 : index
    %c0_32 = arith.constant 0 : index
    %52 = vector.load %arg8[%c0_31, %c0_32] : memref<256x128xbf16, #tpu.memory_space<vmem>>, vector<256x128xbf16>
    %cst_33 = arith.constant dense<0.000000e+00> : vector<16x128xf32>
    %53 = tpu.matmul %51, %52, %cst_33 {dimension_numbers = #tpu.dot_dimension_numbers<[1], [0], [0], [1], [0, 0, 1, 1], [], []>} : vector<16x256xbf16>, vector<256x128xbf16>, vector<16x128xf32> -> vector<16x128xf32>
    %c0_34 = arith.constant 0 : index
    %c0_35 = arith.constant 0 : index
    %54 = vector.load %arg9[%c0_34, %c0_35] : memref<3x128xf32, #tpu.memory_space<vmem>>, vector<1x128xf32>
    %55 = vector.broadcast %54 : vector<1x128xf32> to vector<16x128xf32>
    %56 = arith.addf %53, %55 : vector<16x128xf32>
    %cst_36 = arith.constant 0.000000e+00 : f32
    %57 = vector.broadcast %cst_36 : f32 to vector<16x128xf32>
    %58 = arith.cmpf ogt, %56, %57 : vector<16x128xf32>
    %cst_37 = arith.constant 2.000000e-01 : f32
    %59 = vector.broadcast %cst_37 : f32 to vector<16x128xf32>
    %60 = arith.mulf %59, %56 : vector<16x128xf32>
    %61 = arith.select %58, %56, %60 : vector<16x128xi1>, vector<16x128xf32>
    %c1_38 = arith.constant 1 : index
    %c0_39 = arith.constant 0 : index
    %62 = vector.load %arg9[%c1_38, %c0_39] : memref<3x128xf32, #tpu.memory_space<vmem>>, vector<1x128xf32>
    %63 = vector.broadcast %62 : vector<1x128xf32> to vector<16x128xf32>
    %64 = arith.mulf %61, %63 : vector<16x128xf32>
    %c2_40 = arith.constant 2 : index
    %c0_41 = arith.constant 0 : index
    %65 = vector.load %arg9[%c2_40, %c0_41] : memref<3x128xf32, #tpu.memory_space<vmem>>, vector<1x128xf32>
    %66 = vector.broadcast %65 : vector<1x128xf32> to vector<16x128xf32>
    %67 = arith.addf %64, %66 : vector<16x128xf32>
    %68 = arith.truncf %67 : vector<16x128xf32> to vector<16x128xbf16>
    %69 = arith.extf %68 : vector<16x128xbf16> to vector<16x128xf32>
    %c0_42 = arith.constant 0 : index
    %c0_43 = arith.constant 0 : index
    %70 = vector.load %arg10[%c0_42, %c0_43] : memref<1x128xf32, #tpu.memory_space<vmem>>, vector<1x128xf32>
    %71 = vector.broadcast %70 : vector<1x128xf32> to vector<16x128xf32>
    %72 = arith.mulf %69, %71 : vector<16x128xf32>
    %cst_44 = arith.constant dense<0.000000e+00> : vector<16xf32>
    %73 = vector.multi_reduction <add>, %72, %cst_44 [1] : vector<16x128xf32> to vector<16xf32>
    %74 = vector.shape_cast %73 : vector<16xf32> to vector<16x1xf32>
    %c0_45 = arith.constant 0 : index
    %c0_46 = arith.constant 0 : index
    %75 = vector.load %arg11[%c0_45, %c0_46] : memref<1x1xf32, #tpu.memory_space<vmem>>, vector<1x1xf32>
    %76 = vector.broadcast %75 : vector<1x1xf32> to vector<16x1xf32>
    %77 = arith.addf %74, %76 : vector<16x1xf32>
    %cst_47 = arith.constant 0.000000e+00 : f32
    %78 = vector.broadcast %cst_47 : f32 to vector<16x1xf32>
    %79 = arith.subf %78, %77 : vector<16x1xf32>
    %80 = math.exp %79 : vector<16x1xf32>
    %cst_48 = arith.constant 1.000000e+00 : f32
    %81 = vector.broadcast %cst_48 : f32 to vector<16x1xf32>
    %82 = arith.addf %81, %80 : vector<16x1xf32>
    %cst_49 = arith.constant 1.000000e+00 : f32
    %83 = vector.broadcast %cst_49 : f32 to vector<16x1xf32>
    %84 = arith.divf %83, %82 : vector<16x1xf32>
    %c0_50 = arith.constant 0 : index
    %c0_51 = arith.constant 0 : index
    %85 = vector.load %arg12[%c0_50, %c0_51] : memref<16x1xf32, #tpu.memory_space<vmem>>, vector<16x1xf32>
    tpu.vector_store %arg12[%c0_50, %c0_51], %84 {strides = array<i32>} : memref<16x1xf32, #tpu.memory_space<vmem>>, vector<16x1xf32>,
    return
  }
  func.func @transform_0(%arg0: i32) -> (i32, i32) {
    %c0_i32 = arith.constant 0 : i32
    %c0_i32_0 = arith.constant 0 : i32
    return %arg0, %c0_i32 : i32, i32
  }
  func.func @transform_1(%arg0: i32) -> (i32, i32) {
    %c0_i32 = arith.constant 0 : i32
    %c0_i32_0 = arith.constant 0 : i32
    %c0_i32_1 = arith.constant 0 : i32
    return %c0_i32, %c0_i32_0 : i32, i32
  }
  func.func @transform_2(%arg0: i32) -> (i32, i32) {
    %c0_i32 = arith.constant 0 : i32
    %c0_i32_0 = arith.constant 0 : i32
    %c0_i32_1 = arith.constant 0 : i32
    return %c0_i32, %c0_i32_0 : i32, i32
  }
  func.func @transform_3(%arg0: i32) -> (i32, i32) {
    %c0_i32 = arith.constant 0 : i32
    %c0_i32_0 = arith.constant 0 : i32
    %c0_i32_1 = arith.constant 0 : i32
    return %c0_i32, %c0_i32_0 : i32, i32
  }
  func.func @transform_4(%arg0: i32) -> (i32, i32) {
    %c0_i32 = arith.constant 0 : i32
    %c0_i32_0 = arith.constant 0 : i32
    %c0_i32_1 = arith.constant 0 : i32
    return %c0_i32, %c0_i32_0 : i32, i32
  }
  func.func @transform_5(%arg0: i32) -> (i32, i32) {
    %c0_i32 = arith.constant 0 : i32
    %c0_i32_0 = arith.constant 0 : i32
    %c0_i32_1 = arith.constant 0 : i32
    return %c0_i32, %c0_i32_0 : i32, i32
  }
  func.func @transform_6(%arg0: i32) -> (i32, i32) {
    %c0_i32 = arith.constant 0 : i32
    %c0_i32_0 = arith.constant 0 : i32
    %c0_i32_1 = arith.constant 0 : i32
    return %c0_i32, %c0_i32_0 : i32, i32
  }
  func.func @transform_7(%arg0: i32) -> (i32, i32) {
    %c0_i32 = arith.constant 0 : i32
    %c0_i32_0 = arith.constant 0 : i32
    %c0_i32_1 = arith.constant 0 : i32
    return %c0_i32, %c0_i32_0 : i32, i32
  }
  func.func @transform_8(%arg0: i32) -> (i32, i32) {
    %c0_i32 = arith.constant 0 : i32
    %c0_i32_0 = arith.constant 0 : i32
    %c0_i32_1 = arith.constant 0 : i32
    return %c0_i32, %c0_i32_0 : i32, i32
  }
  func.func @transform_9(%arg0: i32) -> (i32, i32) {
    %c0_i32 = arith.constant 0 : i32
    %c0_i32_0 = arith.constant 0 : i32
    %c0_i32_1 = arith.constant 0 : i32
    return %c0_i32, %c0_i32_0 : i32, i32
  }
  func.func @transform_10(%arg0: i32) -> (i32, i32) {
    %c0_i32 = arith.constant 0 : i32
    %c0_i32_0 = arith.constant 0 : i32
    %c0_i32_1 = arith.constant 0 : i32
    return %c0_i32, %c0_i32_0 : i32, i32
  }
  func.func @transform_11(%arg0: i32) -> (i32, i32) {
    %c0_i32 = arith.constant 0 : i32
    %c0_i32_0 = arith.constant 0 : i32
    return %arg0, %c0_i32 : i32, i32
  }
}

</mosaic_0001>

<llo_original>
// kernel: discriminator_forward.1
$region0: #{discriminator_forward.1}
  #allocation0 [shape = 'u32[]', space=smem, size = 0x4, offset = 0x4, fixed_abs, tag = 'smem constant byte address 0x4 - core index']
  #allocation1 [shape = 'u32[144,128]{1,0:T(1,128)}', space=vmem, size = 0x12000, scoped, tag = 'internal scratch']
  #allocation2 [shape = 'f32[1,1]{1,0:T(1,128)S(1)}', space=vmem, size = 0x200, scoped, tag = 'scoped memory for discriminator_forward.1']
  %s0 = inlined_call_operand.vmem [shape: bf16[32,1024], index: 0, kind: input, shape index: {}]
  %s1 = inlined_call_operand.hbm [shape: bf16[1024,1024], index: 1, kind: input, shape index: {}]
  %s2 = inlined_call_operand.hbm [shape: f32[3,1024], index: 2, kind: input, shape index: {}]
  %s3 = inlined_call_operand.hbm [shape: bf16[1024,512], index: 3, kind: input, shape index: {}]
  %s4 = inlined_call_operand.hbm [shape: f32[3,512], index: 4, kind: input, shape index: {}]
  %s5 = inlined_call_operand.hbm [shape: bf16[512,256], index: 5, kind: input, shape index: {}]
  %s6 = inlined_call_operand.hbm [shape: f32[3,256], index: 6, kind: input, shape index: {}]
  %s7 = inlined_call_operand.hbm [shape: bf16[256,128], index: 7, kind: input, shape index: {}]
  %s8 = inlined_call_operand.hbm [shape: f32[3,128], index: 8, kind: input, shape index: {}]
  %s9 = inlined_call_operand.hbm [shape: f32[1,128], index: 9, kind: input, shape index: {}]
  %s10 = inlined_call_operand.<no memory space> [shape: f32[1,1], index: 10, kind: input, shape index: {}]
  %s11 = inlined_call_operand.vmem [shape: f32[32,1], index: 11, kind: output, shape index: {}]
  %s12 = sld [smem:[#allocation0]]
  $region113: #{discriminator_forward.1} parent=0
    _
  %s14 = ssub.s32 1, %s12
  %s15 = scalar_select 0, %s14, %s12
  %v16 = vstv %s10
  %17 = vst [vmem:[#allocation2] sm:$0x1] %v16
  $region1: #{discriminator_forward.1} parent=0
    #allocation3 [shape = 'u8[2097152]{0}', space=vmem, size = 0x200000, scoped, tag = 'input window, operand 1, single buffered']
    #allocation4 [shape = 's32[2]{0}', space=sflag, size = 0x8, scoped, tag = 'scoped memory for discriminator_forward.1']
    #allocation5 [shape = 'u8[16384]{0}', space=vmem, size = 0x4000, scoped, tag = 'input window, operand 2, single buffered']
    #allocation6 [shape = 's32[1]{0}', space=sflag, size = 0x4, scoped, tag = 'scoped memory for discriminator_forward.1']
    #allocation7 [shape = 'u8[1048576]{0}', space=vmem, size = 0x100000, scoped, tag = 'input window, operand 3, single buffered']
    #allocation8 [shape = 'u8[8192]{0}', space=vmem, size = 0x2000, scoped, tag = 'input window, operand 4, single buffered']
    #allocation9 [shape = 's32[1]{0}', space=sflag, size = 0x4, scoped, tag = 'scoped memory for discriminator_forward.1']
    #allocation10 [shape = 'u8[262144]{0}', space=vmem, size = 0x40000, scoped, tag = 'input window, operand 5, single buffered']
    #allocation11 [shape = 'u8[4096]{0}', space=vmem, size = 0x1000, scoped, tag = 'input window, operand 6, single buffered']
    #allocation12 [shape = 's32[1]{0}', space=sflag, size = 0x4, scoped, tag = 'scoped memory for discriminator_forward.1']
    #allocation13 [shape = 'u8[65536]{0}', space=vmem, size = 0x10000, scoped, tag = 'input window, operand 7, single buffered']
    #allocation14 [shape = 'u8[2048]{0}', space=vmem, size = 0x800, scoped, tag = 'input window, operand 8, single buffered']
    #allocation15 [shape = 's32[1]{0}', space=sflag, size = 0x4, scoped, tag = 'scoped memory for discriminator_forward.1']
    #allocation16 [shape = 'u8[512]{0}', space=vmem, size = 0x400, scoped, tag = 'input window, operand 9, single buffered']
    %18 = vsyncpa [#allocation4], 0
    %19 = vsyncpa [#allocation6], 0
    %20 = vsyncpa [#allocation9], 0
    %21 = vsyncpa [#allocation12], 0
    %22 = vsyncpa [#allocation15], 0
    loop: start=0, step=1, limit=4
    $region2: #{discriminator_forward.1} parent=1 // loop_pre_header
      _
    $region3: #{discriminator_forward.1} parent=1 // loop_header
      %s24 = sphi 0, %s28
      %p25 = scmp.ge.s32.totalorder %s24, 4
      %s34 = sphi 0, %s36
      %s37 = sphi 0, %s34
      %s38 = sphi 0, %s37
      %s54 = sphi 0, %s38
      %s58 = sphi 0, %s58
      %s60 = sphi 0, %s58
      %s61 = sphi 0, %s60
      %s75 = sphi 0, %s61
      %s79 = sphi 0, %s79
      %s81 = sphi 0, %s79
      %s82 = sphi 0, %s81
      %s96 = sphi 0, %s82
      %s100 = sphi 0, %s100
      %s102 = sphi 0, %s100
      %s103 = sphi 0, %s102
      %s117 = sphi 0, %s103
      %s121 = sphi 0, %s121
      %s123 = sphi 0, %s121
      %s124 = sphi 0, %s123
      %s138 = sphi 0, %s124
      %s142 = sphi 0, %s142
      %s144 = sphi 0, %s142
      %s145 = sphi 0, %s144
      %s159 = sphi 0, %s145
      %s163 = sphi 0, %s163
      %s165 = sphi 0, %s163
      %s166 = sphi 0, %s165
      %s180 = sphi 0, %s166
      %s184 = sphi 0, %s184
      %s186 = sphi 0, %s184
      %s187 = sphi 0, %s186
      %s201 = sphi 0, %s187
      %s205 = sphi 0, %s205
      %s207 = sphi 0, %s205
      %s208 = sphi 0, %s207
      %s222 = sphi 0, %s208
      %s226 = sphi 0, %s226
      %s228 = sphi 0, %s226
      %s229 = sphi 0, %s228
      %s243 = sphi 0, %s229
      %s247 = sphi 0, %s247
      %s249 = sphi 0, %s247
      %s250 = sphi 0, %s249
      %s264 = sphi 0, %s250
      %s270 = sphi 0, %s272
      %s273 = sphi 0, %s270
      %s274 = sphi 0, %s273
      %s290 = sphi 0, %s274
    $region4: #{discriminator_forward.1} parent=1 // loop_header_branch
      %27 = sbr.rel (%p25) target = $region8
    $region5: #{discriminator_forward.1} parent=1 // loop_body
      %s29 = ssub.s32 %s24, 1
      %s30 = ssub.s32 %s24, 2
      %s31 = sadd.s32 %s24, 1
      %s32 = ssub.s32 %s24, %s31
      %p33 = scmp.eq.s32.totalorder %s32, 0
      %s35 = sadd.s32 %s34, 1
      %s36 = scalar_select %p33, %s34, %s35
      %p39 = pneg %p33
      %p40 = scmp.eq.s32.totalorder %s24, 1
      %p41 = por %p39, %p40
      %p42 = scmp.ne.s32.totalorder %s34, %s37
      %p43 = scmp.eq.s32.totalorder %s24, 0
      %p44 = por %p42, %p43
      %p45 = scmp.ne.s32.totalorder %s34, %s37
      %p46 = scmp.eq.s32.totalorder %s29, 1
      %p47 = por %p45, %p46
      %p48 = scmp.ne.s32.totalorder %s37, %s38
      %p49 = scmp.eq.s32.totalorder %s29, 0
      %p50 = por %p48, %p49
      %p51 = scmp.ne.s32.totalorder %s37, %s38
      %p52 = scmp.eq.s32.totalorder %s30, 1
      %p53 = por %p51, %p52
      %p55 = scmp.ne.s32.totalorder %s38, %s54
      %p56 = scmp.eq.s32.totalorder %s30, 0
      %p57 = por %p55, %p56
      %s59 = sadd.s32 %s58, 1
      %p62 = scmp.eq.s32.totalorder %s24, 1
      %p63 = scmp.ne.s32.totalorder %s58, %s60
      %p64 = scmp.eq.s32.totalorder %s24, 0
      %p65 = por %p63, %p64
      %p66 = scmp.ne.s32.totalorder %s58, %s60
      %p67 = scmp.eq.s32.totalorder %s29, 1
      %p68 = por %p66, %p67
      %p69 = scmp.ne.s32.totalorder %s60, %s61
      %p70 = scmp.eq.s32.totalorder %s29, 0
      %p71 = por %p69, %p70
      %p72 = scmp.ne.s32.totalorder %s60, %s61
      %p73 = scmp.eq.s32.totalorder %s30, 1
      %p74 = por %p72, %p73
      %p76 = scmp.ne.s32.totalorder %s61, %s75
      %p77 = scmp.eq.s32.totalorder %s30, 0
      %p78 = por %p76, %p77
      %s80 = sadd.s32 %s79, 1
      %p83 = scmp.eq.s32.totalorder %s24, 1
      %p84 = scmp.ne.s32.totalorder %s79, %s81
      %p85 = scmp.eq.s32.totalorder %s24, 0
      %p86 = por %p84, %p85
      %p87 = scmp.ne.s32.totalorder %s79, %s81
      %p88 = scmp.eq.s32.totalorder %s29, 1
      %p89 = por %p87, %p88
      %p90 = scmp.ne.s32.totalorder %s81, %s82
      %p91 = scmp.eq.s32.totalorder %s29, 0
      %p92 = por %p90, %p91
      %p93 = scmp.ne.s32.totalorder %s81, %s82
      %p94 = scmp.eq.s32.totalorder %s30, 1
      %p95 = por %p93, %p94
      %p97 = scmp.ne.s32.totalorder %s82, %s96
      %p98 = scmp.eq.s32.totalorder %s30, 0
      %p99 = por %p97, %p98
      %s101 = sadd.s32 %s100, 1
      %p104 = scmp.eq.s32.totalorder %s24, 1
      %p105 = scmp.ne.s32.totalorder %s100, %s102
      %p106 = scmp.eq.s32.totalorder %s24, 0
      %p107 = por %p105, %p106
      %p108 = scmp.ne.s32.totalorder %s100, %s102
      %p109 = scmp.eq.s32.totalorder %s29, 1
      %p110 = por %p108, %p109
      %p111 = scmp.ne.s32.totalorder %s102, %s103
      %p112 = scmp.eq.s32.totalorder %s29, 0
      %p113 = por %p111, %p112
      %p114 = scmp.ne.s32.totalorder %s102, %s103
      %p115 = scmp.eq.s32.totalorder %s30, 1
      %p116 = por %p114, %p115
      %p118 = scmp.ne.s32.totalorder %s103, %s117
      %p119 = scmp.eq.s32.totalorder %s30, 0
      %p120 = por %p118, %p119
      %s122 = sadd.s32 %s121, 1
      %p125 = scmp.eq.s32.totalorder %s24, 1
      %p126 = scmp.ne.s32.totalorder %s121, %s123
      %p127 = scmp.eq.s32.totalorder %s24, 0
      %p128 = por %p126, %p127
      %p129 = scmp.ne.s32.totalorder %s121, %s123
      %p130 = scmp.eq.s32.totalorder %s29, 1
      %p131 = por %p129, %p130
      %p132 = scmp.ne.s32.totalorder %s123, %s124
      %p133 = scmp.eq.s32.totalorder %s29, 0
      %p134 = por %p132, %p133
      %p135 = scmp.ne.s32.totalorder %s123, %s124
      %p136 = scmp.eq.s32.totalorder %s30, 1
      %p137 = por %p135, %p136
      %p139 = scmp.ne.s32.totalorder %s124, %s138
      %p140 = scmp.eq.s32.totalorder %s30, 0
      %p141 = por %p139, %p140
      %s143 = sadd.s32 %s142, 1
      %p146 = scmp.eq.s32.totalorder %s24, 1
      %p147 = scmp.ne.s32.totalorder %s142, %s144
      %p148 = scmp.eq.s32.totalorder %s24, 0
      %p149 = por %p147, %p148
      %p150 = scmp.ne.s32.totalorder %s142, %s144
      %p151 = scmp.eq.s32.totalorder %s29, 1
      %p152 = por %p150, %p151
      %p153 = scmp.ne.s32.totalorder %s144, %s145
      %p154 = scmp.eq.s32.totalorder %s29, 0
      %p155 = por %p153, %p154
      %p156 = scmp.ne.s32.totalorder %s144, %s145
      %p157 = scmp.eq.s32.totalorder %s30, 1
      %p158 = por %p156, %p157
      %p160 = scmp.ne.s32.totalorder %s145, %s159
      %p161 = scmp.eq.s32.totalorder %s30, 0
      %p162 = por %p160, %p161
      %s164 = sadd.s32 %s163, 1
      %p167 = scmp.eq.s32.totalorder %s24, 1
      %p168 = scmp.ne.s32.totalorder %s163, %s165
      %p169 = scmp.eq.s32.totalorder %s24, 0
      %p170 = por %p168, %p169
      %p171 = scmp.ne.s32.totalorder %s163, %s165
      %p172 = scmp.eq.s32.totalorder %s29, 1
      %p173 = por %p171, %p172
      %p174 = scmp.ne.s32.totalorder %s165, %s166
      %p175 = scmp.eq.s32.totalorder %s29, 0
      %p176 = por %p174, %p175
      %p177 = scmp.ne.s32.totalorder %s165, %s166
      %p178 = scmp.eq.s32.totalorder %s30, 1
      %p179 = por %p177, %p178
      %p181 = scmp.ne.s32.totalorder %s166, %s180
      %p182 = scmp.eq.s32.totalorder %s30, 0
      %p183 = por %p181, %p182
      %s185 = sadd.s32 %s184, 1
      %p188 = scmp.eq.s32.totalorder %s24, 1
      %p189 = scmp.ne.s32.totalorder %s184, %s186
      %p190 = scmp.eq.s32.totalorder %s24, 0
      %p191 = por %p189, %p190
      %p192 = scmp.ne.s32.totalorder %s184, %s186
      %p193 = scmp.eq.s32.totalorder %s29, 1
      %p194 = por %p192, %p193
      %p195 = scmp.ne.s32.totalorder %s186, %s187
      %p196 = scmp.eq.s32.totalorder %s29, 0
      %p197 = por %p195, %p196
      %p198 = scmp.ne.s32.totalorder %s186, %s187
      %p199 = scmp.eq.s32.totalorder %s30, 1
      %p200 = por %p198, %p199
      %p202 = scmp.ne.s32.totalorder %s187, %s201
      %p203 = scmp.eq.s32.totalorder %s30, 0
      %p204 = por %p202, %p203
      %s206 = sadd.s32 %s205, 1
      %p209 = scmp.eq.s32.totalorder %s24, 1
      %p210 = scmp.ne.s32.totalorder %s205, %s207
      %p211 = scmp.eq.s32.totalorder %s24, 0
      %p212 = por %p210, %p211
      %p213 = scmp.ne.s32.totalorder %s205, %s207
      %p214 = scmp.eq.s32.totalorder %s29, 1
      %p215 = por %p213, %p214
      %p216 = scmp.ne.s32.totalorder %s207, %s208
      %p217 = scmp.eq.s32.totalorder %s29, 0
      %p218 = por %p216, %p217
      %p219 = scmp.ne.s32.totalorder %s207, %s208
      %p220 = scmp.eq.s32.totalorder %s30, 1
      %p221 = por %p219, %p220
      %p223 = scmp.ne.s32.totalorder %s208, %s222
      %p224 = scmp.eq.s32.totalorder %s30, 0
      %p225 = por %p223, %p224
      %s227 = sadd.s32 %s226, 1
      %p230 = scmp.eq.s32.totalorder %s24, 1
      %p231 = scmp.ne.s32.totalorder %s226, %s228
      %p232 = scmp.eq.s32.totalorder %s24, 0
      %p233 = por %p231, %p232
      %p234 = scmp.ne.s32.totalorder %s226, %s228
      %p235 = scmp.eq.s32.totalorder %s29, 1
      %p236 = por %p234, %p235
      %p237 = scmp.ne.s32.totalorder %s228, %s229
      %p238 = scmp.eq.s32.totalorder %s29, 0
      %p239 = por %p237, %p238
      %p240 = scmp.ne.s32.totalorder %s228, %s229
      %p241 = scmp.eq.s32.totalorder %s30, 1
      %p242 = por %p240, %p241
      %p244 = scmp.ne.s32.totalorder %s229, %s243
      %p245 = scmp.eq.s32.totalorder %s30, 0
      %p246 = por %p244, %p245
      %s248 = sadd.s32 %s247, 1
      %p251 = scmp.eq.s32.totalorder %s24, 1
      %p252 = scmp.ne.s32.totalorder %s247, %s249
      %p253 = scmp.eq.s32.totalorder %s24, 0
      %p254 = por %p252, %p253
      %p255 = scmp.ne.s32.totalorder %s247, %s249
      %p256 = scmp.eq.s32.totalorder %s29, 1
      %p257 = por %p255, %p256
      %p258 = scmp.ne.s32.totalorder %s249, %s250
      %p259 = scmp.eq.s32.totalorder %s29, 0
      %p260 = por %p258, %p259
      %p261 = scmp.ne.s32.totalorder %s249, %s250
      %p262 = scmp.eq.s32.totalorder %s30, 1
      %p263 = por %p261, %p262
      %p265 = scmp.ne.s32.totalorder %s250, %s264
      %p266 = scmp.eq.s32.totalorder %s30, 0
      %p267 = por %p265, %p266
      %s268 = ssub.s32 %s24, %s31
      %p269 = scmp.eq.s32.totalorder %s268, 0
      %s271 = sadd.s32 %s270, 1
      %s272 = scalar_select %p269, %s270, %s271
      %p275 = pneg %p269
      %p276 = scmp.eq.s32.totalorder %s24, 1
      %p277 = por %p275, %p276
      %p278 = scmp.ne.s32.totalorder %s270, %s273
      %p279 = scmp.eq.s32.totalorder %s24, 0
      %p280 = por %p278, %p279
      %p281 = scmp.ne.s32.totalorder %s270, %s273
      %p282 = scmp.eq.s32.totalorder %s29, 1
      %p283 = por %p281, %p282
      %p284 = scmp.ne.s32.totalorder %s273, %s274
      %p285 = scmp.eq.s32.totalorder %s29, 0
      %p286 = por %p284, %p285
      %p287 = scmp.ne.s32.totalorder %s273, %s274
      %p288 = scmp.eq.s32.totalorder %s30, 1
      %p289 = por %p287, %p288
      %p291 = scmp.ne.s32.totalorder %s274, %s290
      %p292 = scmp.eq.s32.totalorder %s30, 0
      %p293 = por %p291, %p292
      %p294 = scmp.le.s32.totalorder 1, %s24
      %p295 = scmp.lt.s32.totalorder %s24, 3
      %p296 = pnand %p294, %p295
      %p297 = pneg %p296
      // Predicated region
      $region9: #{discriminator_forward.1} parent=5 // pred_check
        _
      $region10: #{discriminator_forward.1} parent=5 // pred_check_branch
        %299 = sbr.rel (%p296) target = $region12
      $region11: #{discriminator_forward.1} parent=5 // pred_region
        %s300 = ssub.s32 %s24, 1
        // Predicated region
        $region13: #{discriminator_forward.1} parent=11 // pred_check
          %p301 = pneg %p71
        $region14: #{discriminator_forward.1} parent=11 // pred_check_branch
          %303 = sbr.rel (%p301) target = $region16
        $region15: #{discriminator_forward.1} parent=11 // pred_region
          %s305 = ssub.s32 65536, 65536
          %306 = vsyncadd [#allocation4], %s305
          %s307 = sshll.u32 [#allocation3], 4
          %s308 = int_to_ptr.vmem [resolvable:$true] %s307
          %313 = dma.hbm_to_vmem [thread:$0]  %s1, 65536, %s308, [#allocation4], 512, 512, 32
        $region16: #{discriminator_forward.1} parent=11 // pred_fallthru
          _
        // Predicated region
        $region17: #{discriminator_forward.1} parent=11 // pred_check
          %p314 = pneg %p92
        $region18: #{discriminator_forward.1} parent=11 // pred_check_branch
          %316 = sbr.rel (%p314) target = $region20
        $region19: #{discriminator_forward.1} parent=11 // pred_region
          %s318 = ssub.s32 512, 512
          %319 = vsyncadd [#allocation6], %s318
          %s321 = sshll.u32 [#allocation5], 4
          %s322 = int_to_ptr.vmem [resolvable:$true] %s321
          %324 = dma.hbm_to_vmem [thread:$0]  %s2, 512, %s322, [#allocation6]
        $region20: #{discriminator_forward.1} parent=11 // pred_fallthru
          _
        // Predicated region
        $region21: #{discriminator_forward.1} parent=11 // pred_check
          %p325 = pneg %p113
        $region22: #{discriminator_forward.1} parent=11 // pred_check_branch
          %327 = sbr.rel (%p325) target = $region24
        $region23: #{discriminator_forward.1} parent=11 // pred_region
          %s329 = ssub.s32 32768, 32768
          %330 = vsyncadd [#allocation6], %s329
          %s331 = sshll.u32 [#allocation7], 4
          %s332 = int_to_ptr.vmem [resolvable:$true] %s331
          %337 = dma.hbm_to_vmem [thread:$0]  %s3, 32768, %s332, [#allocation6], 256, 256, 16
        $region24: #{discriminator_forward.1} parent=11 // pred_fallthru
          _
        // Predicated region
        $region25: #{discriminator_forward.1} parent=11 // pred_check
          %p338 = pneg %p134
        $region26: #{discriminator_forward.1} parent=11 // pred_check_branch
          %340 = sbr.rel (%p338) target = $region28
        $region27: #{discriminator_forward.1} parent=11 // pred_region
          %s342 = ssub.s32 256, 256
          %343 = vsyncadd [#allocation9], %s342
          %s345 = sshll.u32 [#allocation8], 4
          %s346 = int_to_ptr.vmem [resolvable:$true] %s345
          %348 = dma.hbm_to_vmem [thread:$0]  %s4, 256, %s346, [#allocation9]
        $region28: #{discriminator_forward.1} parent=11 // pred_fallthru
          _
        // Predicated region
        $region29: #{discriminator_forward.1} parent=11 // pred_check
          %p349 = pneg %p155
        $region30: #{discriminator_forward.1} parent=11 // pred_check_branch
          %351 = sbr.rel (%p349) target = $region32
        $region31: #{discriminator_forward.1} parent=11 // pred_region
          %s353 = ssub.s32 8192, 8192
          %354 = vsyncadd [#allocation9], %s353
          %s355 = sshll.u32 [#allocation10], 4
          %s356 = int_to_ptr.vmem [resolvable:$true] %s355
          %361 = dma.hbm_to_vmem [thread:$0]  %s5, 8192, %s356, [#allocation9], 128, 128, 8
        $region32: #{discriminator_forward.1} parent=11 // pred_fallthru
          _
        // Predicated region
        $region33: #{discriminator_forward.1} parent=11 // pred_check
          %p362 = pneg %p176
        $region34: #{discriminator_forward.1} parent=11 // pred_check_branch
          %364 = sbr.rel (%p362) target = $region36
        $region35: #{discriminator_forward.1} parent=11 // pred_region
          %s366 = ssub.s32 128, 128
          %367 = vsyncadd [#allocation12], %s366
          %s369 = sshll.u32 [#allocation11], 4
          %s370 = int_to_ptr.vmem [resolvable:$true] %s369
          %372 = dma.hbm_to_vmem [thread:$0]  %s6, 128, %s370, [#allocation12]
        $region36: #{discriminator_forward.1} parent=11 // pred_fallthru
          _
        // Predicated region
        $region37: #{discriminator_forward.1} parent=11 // pred_check
          %p373 = pneg %p197
        $region38: #{discriminator_forward.1} parent=11 // pred_check_branch
          %375 = sbr.rel (%p373) target = $region40
        $region39: #{discriminator_forward.1} parent=11 // pred_region
          %s377 = ssub.s32 2048, 2048
          %378 = vsyncadd [#allocation12], %s377
          %s379 = sshll.u32 [#allocation13], 4
          %s380 = int_to_ptr.vmem [resolvable:$true] %s379
          %385 = dma.hbm_to_vmem [thread:$0]  %s7, 2048, %s380, [#allocation12], 64, 64, 4
        $region40: #{discriminator_forward.1} parent=11 // pred_fallthru
          _
        // Predicated region
        $region41: #{discriminator_forward.1} parent=11 // pred_check
          %p386 = pneg %p218
        $region42: #{discriminator_forward.1} parent=11 // pred_check_branch
          %388 = sbr.rel (%p386) target = $region44
        $region43: #{discriminator_forward.1} parent=11 // pred_region
          %s390 = ssub.s32 64, 64
          %391 = vsyncadd [#allocation15], %s390
          %s393 = sshll.u32 [#allocation14], 4
          %s394 = int_to_ptr.vmem [resolvable:$true] %s393
          %396 = dma.hbm_to_vmem [thread:$0]  %s8, 64, %s394, [#allocation15]
        $region44: #{discriminator_forward.1} parent=11 // pred_fallthru
          _
        // Predicated region
        $region45: #{discriminator_forward.1} parent=11 // pred_check
          %p397 = pneg %p239
        $region46: #{discriminator_forward.1} parent=11 // pred_check_branch
          %399 = sbr.rel (%p397) target = $region48
        $region47: #{discriminator_forward.1} parent=11 // pred_region
          %s401 = ssub.s32 16, 16
          %402 = vsyncadd [#allocation15], %s401
          %s404 = sshll.u32 [#allocation16], 4
          %s405 = int_to_ptr.vmem [resolvable:$true] %s404
          %407 = dma.hbm_to_vmem [thread:$0]  %s9, 16, %s405, [#allocation15]
        $region48: #{discriminator_forward.1} parent=11 // pred_fallthru
          _
        // Predicated region
        $region49: #{discriminator_forward.1} parent=11 // pred_check
          %p408 = pneg %p260
        $region50: #{discriminator_forward.1} parent=11 // pred_check_branch
          %410 = sbr.rel (%p408) target = $region52
        $region51: #{discriminator_forward.1} parent=11 // pred_region
          _
        $region52: #{discriminator_forward.1} parent=11 // pred_fallthru
          _
      $region12: #{discriminator_forward.1} parent=5 // pred_fallthru
        _
      %p411 = scmp.lt.s32.totalorder %s24, 2
      // Predicated region
      $region53: #{discriminator_forward.1} parent=5 // pred_check
        %p412 = pneg %p411
      $region54: #{discriminator_forward.1} parent=5 // pred_check_branch
        %414 = sbr.rel (%p412) target = $region56
      $region55: #{discriminator_forward.1} parent=5 // pred_region
        // Predicated region
        $region57: #{discriminator_forward.1} parent=55 // pred_check
          %p415 = pneg %p44
        $region58: #{discriminator_forward.1} parent=55 // pred_check_branch
          %417 = sbr.rel (%p415) target = $region60
        $region59: #{discriminator_forward.1} parent=55 // pred_region
          %s418 = smul.u32 2, %s24
          %p419 = scmp.lt.s32.totalorder %s418, 3
          %s420 = scalar_select %p419, %s418, 3
          %s421 = smul.addr %s420, 8
          %s422 = smul.addr %s421, 4
          %s423 = scalar_lea.vmem %s0, %s422
          %s424 = smul.u32 2, %s24
        $region60: #{discriminator_forward.1} parent=55 // pred_fallthru
          _
      $region56: #{discriminator_forward.1} parent=5 // pred_fallthru
        _
      %p425 = scmp.le.s32.totalorder 1, %s24
      %p426 = scmp.lt.s32.totalorder %s24, 3
      %p427 = pnand %p425, %p426
      %p428 = pneg %p427
      // Predicated region
      $region61: #{discriminator_forward.1} parent=5 // pred_check
        _
      $region62: #{discriminator_forward.1} parent=5 // pred_check_branch
        %430 = sbr.rel (%p427) target = $region64
      $region63: #{discriminator_forward.1} parent=5 // pred_region
        %s431 = ssub.s32 %s24, 1
        // Predicated region
        $region65: #{discriminator_forward.1} parent=63 // pred_check
          %p432 = pneg %p71
        $region66: #{discriminator_forward.1} parent=63 // pred_check_branch
          %434 = sbr.rel (%p432) target = $region68
        $region67: #{discriminator_forward.1} parent=63 // pred_region
          %435 = dma.done [#allocation4], 65536
        $region68: #{discriminator_forward.1} parent=63 // pred_fallthru
          _
        // Predicated region
        $region69: #{discriminator_forward.1} parent=63 // pred_check
          %p436 = pneg %p92
        $region70: #{discriminator_forward.1} parent=63 // pred_check_branch
          %438 = sbr.rel (%p436) target = $region72
        $region71: #{discriminator_forward.1} parent=63 // pred_region
          %439 = dma.done [#allocation6], 512
        $region72: #{discriminator_forward.1} parent=63 // pred_fallthru
          _
        // Predicated region
        $region73: #{discriminator_forward.1} parent=63 // pred_check
          %p440 = pneg %p113
        $region74: #{discriminator_forward.1} parent=63 // pred_check_branch
          %442 = sbr.rel (%p440) target = $region76
        $region75: #{discriminator_forward.1} parent=63 // pred_region
          %443 = dma.done [#allocation6], 32768
        $region76: #{discriminator_forward.1} parent=63 // pred_fallthru
          _
        // Predicated region
        $region77: #{discriminator_forward.1} parent=63 // pred_check
          %p444 = pneg %p134
        $region78: #{discriminator_forward.1} parent=63 // pred_check_branch
          %446 = sbr.rel (%p444) target = $region80
        $region79: #{discriminator_forward.1} parent=63 // pred_region
          %447 = dma.done [#allocation9], 256
        $region80: #{discriminator_forward.1} parent=63 // pred_fallthru
          _
        // Predicated region
        $region81: #{discriminator_forward.1} parent=63 // pred_check
          %p448 = pneg %p155
        $region82: #{discriminator_forward.1} parent=63 // pred_check_branch
          %450 = sbr.rel (%p448) target = $region84
        $region83: #{discriminator_forward.1} parent=63 // pred_region
          %451 = dma.done [#allocation9], 8192
        $region84: #{discriminator_forward.1} parent=63 // pred_fallthru
          _
        // Predicated region
        $region85: #{discriminator_forward.1} parent=63 // pred_check
          %p452 = pneg %p176
        $region86: #{discriminator_forward.1} parent=63 // pred_check_branch
          %454 = sbr.rel (%p452) target = $region88
        $region87: #{discriminator_forward.1} parent=63 // pred_region
          %455 = dma.done [#allocation12], 128
        $region88: #{discriminator_forward.1} parent=63 // pred_fallthru
          _
        // Predicated region
        $region89: #{discriminator_forward.1} parent=63 // pred_check
          %p456 = pneg %p197
        $region90: #{discriminator_forward.1} parent=63 // pred_check_branch
          %458 = sbr.rel (%p456) target = $region92
        $region91: #{discriminator_forward.1} parent=63 // pred_region
          %459 = dma.done [#allocation12], 2048
        $region92: #{discriminator_forward.1} parent=63 // pred_fallthru
          _
        // Predicated region
        $region93: #{discriminator_forward.1} parent=63 // pred_check
          %p460 = pneg %p218
        $region94: #{discriminator_forward.1} parent=63 // pred_check_branch
          %462 = sbr.rel (%p460) target = $region96
        $region95: #{discriminator_forward.1} parent=63 // pred_region
          %463 = dma.done [#allocation15], 64
        $region96: #{discriminator_forward.1} parent=63 // pred_fallthru
          _
        // Predicated region
        $region97: #{discriminator_forward.1} parent=63 // pred_check
          %p464 = pneg %p239
        $region98: #{discriminator_forward.1} parent=63 // pred_check_branch
          %466 = sbr.rel (%p464) target = $region100
        $region99: #{discriminator_forward.1} parent=63 // pred_region
          %467 = dma.done [#allocation15], 16
        $region100: #{discriminator_forward.1} parent=63 // pred_fallthru
          _
        %s468 = smul.u32 2, %s29
        %p469 = scmp.lt.s32.totalorder %s468, 3
        %s470 = scalar_select %p469, %s468, 3
        %s471 = smul.addr %s470, 8
        %s472 = smul.addr %s471, 4
        %s473 = scalar_lea.vmem %s0, %s472
        %p474 = pneg %p50
        %p475 = pneg %p47
        %p476 = pneg %p71
        %p477 = pneg %p68
        %p478 = pneg %p92
        %p479 = pneg %p89
        %p480 = pneg %p113
        %p481 = pneg %p110
        %p482 = pneg %p134
        %p483 = pneg %p131
        %p484 = pneg %p155
        %p485 = pneg %p152
        %p486 = pneg %p176
        %p487 = pneg %p173
        %p488 = pneg %p197
        %p489 = pneg %p194
        %p490 = pneg %p218
        %p491 = pneg %p215
        %p492 = pneg %p239
        %p493 = pneg %p236
        %p494 = pneg %p260
        %p495 = pneg %p257
        %p496 = pneg %p286
        %p497 = pneg %p283
        %s498 = smul.u32 2, %s29
        %p499 = scmp.lt.s32.totalorder %s498, 3
        %s500 = scalar_select %p499, %s498, 3
        %s501 = smul.addr %s500, 8
        %s502 = scalar_lea.vmem %s11, %s501
        %s503 = smul.u32 2, %s29
        %p504 = scmp.lt.s32.totalorder %s503, 3
        %s505 = scalar_select %p504, %s503, 3
        %s506 = smul.addr %s505, 8
        %s507 = smul.addr %s506, 4
        %s508 = scalar_lea.vmem %s0, %s507
        %s509 = smul.u32 2, %s29
        %s510 = smul.u32 2, %s29
        %p511 = scmp.lt.s32.totalorder %s510, 3
        %s512 = scalar_select %p511, %s510, 3
        %s513 = smul.addr %s512, 8
        %s514 = scalar_lea.vmem %s11, %s513
        %s515 = smul.u32 2, %s29
        %v517 = vld [vmem:[%s508] sm:$0xff]
        %v518 = vld [vmem:[%s508 + $0x8] sm:$0xff]
        %v519 = vld [vmem:[%s508 + $0x10] sm:$0xff]
        %v520 = vld [vmem:[%s508 + $0x18] sm:$0xff]
        %v521 = vld [vmem:[%s508 + $0x20] sm:$0xff]
        %v522 = vld [vmem:[%s508 + $0x28] sm:$0xff]
        %v523 = vld [vmem:[%s508 + $0x30] sm:$0xff]
        %v524 = vld [vmem:[%s508 + $0x38] sm:$0xff]
        %v525 = vld [vmem:[#allocation3] sm:$0xff]
        %v526 = vld [vmem:[#allocation3 + $0x8] sm:$0xff]
        %v527 = vld [vmem:[#allocation3 + $0x10] sm:$0xff]
        %v528 = vld [vmem:[#allocation3 + $0x18] sm:$0xff]
        %v529 = vld [vmem:[#allocation3 + $0x20] sm:$0xff]
        %v530 = vld [vmem:[#allocation3 + $0x28] sm:$0xff]
        %v531 = vld [vmem:[#allocation3 + $0x30] sm:$0xff]
        %v532 = vld [vmem:[#allocation3 + $0x38] sm:$0xff]
        %v533 = vld [vmem:[#allocation3 + $0x40] sm:$0xff]
        %v534 = vld [vmem:[#allocation3 + $0x48] sm:$0xff]
        %v535 = vld [vmem:[#allocation3 + $0x50] sm:$0xff]
        %v536 = vld [vmem:[#allocation3 + $0x58] sm:$0xff]
        %v537 = vld [vmem:[#allocation3 + $0x60] sm:$0xff]
        %v538 = vld [vmem:[#allocation3 + $0x68] sm:$0xff]
        %v539 = vld [vmem:[#allocation3 + $0x70] sm:$0xff]
        %v540 = vld [vmem:[#allocation3 + $0x78] sm:$0xff]
        %v541 = vld [vmem:[#allocation3 + $0x80] sm:$0xff]
        %v542 = vld [vmem:[#allocation3 + $0x88] sm:$0xff]
        %v543 = vld [vmem:[#allocation3 + $0x90] sm:$0xff]
        %v544 = vld [vmem:[#allocation3 + $0x98] sm:$0xff]
        %v545 = vld [vmem:[#allocation3 + $0xa0] sm:$0xff]
        %v546 = vld [vmem:[#allocation3 + $0xa8] sm:$0xff]
        %v547 = vld [vmem:[#allocation3 + $0xb0] sm:$0xff]
        %v548 = vld [vmem:[#allocation3 + $0xb8] sm:$0xff]
        %v549 = vld [vmem:[#allocation3 + $0xc0] sm:$0xff]
        %v550 = vld [vmem:[#allocation3 + $0xc8] sm:$0xff]
        %v551 = vld [vmem:[#allocation3 + $0xd0] sm:$0xff]
        %v552 = vld [vmem:[#allocation3 + $0xd8] sm:$0xff]
        %v553 = vld [vmem:[#allocation3 + $0xe0] sm:$0xff]
        %v554 = vld [vmem:[#allocation3 + $0xe8] sm:$0xff]
        %v555 = vld [vmem:[#allocation3 + $0xf0] sm:$0xff]
        %v556 = vld [vmem:[#allocation3 + $0xf8] sm:$0xff]
        %v557 = vld [vmem:[#allocation3 + $0x100] sm:$0xff]
        %v558 = vld [vmem:[#allocation3 + $0x108] sm:$0xff]
        %v559 = vld [vmem:[#allocation3 + $0x110] sm:$0xff]
        %v560 = vld [vmem:[#allocation3 + $0x118] sm:$0xff]
        %v561 = vld [vmem:[#allocation3 + $0x120] sm:$0xff]
        %v562 = vld [vmem:[#allocation3 + $0x128] sm:$0xff]
        %v563 = vld [vmem:[#allocation3 + $0x130] sm:$0xff]
        %v564 = vld [vmem:[#allocation3 + $0x138] sm:$0xff]
        %v565 = vld [vmem:[#allocation3 + $0x140] sm:$0xff]
        %v566 = vld [vmem:[#allocation3 + $0x148] sm:$0xff]
        %v567 = vld [vmem:[#allocation3 + $0x150] sm:$0xff]
        %v568 = vld [vmem:[#allocation3 + $0x158] sm:$0xff]
        %v569 = vld [vmem:[#allocation3 + $0x160] sm:$0xff]
        %v570 = vld [vmem:[#allocation3 + $0x168] sm:$0xff]
        %v571 = vld [vmem:[#allocation3 + $0x170] sm:$0xff]
        %v572 = vld [vmem:[#allocation3 + $0x178] sm:$0xff]
        %v573 = vld [vmem:[#allocation3 + $0x180] sm:$0xff]
        %v574 = vld [vmem:[#allocation3 + $0x188] sm:$0xff]
        %v575 = vld [vmem:[#allocation3 + $0x190] sm:$0xff]
        %v576 = vld [vmem:[#allocation3 + $0x198] sm:$0xff]
        %v577 = vld [vmem:[#allocation3 + $0x1a0] sm:$0xff]
        %v578 = vld [vmem:[#allocation3 + $0x1a8] sm:$0xff]
        %v579 = vld [vmem:[#allocation3 + $0x1b0] sm:$0xff]
        %v580 = vld [vmem:[#allocation3 + $0x1b8] sm:$0xff]
        %v581 = vld [vmem:[#allocation3 + $0x1c0] sm:$0xff]
        %v582 = vld [vmem:[#allocation3 + $0x1c8] sm:$0xff]
        %v583 = vld [vmem:[#allocation3 + $0x1d0] sm:$0xff]
        %v584 = vld [vmem:[#allocation3 + $0x1d8] sm:$0xff]
        %v585 = vld [vmem:[#allocation3 + $0x1e0] sm:$0xff]
        %v586 = vld [vmem:[#allocation3 + $0x1e8] sm:$0xff]
        %v587 = vld [vmem:[#allocation3 + $0x1f0] sm:$0xff]
        %v588 = vld [vmem:[#allocation3 + $0x1f8] sm:$0xff]
        %v589 = vld [vmem:[#allocation3 + $0x200] sm:$0xff]
        %v590 = vld [vmem:[#allocation3 + $0x208] sm:$0xff]
        %v591 = vld [vmem:[#allocation3 + $0x210] sm:$0xff]
        %v592 = vld [vmem:[#allocation3 + $0x218] sm:$0xff]
        %v593 = vld [vmem:[#allocation3 + $0x220] sm:$0xff]
        %v594 = vld [vmem:[#allocation3 + $0x228] sm:$0xff]
        %v595 = vld [vmem:[#allocation3 + $0x230] sm:$0xff]
        %v596 = vld [vmem:[#allocation3 + $0x238] sm:$0xff]
        %v597 = vld [vmem:[#allocation3 + $0x240] sm:$0xff]
        %v598 = vld [vmem:[#allocation3 + $0x248] sm:$0xff]
        %v599 = vld [vmem:[#allocation3 + $0x250] sm:$0xff]
        %v600 = vld [vmem:[#allocation3 + $0x258] sm:$0xff]
        %v601 = vld [vmem:[#allocation3 + $0x260] sm:$0xff]
        %v602 = vld [vmem:[#allocation3 + $0x268] sm:$0xff]
        %v603 = vld [vmem:[#allocation3 + $0x270] sm:$0xff]
        %v604 = vld [vmem:[#allocation3 + $0x278] sm:$0xff]
        %v605 = vld [vmem:[#allocation3 + $0x280] sm:$0xff]
        %v606 = vld [vmem:[#allocation3 + $0x288] sm:$0xff]
        %v607 = vld [vmem:[#allocation3 + $0x290] sm:$0xff]
        %v608 = vld [vmem:[#allocation3 + $0x298] sm:$0xff]
        %v609 = vld [vmem:[#allocation3 + $0x2a0] sm:$0xff]
        %v610 = vld [vmem:[#allocation3 + $0x2a8] sm:$0xff]
        %v611 = vld [vmem:[#allocation3 + $0x2b0] sm:$0xff]
        %v612 = vld [vmem:[#allocation3 + $0x2b8] sm:$0xff]
        %v613 = vld [vmem:[#allocation3 + $0x2c0] sm:$0xff]
        %v614 = vld [vmem:[#allocation3 + $0x2c8] sm:$0xff]
        %v615 = vld [vmem:[#allocation3 + $0x2d0] sm:$0xff]
        %v616 = vld [vmem:[#allocation3 + $0x2d8] sm:$0xff]
        %v617 = vld [vmem:[#allocation3 + $0x2e0] sm:$0xff]
        %v618 = vld [vmem:[#allocation3 + $0x2e8] sm:$0xff]
        %v619 = vld [vmem:[#allocation3 + $0x2f0] sm:$0xff]
        %v620 = vld [vmem:[#allocation3 + $0x2f8] sm:$0xff]
        %v621 = vld [vmem:[#allocation3 + $0x300] sm:$0xff]
        %v622 = vld [vmem:[#allocation3 + $0x308] sm:$0xff]
        %v623 = vld [vmem:[#allocation3 + $0x310] sm:$0xff]
        %v624 = vld [vmem:[#allocation3 + $0x318] sm:$0xff]
        %v625 = vld [vmem:[#allocation3 + $0x320] sm:$0xff]
        %v626 = vld [vmem:[#allocation3 + $0x328] sm:$0xff]
        %v627 = vld [vmem:[#allocation3 + $0x330] sm:$0xff]
        %v628 = vld [vmem:[#allocation3 + $0x338] sm:$0xff]
        %v629 = vld [vmem:[#allocation3 + $0x340] sm:$0xff]
        %v630 = vld [vmem:[#allocation3 + $0x348] sm:$0xff]
        %v631 = vld [vmem:[#allocation3 + $0x350] sm:$0xff]
        %v632 = vld [vmem:[#allocation3 + $0x358] sm:$0xff]
        %v633 = vld [vmem:[#allocation3 + $0x360] sm:$0xff]
        %v634 = vld [vmem:[#allocation3 + $0x368] sm:$0xff]
        %v635 = vld [vmem:[#allocation3 + $0x370] sm:$0xff]
        %v636 = vld [vmem:[#allocation3 + $0x378] sm:$0xff]
        %v637 = vld [vmem:[#allocation3 + $0x380] sm:$0xff]
        %v638 = vld [vmem:[#allocation3 + $0x388] sm:$0xff]
        %v639 = vld [vmem:[#allocation3 + $0x390] sm:$0xff]
        %v640 = vld [vmem:[#allocation3 + $0x398] sm:$0xff]
        %v641 = vld [vmem:[#allocation3 + $0x3a0] sm:$0xff]
        %v642 = vld [vmem:[#allocation3 + $0x3a8] sm:$0xff]
        %v643 = vld [vmem:[#allocation3 + $0x3b0] sm:$0xff]
        %v644 = vld [vmem:[#allocation3 + $0x3b8] sm:$0xff]
        %v645 = vld [vmem:[#allocation3 + $0x3c0] sm:$0xff]
        %v646 = vld [vmem:[#allocation3 + $0x3c8] sm:$0xff]
        %v647 = vld [vmem:[#allocation3 + $0x3d0] sm:$0xff]
        %v648 = vld [vmem:[#allocation3 + $0x3d8] sm:$0xff]
        %v649 = vld [vmem:[#allocation3 + $0x3e0] sm:$0xff]
        %v650 = vld [vmem:[#allocation3 + $0x3e8] sm:$0xff]
        %v651 = vld [vmem:[#allocation3 + $0x3f0] sm:$0xff]
        %v652 = vld [vmem:[#allocation3 + $0x3f8] sm:$0xff]
        %v653 = vld [vmem:[#allocation3 + $0x400] sm:$0xff]
        %v654 = vld [vmem:[#allocation3 + $0x408] sm:$0xff]
        %v655 = vld [vmem:[#allocation3 + $0x410] sm:$0xff]
        %v656 = vld [vmem:[#allocation3 + $0x418] sm:$0xff]
        %v657 = vld [vmem:[#allocation3 + $0x420] sm:$0xff]
        %v658 = vld [vmem:[#allocation3 + $0x428] sm:$0xff]
        %v659 = vld [vmem:[#allocation3 + $0x430] sm:$0xff]
        %v660 = vld [vmem:[#allocation3 + $0x438] sm:$0xff]
        %v661 = vld [vmem:[#allocation3 + $0x440] sm:$0xff]
        %v662 = vld [vmem:[#allocation3 + $0x448] sm:$0xff]
        %v663 = vld [vmem:[#allocation3 + $0x450] sm:$0xff]
        %v664 = vld [vmem:[#allocation3 + $0x458] sm:$0xff]
        %v665 = vld [vmem:[#allocation3 + $0x460] sm:$0xff]
        %v666 = vld [vmem:[#allocation3 + $0x468] sm:$0xff]
        %v667 = vld [vmem:[#allocation3 + $0x470] sm:$0xff]
        %v668 = vld [vmem:[#allocation3 + $0x478] sm:$0xff]
        %v669 = vld [vmem:[#allocation3 + $0x480] sm:$0xff]
        %v670 = vld [vmem:[#allocation3 + $0x488] sm:$0xff]
        %v671 = vld [vmem:[#allocation3 + $0x490] sm:$0xff]
        %v672 = vld [vmem:[#allocation3 + $0x498] sm:$0xff]
        %v673 = vld [vmem:[#allocation3 + $0x4a0] sm:$0xff]
        %v674 = vld [vmem:[#allocation3 + $0x4a8] sm:$0xff]
        %v675 = vld [vmem:[#allocation3 + $0x4b0] sm:$0xff]
        %v676 = vld [vmem:[#allocation3 + $0x4b8] sm:$0xff]
        %v677 = vld [vmem:[#allocation3 + $0x4c0] sm:$0xff]
        %v678 = vld [vmem:[#allocation3 + $0x4c8] sm:$0xff]
        %v679 = vld [vmem:[#allocation3 + $0x4d0] sm:$0xff]
        %v680 = vld [vmem:[#allocation3 + $0x4d8] sm:$0xff]
        %v681 = vld [vmem:[#allocation3 + $0x4e0] sm:$0xff]
        %v682 = vld [vmem:[#allocation3 + $0x4e8] sm:$0xff]
        %v683 = vld [vmem:[#allocation3 + $0x4f0] sm:$0xff]
        %v684 = vld [vmem:[#allocation3 + $0x4f8] sm:$0xff]
        %v685 = vld [vmem:[#allocation3 + $0x500] sm:$0xff]
        %v686 = vld [vmem:[#allocation3 + $0x508] sm:$0xff]
        %v687 = vld [vmem:[#allocation3 + $0x510] sm:$0xff]
        %v688 = vld [vmem:[#allocation3 + $0x518] sm:$0xff]
        %v689 = vld [vmem:[#allocation3 + $0x520] sm:$0xff]
        %v690 = vld [vmem:[#allocation3 + $0x528] sm:$0xff]
        %v691 = vld [vmem:[#allocation3 + $0x530] sm:$0xff]
        %v692 = vld [vmem:[#allocation3 + $0x538] sm:$0xff]
        %v693 = vld [vmem:[#allocation3 + $0x540] sm:$0xff]
        %v694 = vld [vmem:[#allocation3 + $0x548] sm:$0xff]
        %v695 = vld [vmem:[#allocation3 + $0x550] sm:$0xff]
        %v696 = vld [vmem:[#allocation3 + $0x558] sm:$0xff]
        %v697 = vld [vmem:[#allocation3 + $0x560] sm:$0xff]
        %v698 = vld [vmem:[#allocation3 + $0x568] sm:$0xff]
        %v699 = vld [vmem:[#allocation3 + $0x570] sm:$0xff]
        %v700 = vld [vmem:[#allocation3 + $0x578] sm:$0xff]
        %v701 = vld [vmem:[#allocation3 + $0x580] sm:$0xff]
        %v702 = vld [vmem:[#allocation3 + $0x588] sm:$0xff]
        %v703 = vld [vmem:[#allocation3 + $0x590] sm:$0xff]
        %v704 = vld [vmem:[#allocation3 + $0x598] sm:$0xff]
        %v705 = vld [vmem:[#allocation3 + $0x5a0] sm:$0xff]
        %v706 = vld [vmem:[#allocation3 + $0x5a8] sm:$0xff]
        %v707 = vld [vmem:[#allocation3 + $0x5b0] sm:$0xff]
        %v708 = vld [vmem:[#allocation3 + $0x5b8] sm:$0xff]
        %v709 = vld [vmem:[#allocation3 + $0x5c0] sm:$0xff]
        %v710 = vld [vmem:[#allocation3 + $0x5c8] sm:$0xff]
        %v711 = vld [vmem:[#allocation3 + $0x5d0] sm:$0xff]
        %v712 = vld [vmem:[#allocation3 + $0x5d8] sm:$0xff]
        %v713 = vld [vmem:[#allocation3 + $0x5e0] sm:$0xff]
        %v714 = vld [vmem:[#allocation3 + $0x5e8] sm:$0xff]
        %v715 = vld [vmem:[#allocation3 + $0x5f0] sm:$0xff]
        %v716 = vld [vmem:[#allocation3 + $0x5f8] sm:$0xff]
        %v717 = vld [vmem:[#allocation3 + $0x600] sm:$0xff]
        %v718 = vld [vmem:[#allocation3 + $0x608] sm:$0xff]
        %v719 = vld [vmem:[#allocation3 + $0x610] sm:$0xff]
        %v720 = vld [vmem:[#allocation3 + $0x618] sm:$0xff]
        %v721 = vld [vmem:[#allocation3 + $0x620] sm:$0xff]
        %v722 = vld [vmem:[#allocation3 + $0x628] sm:$0xff]
        %v723 = vld [vmem:[#allocation3 + $0x630] sm:$0xff]
        %v724 = vld [vmem:[#allocation3 + $0x638] sm:$0xff]
        %v725 = vld [vmem:[#allocation3 + $0x640] sm:$0xff]
        %v726 = vld [vmem:[#allocation3 + $0x648] sm:$0xff]
        %v727 = vld [vmem:[#allocation3 + $0x650] sm:$0xff]
        %v728 = vld [vmem:[#allocation3 + $0x658] sm:$0xff]
        %v729 = vld [vmem:[#allocation3 + $0x660] sm:$0xff]
        %v730 = vld [vmem:[#allocation3 + $0x668] sm:$0xff]
        %v731 = vld [vmem:[#allocation3 + $0x670] sm:$0xff]
        %v732 = vld [vmem:[#allocation3 + $0x678] sm:$0xff]
        %v733 = vld [vmem:[#allocation3 + $0x680] sm:$0xff]
        %v734 = vld [vmem:[#allocation3 + $0x688] sm:$0xff]
        %v735 = vld [vmem:[#allocation3 + $0x690] sm:$0xff]
        %v736 = vld [vmem:[#allocation3 + $0x698] sm:$0xff]
        %v737 = vld [vmem:[#allocation3 + $0x6a0] sm:$0xff]
        %v738 = vld [vmem:[#allocation3 + $0x6a8] sm:$0xff]
        %v739 = vld [vmem:[#allocation3 + $0x6b0] sm:$0xff]
        %v740 = vld [vmem:[#allocation3 + $0x6b8] sm:$0xff]
        %v741 = vld [vmem:[#allocation3 + $0x6c0] sm:$0xff]
        %v742 = vld [vmem:[#allocation3 + $0x6c8] sm:$0xff]
        %v743 = vld [vmem:[#allocation3 + $0x6d0] sm:$0xff]
        %v744 = vld [vmem:[#allocation3 + $0x6d8] sm:$0xff]
        %v745 = vld [vmem:[#allocation3 + $0x6e0] sm:$0xff]
        %v746 = vld [vmem:[#allocation3 + $0x6e8] sm:$0xff]
        %v747 = vld [vmem:[#allocation3 + $0x6f0] sm:$0xff]
        %v748 = vld [vmem:[#allocation3 + $0x6f8] sm:$0xff]
        %v749 = vld [vmem:[#allocation3 + $0x700] sm:$0xff]
        %v750 = vld [vmem:[#allocation3 + $0x708] sm:$0xff]
        %v751 = vld [vmem:[#allocation3 + $0x710] sm:$0xff]
        %v752 = vld [vmem:[#allocation3 + $0x718] sm:$0xff]
        %v753 = vld [vmem:[#allocation3 + $0x720] sm:$0xff]
        %v754 = vld [vmem:[#allocation3 + $0x728] sm:$0xff]
        %v755 = vld [vmem:[#allocation3 + $0x730] sm:$0xff]
        %v756 = vld [vmem:[#allocation3 + $0x738] sm:$0xff]
        %v757 = vld [vmem:[#allocation3 + $0x740] sm:$0xff]
        %v758 = vld [vmem:[#allocation3 + $0x748] sm:$0xff]
        %v759 = vld [vmem:[#allocation3 + $0x750] sm:$0xff]
        %v760 = vld [vmem:[#allocation3 + $0x758] sm:$0xff]
        %v761 = vld [vmem:[#allocation3 + $0x760] sm:$0xff]
        %v762 = vld [vmem:[#allocation3 + $0x768] sm:$0xff]
        %v763 = vld [vmem:[#allocation3 + $0x770] sm:$0xff]
        %v764 = vld [vmem:[#allocation3 + $0x778] sm:$0xff]
        %v765 = vld [vmem:[#allocation3 + $0x780] sm:$0xff]
        %v766 = vld [vmem:[#allocation3 + $0x788] sm:$0xff]
        %v767 = vld [vmem:[#allocation3 + $0x790] sm:$0xff]
        %v768 = vld [vmem:[#allocation3 + $0x798] sm:$0xff]
        %v769 = vld [vmem:[#allocation3 + $0x7a0] sm:$0xff]
        %v770 = vld [vmem:[#allocation3 + $0x7a8] sm:$0xff]
        %v771 = vld [vmem:[#allocation3 + $0x7b0] sm:$0xff]
        %v772 = vld [vmem:[#allocation3 + $0x7b8] sm:$0xff]
        %v773 = vld [vmem:[#allocation3 + $0x7c0] sm:$0xff]
        %v774 = vld [vmem:[#allocation3 + $0x7c8] sm:$0xff]
        %v775 = vld [vmem:[#allocation3 + $0x7d0] sm:$0xff]
        %v776 = vld [vmem:[#allocation3 + $0x7d8] sm:$0xff]
        %v777 = vld [vmem:[#allocation3 + $0x7e0] sm:$0xff]
        %v778 = vld [vmem:[#allocation3 + $0x7e8] sm:$0xff]
        %v779 = vld [vmem:[#allocation3 + $0x7f0] sm:$0xff]
        %v780 = vld [vmem:[#allocation3 + $0x7f8] sm:$0xff]
        %v781 = vld [vmem:[#allocation3 + $0x800] sm:$0xff]
        %v782 = vld [vmem:[#allocation3 + $0x808] sm:$0xff]
        %v783 = vld [vmem:[#allocation3 + $0x810] sm:$0xff]
        %v784 = vld [vmem:[#allocation3 + $0x818] sm:$0xff]
        %v785 = vld [vmem:[#allocation3 + $0x820] sm:$0xff]
        %v786 = vld [vmem:[#allocation3 + $0x828] sm:$0xff]
        %v787 = vld [vmem:[#allocation3 + $0x830] sm:$0xff]
        %v788 = vld [vmem:[#allocation3 + $0x838] sm:$0xff]
        %v789 = vld [vmem:[#allocation3 + $0x840] sm:$0xff]
        %v790 = vld [vmem:[#allocation3 + $0x848] sm:$0xff]
        %v791 = vld [vmem:[#allocation3 + $0x850] sm:$0xff]
        %v792 = vld [vmem:[#allocation3 + $0x858] sm:$0xff]
        %v793 = vld [vmem:[#allocation3 + $0x860] sm:$0xff]
        %v794 = vld [vmem:[#allocation3 + $0x868] sm:$0xff]
        %v795 = vld [vmem:[#allocation3 + $0x870] sm:$0xff]
        %v796 = vld [vmem:[#allocation3 + $0x878] sm:$0xff]
        %v797 = vld [vmem:[#allocation3 + $0x880] sm:$0xff]
        %v798 = vld [vmem:[#allocation3 + $0x888] sm:$0xff]
        %v799 = vld [vmem:[#allocation3 + $0x890] sm:$0xff]
        %v800 = vld [vmem:[#allocation3 + $0x898] sm:$0xff]
        %v801 = vld [vmem:[#allocation3 + $0x8a0] sm:$0xff]
        %v802 = vld [vmem:[#allocation3 + $0x8a8] sm:$0xff]
        %v803 = vld [vmem:[#allocation3 + $0x8b0] sm:$0xff]
        %v804 = vld [vmem:[#allocation3 + $0x8b8] sm:$0xff]
        %v805 = vld [vmem:[#allocation3 + $0x8c0] sm:$0xff]
        %v806 = vld [vmem:[#allocation3 + $0x8c8] sm:$0xff]
        %v807 = vld [vmem:[#allocation3 + $0x8d0] sm:$0xff]
        %v808 = vld [vmem:[#allocation3 + $0x8d8] sm:$0xff]
        %v809 = vld [vmem:[#allocation3 + $0x8e0] sm:$0xff]
        %v810 = vld [vmem:[#allocation3 + $0x8e8] sm:$0xff]
        %v811 = vld [vmem:[#allocation3 + $0x8f0] sm:$0xff]
        %v812 = vld [vmem:[#allocation3 + $0x8f8] sm:$0xff]
        %v813 = vld [vmem:[#allocation3 + $0x900] sm:$0xff]
        %v814 = vld [vmem:[#allocation3 + $0x908] sm:$0xff]
        %v815 = vld [vmem:[#allocation3 + $0x910] sm:$0xff]
        %v816 = vld [vmem:[#allocation3 + $0x918] sm:$0xff]
        %v817 = vld [vmem:[#allocation3 + $0x920] sm:$0xff]
        %v818 = vld [vmem:[#allocation3 + $0x928] sm:$0xff]
        %v819 = vld [vmem:[#allocation3 + $0x930] sm:$0xff]
        %v820 = vld [vmem:[#allocation3 + $0x938] sm:$0xff]
        %v821 = vld [vmem:[#allocation3 + $0x940] sm:$0xff]
        %v822 = vld [vmem:[#allocation3 + $0x948] sm:$0xff]
        %v823 = vld [vmem:[#allocation3 + $0x950] sm:$0xff]
        %v824 = vld [vmem:[#allocation3 + $0x958] sm:$0xff]
        %v825 = vld [vmem:[#allocation3 + $0x960] sm:$0xff]
        %v826 = vld [vmem:[#allocation3 + $0x968] sm:$0xff]
        %v827 = vld [vmem:[#allocation3 + $0x970] sm:$0xff]
        %v828 = vld [vmem:[#allocation3 + $0x978] sm:$0xff]
        %v829 = vld [vmem:[#allocation3 + $0x980] sm:$0xff]
        %v830 = vld [vmem:[#allocation3 + $0x988] sm:$0xff]
        %v831 = vld [vmem:[#allocation3 + $0x990] sm:$0xff]
        %v832 = vld [vmem:[#allocation3 + $0x998] sm:$0xff]
        %v833 = vld [vmem:[#allocation3 + $0x9a0] sm:$0xff]
        %v834 = vld [vmem:[#allocation3 + $0x9a8] sm:$0xff]
        %v835 = vld [vmem:[#allocation3 + $0x9b0] sm:$0xff]
        %v836 = vld [vmem:[#allocation3 + $0x9b8] sm:$0xff]
        %v837 = vld [vmem:[#allocation3 + $0x9c0] sm:$0xff]
        %v838 = vld [vmem:[#allocation3 + $0x9c8] sm:$0xff]
        %v839 = vld [vmem:[#allocation3 + $0x9d0] sm:$0xff]
        %v840 = vld [vmem:[#allocation3 + $0x9d8] sm:$0xff]
        %v841 = vld [vmem:[#allocation3 + $0x9e0] sm:$0xff]
        %v842 = vld [vmem:[#allocation3 + $0x9e8] sm:$0xff]
        %v843 = vld [vmem:[#allocation3 + $0x9f0] sm:$0xff]
        %v844 = vld [vmem:[#allocation3 + $0x9f8] sm:$0xff]
        %v845 = vld [vmem:[#allocation3 + $0xa00] sm:$0xff]
        %v846 = vld [vmem:[#allocation3 + $0xa08] sm:$0xff]
        %v847 = vld [vmem:[#allocation3 + $0xa10] sm:$0xff]
        %v848 = vld [vmem:[#allocation3 + $0xa18] sm:$0xff]
        %v849 = vld [vmem:[#allocation3 + $0xa20] sm:$0xff]
        %v850 = vld [vmem:[#allocation3 + $0xa28] sm:$0xff]
        %v851 = vld [vmem:[#allocation3 + $0xa30] sm:$0xff]
        %v852 = vld [vmem:[#allocation3 + $0xa38] sm:$0xff]
        %v853 = vld [vmem:[#allocation3 + $0xa40] sm:$0xff]
        %v854 = vld [vmem:[#allocation3 + $0xa48] sm:$0xff]
        %v855 = vld [vmem:[#allocation3 + $0xa50] sm:$0xff]
        %v856 = vld [vmem:[#allocation3 + $0xa58] sm:$0xff]
        %v857 = vld [vmem:[#allocation3 + $0xa60] sm:$0xff]
        %v858 = vld [vmem:[#allocation3 + $0xa68] sm:$0xff]
        %v859 = vld [vmem:[#allocation3 + $0xa70] sm:$0xff]
        %v860 = vld [vmem:[#allocation3 + $0xa78] sm:$0xff]
        %v861 = vld [vmem:[#allocation3 + $0xa80] sm:$0xff]
        %v862 = vld [vmem:[#allocation3 + $0xa88] sm:$0xff]
        %v863 = vld [vmem:[#allocation3 + $0xa90] sm:$0xff]
        %v864 = vld [vmem:[#allocation3 + $0xa98] sm:$0xff]
        %v865 = vld [vmem:[#allocation3 + $0xaa0] sm:$0xff]
        %v866 = vld [vmem:[#allocation3 + $0xaa8] sm:$0xff]
        %v867 = vld [vmem:[#allocation3 + $0xab0] sm:$0xff]
        %v868 = vld [vmem:[#allocation3 + $0xab8] sm:$0xff]
        %v869 = vld [vmem:[#allocation3 + $0xac0] sm:$0xff]
        %v870 = vld [vmem:[#allocation3 + $0xac8] sm:$0xff]
        %v871 = vld [vmem:[#allocation3 + $0xad0] sm:$0xff]
        %v872 = vld [vmem:[#allocation3 + $0xad8] sm:$0xff]
        %v873 = vld [vmem:[#allocation3 + $0xae0] sm:$0xff]
        %v874 = vld [vmem:[#allocation3 + $0xae8] sm:$0xff]
        %v875 = vld [vmem:[#allocation3 + $0xaf0] sm:$0xff]
        %v876 = vld [vmem:[#allocation3 + $0xaf8] sm:$0xff]
        %v877 = vld [vmem:[#allocation3 + $0xb00] sm:$0xff]
        %v878 = vld [vmem:[#allocation3 + $0xb08] sm:$0xff]
        %v879 = vld [vmem:[#allocation3 + $0xb10] sm:$0xff]
        %v880 = vld [vmem:[#allocation3 + $0xb18] sm:$0xff]
        %v881 = vld [vmem:[#allocation3 + $0xb20] sm:$0xff]
        %v882 = vld [vmem:[#allocation3 + $0xb28] sm:$0xff]
        %v883 = vld [vmem:[#allocation3 + $0xb30] sm:$0xff]
        %v884 = vld [vmem:[#allocation3 + $0xb38] sm:$0xff]
        %v885 = vld [vmem:[#allocation3 + $0xb40] sm:$0xff]
        %v886 = vld [vmem:[#allocation3 + $0xb48] sm:$0xff]
        %v887 = vld [vmem:[#allocation3 + $0xb50] sm:$0xff]
        %v888 = vld [vmem:[#allocation3 + $0xb58] sm:$0xff]
        %v889 = vld [vmem:[#allocation3 + $0xb60] sm:$0xff]
        %v890 = vld [vmem:[#allocation3 + $0xb68] sm:$0xff]
        %v891 = vld [vmem:[#allocation3 + $0xb70] sm:$0xff]
        %v892 = vld [vmem:[#allocation3 + $0xb78] sm:$0xff]
        %v893 = vld [vmem:[#allocation3 + $0xb80] sm:$0xff]
        %v894 = vld [vmem:[#allocation3 + $0xb88] sm:$0xff]
        %v895 = vld [vmem:[#allocation3 + $0xb90] sm:$0xff]
        %v896 = vld [vmem:[#allocation3 + $0xb98] sm:$0xff]
        %v897 = vld [vmem:[#allocation3 + $0xba0] sm:$0xff]
        %v898 = vld [vmem:[#allocation3 + $0xba8] sm:$0xff]
        %v899 = vld [vmem:[#allocation3 + $0xbb0] sm:$0xff]
        %v900 = vld [vmem:[#allocation3 + $0xbb8] sm:$0xff]
        %v901 = vld [vmem:[#allocation3 + $0xbc0] sm:$0xff]
        %v902 = vld [vmem:[#allocation3 + $0xbc8] sm:$0xff]
        %v903 = vld [vmem:[#allocation3 + $0xbd0] sm:$0xff]
        %v904 = vld [vmem:[#allocation3 + $0xbd8] sm:$0xff]
        %v905 = vld [vmem:[#allocation3 + $0xbe0] sm:$0xff]
        %v906 = vld [vmem:[#allocation3 + $0xbe8] sm:$0xff]
        %v907 = vld [vmem:[#allocation3 + $0xbf0] sm:$0xff]
        %v908 = vld [vmem:[#allocation3 + $0xbf8] sm:$0xff]
        %v909 = vld [vmem:[#allocation3 + $0xc00] sm:$0xff]
        %v910 = vld [vmem:[#allocation3 + $0xc08] sm:$0xff]
        %v911 = vld [vmem:[#allocation3 + $0xc10] sm:$0xff]
        %v912 = vld [vmem:[#allocation3 + $0xc18] sm:$0xff]
        %v913 = vld [vmem:[#allocation3 + $0xc20] sm:$0xff]
        %v914 = vld [vmem:[#allocation3 + $0xc28] sm:$0xff]
        %v915 = vld [vmem:[#allocation3 + $0xc30] sm:$0xff]
        %v916 = vld [vmem:[#allocation3 + $0xc38] sm:$0xff]
        %v917 = vld [vmem:[#allocation3 + $0xc40] sm:$0xff]
        %v918 = vld [vmem:[#allocation3 + $0xc48] sm:$0xff]
        %v919 = vld [vmem:[#allocation3 + $0xc50] sm:$0xff]
        %v920 = vld [vmem:[#allocation3 + $0xc58] sm:$0xff]
        %v921 = vld [vmem:[#allocation3 + $0xc60] sm:$0xff]
        %v922 = vld [vmem:[#allocation3 + $0xc68] sm:$0xff]
        %v923 = vld [vmem:[#allocation3 + $0xc70] sm:$0xff]
        %v924 = vld [vmem:[#allocation3 + $0xc78] sm:$0xff]
        %v925 = vld [vmem:[#allocation3 + $0xc80] sm:$0xff]
        %v926 = vld [vmem:[#allocation3 + $0xc88] sm:$0xff]
        %v927 = vld [vmem:[#allocation3 + $0xc90] sm:$0xff]
        %v928 = vld [vmem:[#allocation3 + $0xc98] sm:$0xff]
        %v929 = vld [vmem:[#allocation3 + $0xca0] sm:$0xff]
        %v930 = vld [vmem:[#allocation3 + $0xca8] sm:$0xff]
        %v931 = vld [vmem:[#allocation3 + $0xcb0] sm:$0xff]
        %v932 = vld [vmem:[#allocation3 + $0xcb8] sm:$0xff]
        %v933 = vld [vmem:[#allocation3 + $0xcc0] sm:$0xff]
        %v934 = vld [vmem:[#allocation3 + $0xcc8] sm:$0xff]
        %v935 = vld [vmem:[#allocation3 + $0xcd0] sm:$0xff]
        %v936 = vld [vmem:[#allocation3 + $0xcd8] sm:$0xff]
        %v937 = vld [vmem:[#allocation3 + $0xce0] sm:$0xff]
        %v938 = vld [vmem:[#allocation3 + $0xce8] sm:$0xff]
        %v939 = vld [vmem:[#allocation3 + $0xcf0] sm:$0xff]
        %v940 = vld [vmem:[#allocation3 + $0xcf8] sm:$0xff]
        %v941 = vld [vmem:[#allocation3 + $0xd00] sm:$0xff]
        %v942 = vld [vmem:[#allocation3 + $0xd08] sm:$0xff]
        %v943 = vld [vmem:[#allocation3 + $0xd10] sm:$0xff]
        %v944 = vld [vmem:[#allocation3 + $0xd18] sm:$0xff]
        %v945 = vld [vmem:[#allocation3 + $0xd20] sm:$0xff]
        %v946 = vld [vmem:[#allocation3 + $0xd28] sm:$0xff]
        %v947 = vld [vmem:[#allocation3 + $0xd30] sm:$0xff]
        %v948 = vld [vmem:[#allocation3 + $0xd38] sm:$0xff]
        %v949 = vld [vmem:[#allocation3 + $0xd40] sm:$0xff]
        %v950 = vld [vmem:[#allocation3 + $0xd48] sm:$0xff]
        %v951 = vld [vmem:[#allocation3 + $0xd50] sm:$0xff]
        %v952 = vld [vmem:[#allocation3 + $0xd58] sm:$0xff]
        %v953 = vld [vmem:[#allocation3 + $0xd60] sm:$0xff]
        %v954 = vld [vmem:[#allocation3 + $0xd68] sm:$0xff]
        %v955 = vld [vmem:[#allocation3 + $0xd70] sm:$0xff]
        %v956 = vld [vmem:[#allocation3 + $0xd78] sm:$0xff]
        %v957 = vld [vmem:[#allocation3 + $0xd80] sm:$0xff]
        %v958 = vld [vmem:[#allocation3 + $0xd88] sm:$0xff]
        %v959 = vld [vmem:[#allocation3 + $0xd90] sm:$0xff]
        %v960 = vld [vmem:[#allocation3 + $0xd98] sm:$0xff]
        %v961 = vld [vmem:[#allocation3 + $0xda0] sm:$0xff]
        %v962 = vld [vmem:[#allocation3 + $0xda8] sm:$0xff]
        %v963 = vld [vmem:[#allocation3 + $0xdb0] sm:$0xff]
        %v964 = vld [vmem:[#allocation3 + $0xdb8] sm:$0xff]
        %v965 = vld [vmem:[#allocation3 + $0xdc0] sm:$0xff]
        %v966 = vld [vmem:[#allocation3 + $0xdc8] sm:$0xff]
        %v967 = vld [vmem:[#allocation3 + $0xdd0] sm:$0xff]
        %v968 = vld [vmem:[#allocation3 + $0xdd8] sm:$0xff]
        %v969 = vld [vmem:[#allocation3 + $0xde0] sm:$0xff]
        %v970 = vld [vmem:[#allocation3 + $0xde8] sm:$0xff]
        %v971 = vld [vmem:[#allocation3 + $0xdf0] sm:$0xff]
        %v972 = vld [vmem:[#allocation3 + $0xdf8] sm:$0xff]
        %v973 = vld [vmem:[#allocation3 + $0xe00] sm:$0xff]
        %v974 = vld [vmem:[#allocation3 + $0xe08] sm:$0xff]
        %v975 = vld [vmem:[#allocation3 + $0xe10] sm:$0xff]
        %v976 = vld [vmem:[#allocation3 + $0xe18] sm:$0xff]
        %v977 = vld [vmem:[#allocation3 + $0xe20] sm:$0xff]
        %v978 = vld [vmem:[#allocation3 + $0xe28] sm:$0xff]
        %v979 = vld [vmem:[#allocation3 + $0xe30] sm:$0xff]
        %v980 = vld [vmem:[#allocation3 + $0xe38] sm:$0xff]
        %v981 = vld [vmem:[#allocation3 + $0xe40] sm:$0xff]
        %v982 = vld [vmem:[#allocation3 + $0xe48] sm:$0xff]
        %v983 = vld [vmem:[#allocation3 + $0xe50] sm:$0xff]
        %v984 = vld [vmem:[#allocation3 + $0xe58] sm:$0xff]
        %v985 = vld [vmem:[#allocation3 + $0xe60] sm:$0xff]
        %v986 = vld [vmem:[#allocation3 + $0xe68] sm:$0xff]
        %v987 = vld [vmem:[#allocation3 + $0xe70] sm:$0xff]
        %v988 = vld [vmem:[#allocation3 + $0xe78] sm:$0xff]
        %v989 = vld [vmem:[#allocation3 + $0xe80] sm:$0xff]
        %v990 = vld [vmem:[#allocation3 + $0xe88] sm:$0xff]
        %v991 = vld [vmem:[#allocation3 + $0xe90] sm:$0xff]
        %v992 = vld [vmem:[#allocation3 + $0xe98] sm:$0xff]
        %v993 = vld [vmem:[#allocation3 + $0xea0] sm:$0xff]
        %v994 = vld [vmem:[#allocation3 + $0xea8] sm:$0xff]
        %v995 = vld [vmem:[#allocation3 + $0xeb0] sm:$0xff]
        %v996 = vld [vmem:[#allocation3 + $0xeb8] sm:$0xff]
        %v997 = vld [vmem:[#allocation3 + $0xec0] sm:$0xff]
        %v998 = vld [vmem:[#allocation3 + $0xec8] sm:$0xff]
        %v999 = vld [vmem:[#allocation3 + $0xed0] sm:$0xff]
        %v1000 = vld [vmem:[#allocation3 + $0xed8] sm:$0xff]
        %v1001 = vld [vmem:[#allocation3 + $0xee0] sm:$0xff]
        %v1002 = vld [vmem:[#allocation3 + $0xee8] sm:$0xff]
        %v1003 = vld [vmem:[#allocation3 + $0xef0] sm:$0xff]
        %v1004 = vld [vmem:[#allocation3 + $0xef8] sm:$0xff]
        %v1005 = vld [vmem:[#allocation3 + $0xf00] sm:$0xff]
        %v1006 = vld [vmem:[#allocation3 + $0xf08] sm:$0xff]
        %v1007 = vld [vmem:[#allocation3 + $0xf10] sm:$0xff]
        %v1008 = vld [vmem:[#allocation3 + $0xf18] sm:$0xff]
        %v1009 = vld [vmem:[#allocation3 + $0xf20] sm:$0xff]
        %v1010 = vld [vmem:[#allocation3 + $0xf28] sm:$0xff]
        %v1011 = vld [vmem:[#allocation3 + $0xf30] sm:$0xff]
        %v1012 = vld [vmem:[#allocation3 + $0xf38] sm:$0xff]
        %v1013 = vld [vmem:[#allocation3 + $0xf40] sm:$0xff]
        %v1014 = vld [vmem:[#allocation3 + $0xf48] sm:$0xff]
        %v1015 = vld [vmem:[#allocation3 + $0xf50] sm:$0xff]
        %v1016 = vld [vmem:[#allocation3 + $0xf58] sm:$0xff]
        %v1017 = vld [vmem:[#allocation3 + $0xf60] sm:$0xff]
        %v1018 = vld [vmem:[#allocation3 + $0xf68] sm:$0xff]
        %v1019 = vld [vmem:[#allocation3 + $0xf70] sm:$0xff]
        %v1020 = vld [vmem:[#allocation3 + $0xf78] sm:$0xff]
        %v1021 = vld [vmem:[#allocation3 + $0xf80] sm:$0xff]
        %v1022 = vld [vmem:[#allocation3 + $0xf88] sm:$0xff]
        %v1023 = vld [vmem:[#allocation3 + $0xf90] sm:$0xff]
        %v1024 = vld [vmem:[#allocation3 + $0xf98] sm:$0xff]
        %v1025 = vld [vmem:[#allocation3 + $0xfa0] sm:$0xff]
        %v1026 = vld [vmem:[#allocation3 + $0xfa8] sm:$0xff]
        %v1027 = vld [vmem:[#allocation3 + $0xfb0] sm:$0xff]
        %v1028 = vld [vmem:[#allocation3 + $0xfb8] sm:$0xff]
        %v1029 = vld [vmem:[#allocation3 + $0xfc0] sm:$0xff]
        %v1030 = vld [vmem:[#allocation3 + $0xfc8] sm:$0xff]
        %v1031 = vld [vmem:[#allocation3 + $0xfd0] sm:$0xff]
        %v1032 = vld [vmem:[#allocation3 + $0xfd8] sm:$0xff]
        %v1033 = vld [vmem:[#allocation3 + $0xfe0] sm:$0xff]
        %v1034 = vld [vmem:[#allocation3 + $0xfe8] sm:$0xff]
        %v1035 = vld [vmem:[#allocation3 + $0xff0] sm:$0xff]
        %v1036 = vld [vmem:[#allocation3 + $0xff8] sm:$0xff]
        %v1037 = vld [vmem:[#allocation5] ss:$4 sm:$0xff]
        %v1039 = vlaneseq
        %v1040 = vshrl.u32 %v1039, 7
        %v1041 = vsub.s32 0, %v1040
        %v1042 = vrot.slane %v1037, %v1041
        %v1043 = vlaneseq
        %v1044 = vshrl.u32 %v1043, 7
        %v1045 = vsub.s32 1, %v1044
        %v1046 = vrot.slane %v1037, %v1045
        %v1047 = vlaneseq
        %v1048 = vshrl.u32 %v1047, 7
        %v1049 = vsub.s32 2, %v1048
        %v1050 = vrot.slane %v1037, %v1049
        %v1051 = vlaneseq
        %v1052 = vshrl.u32 %v1051, 7
        %v1053 = vsub.s32 3, %v1052
        %v1054 = vrot.slane %v1037, %v1053
        %v1055 = vlaneseq
        %v1056 = vshrl.u32 %v1055, 7
        %v1057 = vsub.s32 4, %v1056
        %v1058 = vrot.slane %v1037, %v1057
        %v1059 = vlaneseq
        %v1060 = vshrl.u32 %v1059, 7
        %v1061 = vsub.s32 5, %v1060
        %v1062 = vrot.slane %v1037, %v1061
        %v1063 = vlaneseq
        %v1064 = vshrl.u32 %v1063, 7
        %v1065 = vsub.s32 6, %v1064
        %v1066 = vrot.slane %v1037, %v1065
        %v1067 = vlaneseq
        %v1068 = vshrl.u32 %v1067, 7
        %v1069 = vsub.s32 7, %v1068
        %v1070 = vrot.slane %v1037, %v1069
        %v1087 = vunpack.c.l.b16 %v517
        %v1088 = vunpack.c.h.b16 %v517
        %v1089 = vunpack.c.l.b16 %v518
        %v1090 = vunpack.c.h.b16 %v518
        %v1091 = vunpack.c.l.b16 %v519
        %v1092 = vunpack.c.h.b16 %v519
        %v1093 = vunpack.c.l.b16 %v520
        %v1094 = vunpack.c.h.b16 %v520
        %v1095 = vunpack.c.l.b16 %v521
        %v1096 = vunpack.c.h.b16 %v521
        %v1097 = vunpack.c.l.b16 %v522
        %v1098 = vunpack.c.h.b16 %v522
        %v1099 = vunpack.c.l.b16 %v523
        %v1100 = vunpack.c.h.b16 %v523
        %v1101 = vunpack.c.l.b16 %v524
        %v1102 = vunpack.c.h.b16 %v524
        %v1103 = vpack.c.b16 %v1095, %v1087
        %v1104 = vpack.c.b16 %v1096, %v1088
        %v1105 = vpack.c.b16 %v1097, %v1089
        %v1106 = vpack.c.b16 %v1098, %v1090
        %v1107 = vpack.c.b16 %v1099, %v1091
        %v1108 = vpack.c.b16 %v1100, %v1092
        %v1109 = vpack.c.b16 %v1101, %v1093
        %v1110 = vpack.c.b16 %v1102, %v1094
        %v1631 = vunpack.c.l.b16 %v525
        %v1632 = vunpack.c.h.b16 %v525
        %v1633 = vunpack.c.l.b16 %v526
        %v1634 = vunpack.c.h.b16 %v526
        %v1635 = vunpack.c.l.b16 %v527
        %v1636 = vunpack.c.h.b16 %v527
        %v1637 = vunpack.c.l.b16 %v528
        %v1638 = vunpack.c.h.b16 %v528
        %v1639 = vunpack.c.l.b16 %v529
        %v1640 = vunpack.c.h.b16 %v529
        %v1641 = vunpack.c.l.b16 %v530
        %v1642 = vunpack.c.h.b16 %v530
        %v1643 = vunpack.c.l.b16 %v531
        %v1644 = vunpack.c.h.b16 %v531
        %v1645 = vunpack.c.l.b16 %v532
        %v1646 = vunpack.c.h.b16 %v532
        %v1647 = vunpack.c.l.b16 %v533
        %v1648 = vunpack.c.h.b16 %v533
        %v1649 = vunpack.c.l.b16 %v534
        %v1650 = vunpack.c.h.b16 %v534
        %v1651 = vunpack.c.l.b16 %v535
        %v1652 = vunpack.c.h.b16 %v535
        %v1653 = vunpack.c.l.b16 %v536
        %v1654 = vunpack.c.h.b16 %v536
        %v1655 = vunpack.c.l.b16 %v537
        %v1656 = vunpack.c.h.b16 %v537
        %v1657 = vunpack.c.l.b16 %v538
        %v1658 = vunpack.c.h.b16 %v538
        %v1659 = vunpack.c.l.b16 %v539
        %v1660 = vunpack.c.h.b16 %v539
        %v1661 = vunpack.c.l.b16 %v540
        %v1662 = vunpack.c.h.b16 %v540
        %v1663 = vunpack.c.l.b16 %v541
        %v1664 = vunpack.c.h.b16 %v541
        %v1665 = vunpack.c.l.b16 %v542
        %v1666 = vunpack.c.h.b16 %v542
        %v1667 = vunpack.c.l.b16 %v543
        %v1668 = vunpack.c.h.b16 %v543
        %v1669 = vunpack.c.l.b16 %v544
        %v1670 = vunpack.c.h.b16 %v544
        %v1671 = vunpack.c.l.b16 %v545
        %v1672 = vunpack.c.h.b16 %v545
        %v1673 = vunpack.c.l.b16 %v546
        %v1674 = vunpack.c.h.b16 %v546
        %v1675 = vunpack.c.l.b16 %v547
        %v1676 = vunpack.c.h.b16 %v547
        %v1677 = vunpack.c.l.b16 %v548
        %v1678 = vunpack.c.h.b16 %v548
        %v1679 = vunpack.c.l.b16 %v549
        %v1680 = vunpack.c.h.b16 %v549
        %v1681 = vunpack.c.l.b16 %v550
        %v1682 = vunpack.c.h.b16 %v550
        %v1683 = vunpack.c.l.b16 %v551
        %v1684 = vunpack.c.h.b16 %v551
        %v1685 = vunpack.c.l.b16 %v552
        %v1686 = vunpack.c.h.b16 %v552
        %v1687 = vunpack.c.l.b16 %v553
        %v1688 = vunpack.c.h.b16 %v553
        %v1689 = vunpack.c.l.b16 %v554
        %v1690 = vunpack.c.h.b16 %v554
        %v1691 = vunpack.c.l.b16 %v555
        %v1692 = vunpack.c.h.b16 %v555
        %v1693 = vunpack.c.l.b16 %v556
        %v1694 = vunpack.c.h.b16 %v556
        %v1695 = vunpack.c.l.b16 %v557
        %v1696 = vunpack.c.h.b16 %v557
        %v1697 = vunpack.c.l.b16 %v558
        %v1698 = vunpack.c.h.b16 %v558
        %v1699 = vunpack.c.l.b16 %v559
        %v1700 = vunpack.c.h.b16 %v559
        %v1701 = vunpack.c.l.b16 %v560
        %v1702 = vunpack.c.h.b16 %v560
        %v1703 = vunpack.c.l.b16 %v561
        %v1704 = vunpack.c.h.b16 %v561
        %v1705 = vunpack.c.l.b16 %v562
        %v1706 = vunpack.c.h.b16 %v562
        %v1707 = vunpack.c.l.b16 %v563
        %v1708 = vunpack.c.h.b16 %v563
        %v1709 = vunpack.c.l.b16 %v564
        %v1710 = vunpack.c.h.b16 %v564
        %v1711 = vunpack.c.l.b16 %v565
        %v1712 = vunpack.c.h.b16 %v565
        %v1713 = vunpack.c.l.b16 %v566
        %v1714 = vunpack.c.h.b16 %v566
        %v1715 = vunpack.c.l.b16 %v567
        %v1716 = vunpack.c.h.b16 %v567
        %v1717 = vunpack.c.l.b16 %v568
        %v1718 = vunpack.c.h.b16 %v568
        %v1719 = vunpack.c.l.b16 %v569
        %v1720 = vunpack.c.h.b16 %v569
        %v1721 = vunpack.c.l.b16 %v570
        %v1722 = vunpack.c.h.b16 %v570
        %v1723 = vunpack.c.l.b16 %v571
        %v1724 = vunpack.c.h.b16 %v571
        %v1725 = vunpack.c.l.b16 %v572
        %v1726 = vunpack.c.h.b16 %v572
        %v1727 = vunpack.c.l.b16 %v573
        %v1728 = vunpack.c.h.b16 %v573
        %v1729 = vunpack.c.l.b16 %v574
        %v1730 = vunpack.c.h.b16 %v574
        %v1731 = vunpack.c.l.b16 %v575
        %v1732 = vunpack.c.h.b16 %v575
        %v1733 = vunpack.c.l.b16 %v576
        %v1734 = vunpack.c.h.b16 %v576
        %v1735 = vunpack.c.l.b16 %v577
        %v1736 = vunpack.c.h.b16 %v577
        %v1737 = vunpack.c.l.b16 %v578
        %v1738 = vunpack.c.h.b16 %v578
        %v1739 = vunpack.c.l.b16 %v579
        %v1740 = vunpack.c.h.b16 %v579
        %v1741 = vunpack.c.l.b16 %v580
        %v1742 = vunpack.c.h.b16 %v580
        %v1743 = vunpack.c.l.b16 %v581
        %v1744 = vunpack.c.h.b16 %v581
        %v1745 = vunpack.c.l.b16 %v582
        %v1746 = vunpack.c.h.b16 %v582
        %v1747 = vunpack.c.l.b16 %v583
        %v1748 = vunpack.c.h.b16 %v583
        %v1749 = vunpack.c.l.b16 %v584
        %v1750 = vunpack.c.h.b16 %v584
        %v1751 = vunpack.c.l.b16 %v585
        %v1752 = vunpack.c.h.b16 %v585
        %v1753 = vunpack.c.l.b16 %v586
        %v1754 = vunpack.c.h.b16 %v586
        %v1755 = vunpack.c.l.b16 %v587
        %v1756 = vunpack.c.h.b16 %v587
        %v1757 = vunpack.c.l.b16 %v588
        %v1758 = vunpack.c.h.b16 %v588
        %v1759 = vunpack.c.l.b16 %v589
        %v1760 = vunpack.c.h.b16 %v589
        %v1761 = vunpack.c.l.b16 %v590
        %v1762 = vunpack.c.h.b16 %v590
        %v1763 = vunpack.c.l.b16 %v591
        %v1764 = vunpack.c.h.b16 %v591
        %v1765 = vunpack.c.l.b16 %v592
        %v1766 = vunpack.c.h.b16 %v592
        %v1767 = vunpack.c.l.b16 %v593
        %v1768 = vunpack.c.h.b16 %v593
        %v1769 = vunpack.c.l.b16 %v594
        %v1770 = vunpack.c.h.b16 %v594
        %v1771 = vunpack.c.l.b16 %v595
        %v1772 = vunpack.c.h.b16 %v595
        %v1773 = vunpack.c.l.b16 %v596
        %v1774 = vunpack.c.h.b16 %v596
        %v1775 = vunpack.c.l.b16 %v597
        %v1776 = vunpack.c.h.b16 %v597
        %v1777 = vunpack.c.l.b16 %v598
        %v1778 = vunpack.c.h.b16 %v598
        %v1779 = vunpack.c.l.b16 %v599
        %v1780 = vunpack.c.h.b16 %v599
        %v1781 = vunpack.c.l.b16 %v600
        %v1782 = vunpack.c.h.b16 %v600
        %v1783 = vunpack.c.l.b16 %v601
        %v1784 = vunpack.c.h.b16 %v601
        %v1785 = vunpack.c.l.b16 %v602
        %v1786 = vunpack.c.h.b16 %v602
        %v1787 = vunpack.c.l.b16 %v603
        %v1788 = vunpack.c.h.b16 %v603
        %v1789 = vunpack.c.l.b16 %v604
        %v1790 = vunpack.c.h.b16 %v604
        %v1791 = vunpack.c.l.b16 %v605
        %v1792 = vunpack.c.h.b16 %v605
        %v1793 = vunpack.c.l.b16 %v606
        %v1794 = vunpack.c.h.b16 %v606
        %v1795 = vunpack.c.l.b16 %v607
        %v1796 = vunpack.c.h.b16 %v607
        %v1797 = vunpack.c.l.b16 %v608
        %v1798 = vunpack.c.h.b16 %v608
        %v1799 = vunpack.c.l.b16 %v609
        %v1800 = vunpack.c.h.b16 %v609
        %v1801 = vunpack.c.l.b16 %v610
        %v1802 = vunpack.c.h.b16 %v610
        %v1803 = vunpack.c.l.b16 %v611
        %v1804 = vunpack.c.h.b16 %v611
        %v1805 = vunpack.c.l.b16 %v612
        %v1806 = vunpack.c.h.b16 %v612
        %v1807 = vunpack.c.l.b16 %v613
        %v1808 = vunpack.c.h.b16 %v613
        %v1809 = vunpack.c.l.b16 %v614
        %v1810 = vunpack.c.h.b16 %v614
        %v1811 = vunpack.c.l.b16 %v615
        %v1812 = vunpack.c.h.b16 %v615
        %v1813 = vunpack.c.l.b16 %v616
        %v1814 = vunpack.c.h.b16 %v616
        %v1815 = vunpack.c.l.b16 %v617
        %v1816 = vunpack.c.h.b16 %v617
        %v1817 = vunpack.c.l.b16 %v618
        %v1818 = vunpack.c.h.b16 %v618
        %v1819 = vunpack.c.l.b16 %v619
        %v1820 = vunpack.c.h.b16 %v619
        %v1821 = vunpack.c.l.b16 %v620
        %v1822 = vunpack.c.h.b16 %v620
        %v1823 = vunpack.c.l.b16 %v621
        %v1824 = vunpack.c.h.b16 %v621
        %v1825 = vunpack.c.l.b16 %v622
        %v1826 = vunpack.c.h.b16 %v622
        %v1827 = vunpack.c.l.b16 %v623
        %v1828 = vunpack.c.h.b16 %v623
        %v1829 = vunpack.c.l.b16 %v624
        %v1830 = vunpack.c.h.b16 %v624
        %v1831 = vunpack.c.l.b16 %v625
        %v1832 = vunpack.c.h.b16 %v625
        %v1833 = vunpack.c.l.b16 %v626
        %v1834 = vunpack.c.h.b16 %v626
        %v1835 = vunpack.c.l.b16 %v627
        %v1836 = vunpack.c.h.b16 %v627
        %v1837 = vunpack.c.l.b16 %v628
        %v1838 = vunpack.c.h.b16 %v628
        %v1839 = vunpack.c.l.b16 %v629
        %v1840 = vunpack.c.h.b16 %v629
        %v1841 = vunpack.c.l.b16 %v630
        %v1842 = vunpack.c.h.b16 %v630
        %v1843 = vunpack.c.l.b16 %v631
        %v1844 = vunpack.c.h.b16 %v631
        %v1845 = vunpack.c.l.b16 %v632
        %v1846 = vunpack.c.h.b16 %v632
        %v1847 = vunpack.c.l.b16 %v633
        %v1848 = vunpack.c.h.b16 %v633
        %v1849 = vunpack.c.l.b16 %v634
        %v1850 = vunpack.c.h.b16 %v634
        %v1851 = vunpack.c.l.b16 %v635
        %v1852 = vunpack.c.h.b16 %v635
        %v1853 = vunpack.c.l.b16 %v636
        %v1854 = vunpack.c.h.b16 %v636
        %v1855 = vunpack.c.l.b16 %v637
        %v1856 = vunpack.c.h.b16 %v637
        %v1857 = vunpack.c.l.b16 %v638
        %v1858 = vunpack.c.h.b16 %v638
        %v1859 = vunpack.c.l.b16 %v639
        %v1860 = vunpack.c.h.b16 %v639
        %v1861 = vunpack.c.l.b16 %v640
        %v1862 = vunpack.c.h.b16 %v640
        %v1863 = vunpack.c.l.b16 %v641
        %v1864 = vunpack.c.h.b16 %v641
        %v1865 = vunpack.c.l.b16 %v642
        %v1866 = vunpack.c.h.b16 %v642
        %v1867 = vunpack.c.l.b16 %v643
        %v1868 = vunpack.c.h.b16 %v643
        %v1869 = vunpack.c.l.b16 %v644
        %v1870 = vunpack.c.h.b16 %v644
        %v1871 = vunpack.c.l.b16 %v645
        %v1872 = vunpack.c.h.b16 %v645
        %v1873 = vunpack.c.l.b16 %v646
        %v1874 = vunpack.c.h.b16 %v646
        %v1875 = vunpack.c.l.b16 %v647
        %v1876 = vunpack.c.h.b16 %v647
        %v1877 = vunpack.c.l.b16 %v648
        %v1878 = vunpack.c.h.b16 %v648
        %v1879 = vunpack.c.l.b16 %v649
        %v1880 = vunpack.c.h.b16 %v649
        %v1881 = vunpack.c.l.b16 %v650
        %v1882 = vunpack.c.h.b16 %v650
        %v1883 = vunpack.c.l.b16 %v651
        %v1884 = vunpack.c.h.b16 %v651
        %v1885 = vunpack.c.l.b16 %v652
        %v1886 = vunpack.c.h.b16 %v652
        %v1887 = vunpack.c.l.b16 %v653
        %v1888 = vunpack.c.h.b16 %v653
        %v1889 = vunpack.c.l.b16 %v654
        %v1890 = vunpack.c.h.b16 %v654
        %v1891 = vunpack.c.l.b16 %v655
        %v1892 = vunpack.c.h.b16 %v655
        %v1893 = vunpack.c.l.b16 %v656
        %v1894 = vunpack.c.h.b16 %v656
        %v1895 = vunpack.c.l.b16 %v657
        %v1896 = vunpack.c.h.b16 %v657
        %v1897 = vunpack.c.l.b16 %v658
        %v1898 = vunpack.c.h.b16 %v658
        %v1899 = vunpack.c.l.b16 %v659
        %v1900 = vunpack.c.h.b16 %v659
        %v1901 = vunpack.c.l.b16 %v660
        %v1902 = vunpack.c.h.b16 %v660
        %v1903 = vunpack.c.l.b16 %v661
        %v1904 = vunpack.c.h.b16 %v661
        %v1905 = vunpack.c.l.b16 %v662
        %v1906 = vunpack.c.h.b16 %v662
        %v1907 = vunpack.c.l.b16 %v663
        %v1908 = vunpack.c.h.b16 %v663
        %v1909 = vunpack.c.l.b16 %v664
        %v1910 = vunpack.c.h.b16 %v664
        %v1911 = vunpack.c.l.b16 %v665
        %v1912 = vunpack.c.h.b16 %v665
        %v1913 = vunpack.c.l.b16 %v666
        %v1914 = vunpack.c.h.b16 %v666
        %v1915 = vunpack.c.l.b16 %v667
        %v1916 = vunpack.c.h.b16 %v667
        %v1917 = vunpack.c.l.b16 %v668
        %v1918 = vunpack.c.h.b16 %v668
        %v1919 = vunpack.c.l.b16 %v669
        %v1920 = vunpack.c.h.b16 %v669
        %v1921 = vunpack.c.l.b16 %v670
        %v1922 = vunpack.c.h.b16 %v670
        %v1923 = vunpack.c.l.b16 %v671
        %v1924 = vunpack.c.h.b16 %v671
        %v1925 = vunpack.c.l.b16 %v672
        %v1926 = vunpack.c.h.b16 %v672
        %v1927 = vunpack.c.l.b16 %v673
        %v1928 = vunpack.c.h.b16 %v673
        %v1929 = vunpack.c.l.b16 %v674
        %v1930 = vunpack.c.h.b16 %v674
        %v1931 = vunpack.c.l.b16 %v675
        %v1932 = vunpack.c.h.b16 %v675
        %v1933 = vunpack.c.l.b16 %v676
        %v1934 = vunpack.c.h.b16 %v676
        %v1935 = vunpack.c.l.b16 %v677
        %v1936 = vunpack.c.h.b16 %v677
        %v1937 = vunpack.c.l.b16 %v678
        %v1938 = vunpack.c.h.b16 %v678
        %v1939 = vunpack.c.l.b16 %v679
        %v1940 = vunpack.c.h.b16 %v679
        %v1941 = vunpack.c.l.b16 %v680
        %v1942 = vunpack.c.h.b16 %v680
        %v1943 = vunpack.c.l.b16 %v681
        %v1944 = vunpack.c.h.b16 %v681
        %v1945 = vunpack.c.l.b16 %v682
        %v1946 = vunpack.c.h.b16 %v682
        %v1947 = vunpack.c.l.b16 %v683
        %v1948 = vunpack.c.h.b16 %v683
        %v1949 = vunpack.c.l.b16 %v684
        %v1950 = vunpack.c.h.b16 %v684
        %v1951 = vunpack.c.l.b16 %v685
        %v1952 = vunpack.c.h.b16 %v685
        %v1953 = vunpack.c.l.b16 %v686
        %v1954 = vunpack.c.h.b16 %v686
        %v1955 = vunpack.c.l.b16 %v687
        %v1956 = vunpack.c.h.b16 %v687
        %v1957 = vunpack.c.l.b16 %v688
        %v1958 = vunpack.c.h.b16 %v688
        %v1959 = vunpack.c.l.b16 %v689
        %v1960 = vunpack.c.h.b16 %v689
        %v1961 = vunpack.c.l.b16 %v690
        %v1962 = vunpack.c.h.b16 %v690
        %v1963 = vunpack.c.l.b16 %v691
        %v1964 = vunpack.c.h.b16 %v691
        %v1965 = vunpack.c.l.b16 %v692
        %v1966 = vunpack.c.h.b16 %v692
        %v1967 = vunpack.c.l.b16 %v693
        %v1968 = vunpack.c.h.b16 %v693
        %v1969 = vunpack.c.l.b16 %v694
        %v1970 = vunpack.c.h.b16 %v694
        %v1971 = vunpack.c.l.b16 %v695
        %v1972 = vunpack.c.h.b16 %v695
        %v1973 = vunpack.c.l.b16 %v696
        %v1974 = vunpack.c.h.b16 %v696
        %v1975 = vunpack.c.l.b16 %v697
        %v1976 = vunpack.c.h.b16 %v697
        %v1977 = vunpack.c.l.b16 %v698
        %v1978 = vunpack.c.h.b16 %v698
        %v1979 = vunpack.c.l.b16 %v699
        %v1980 = vunpack.c.h.b16 %v699
        %v1981 = vunpack.c.l.b16 %v700
        %v1982 = vunpack.c.h.b16 %v700
        %v1983 = vunpack.c.l.b16 %v701
        %v1984 = vunpack.c.h.b16 %v701
        %v1985 = vunpack.c.l.b16 %v702
        %v1986 = vunpack.c.h.b16 %v702
        %v1987 = vunpack.c.l.b16 %v703
        %v1988 = vunpack.c.h.b16 %v703
        %v1989 = vunpack.c.l.b16 %v704
        %v1990 = vunpack.c.h.b16 %v704
        %v1991 = vunpack.c.l.b16 %v705
        %v1992 = vunpack.c.h.b16 %v705
        %v1993 = vunpack.c.l.b16 %v706
        %v1994 = vunpack.c.h.b16 %v706
        %v1995 = vunpack.c.l.b16 %v707
        %v1996 = vunpack.c.h.b16 %v707
        %v1997 = vunpack.c.l.b16 %v708
        %v1998 = vunpack.c.h.b16 %v708
        %v1999 = vunpack.c.l.b16 %v709
        %v2000 = vunpack.c.h.b16 %v709
        %v2001 = vunpack.c.l.b16 %v710
        %v2002 = vunpack.c.h.b16 %v710
        %v2003 = vunpack.c.l.b16 %v711
        %v2004 = vunpack.c.h.b16 %v711
        %v2005 = vunpack.c.l.b16 %v712
        %v2006 = vunpack.c.h.b16 %v712
        %v2007 = vunpack.c.l.b16 %v713
        %v2008 = vunpack.c.h.b16 %v713
        %v2009 = vunpack.c.l.b16 %v714
        %v2010 = vunpack.c.h.b16 %v714
        %v2011 = vunpack.c.l.b16 %v715
        %v2012 = vunpack.c.h.b16 %v715
        %v2013 = vunpack.c.l.b16 %v716
        %v2014 = vunpack.c.h.b16 %v716
        %v2015 = vunpack.c.l.b16 %v717
        %v2016 = vunpack.c.h.b16 %v717
        %v2017 = vunpack.c.l.b16 %v718
        %v2018 = vunpack.c.h.b16 %v718
        %v2019 = vunpack.c.l.b16 %v719
        %v2020 = vunpack.c.h.b16 %v719
        %v2021 = vunpack.c.l.b16 %v720
        %v2022 = vunpack.c.h.b16 %v720
        %v2023 = vunpack.c.l.b16 %v721
        %v2024 = vunpack.c.h.b16 %v721
        %v2025 = vunpack.c.l.b16 %v722
        %v2026 = vunpack.c.h.b16 %v722
        %v2027 = vunpack.c.l.b16 %v723
        %v2028 = vunpack.c.h.b16 %v723
        %v2029 = vunpack.c.l.b16 %v724
        %v2030 = vunpack.c.h.b16 %v724
        %v2031 = vunpack.c.l.b16 %v725
        %v2032 = vunpack.c.h.b16 %v725
        %v2033 = vunpack.c.l.b16 %v726
        %v2034 = vunpack.c.h.b16 %v726
        %v2035 = vunpack.c.l.b16 %v727
        %v2036 = vunpack.c.h.b16 %v727
        %v2037 = vunpack.c.l.b16 %v728
        %v2038 = vunpack.c.h.b16 %v728
        %v2039 = vunpack.c.l.b16 %v729
        %v2040 = vunpack.c.h.b16 %v729
        %v2041 = vunpack.c.l.b16 %v730
        %v2042 = vunpack.c.h.b16 %v730
        %v2043 = vunpack.c.l.b16 %v731
        %v2044 = vunpack.c.h.b16 %v731
        %v2045 = vunpack.c.l.b16 %v732
        %v2046 = vunpack.c.h.b16 %v732
        %v2047 = vunpack.c.l.b16 %v733
        %v2048 = vunpack.c.h.b16 %v733
        %v2049 = vunpack.c.l.b16 %v734
        %v2050 = vunpack.c.h.b16 %v734
        %v2051 = vunpack.c.l.b16 %v735
        %v2052 = vunpack.c.h.b16 %v735
        %v2053 = vunpack.c.l.b16 %v736
        %v2054 = vunpack.c.h.b16 %v736
        %v2055 = vunpack.c.l.b16 %v737
        %v2056 = vunpack.c.h.b16 %v737
        %v2057 = vunpack.c.l.b16 %v738
        %v2058 = vunpack.c.h.b16 %v738
        %v2059 = vunpack.c.l.b16 %v739
        %v2060 = vunpack.c.h.b16 %v739
        %v2061 = vunpack.c.l.b16 %v740
        %v2062 = vunpack.c.h.b16 %v740
        %v2063 = vunpack.c.l.b16 %v741
        %v2064 = vunpack.c.h.b16 %v741
        %v2065 = vunpack.c.l.b16 %v742
        %v2066 = vunpack.c.h.b16 %v742
        %v2067 = vunpack.c.l.b16 %v743
        %v2068 = vunpack.c.h.b16 %v743
        %v2069 = vunpack.c.l.b16 %v744
        %v2070 = vunpack.c.h.b16 %v744
        %v2071 = vunpack.c.l.b16 %v745
        %v2072 = vunpack.c.h.b16 %v745
        %v2073 = vunpack.c.l.b16 %v746
        %v2074 = vunpack.c.h.b16 %v746
        %v2075 = vunpack.c.l.b16 %v747
        %v2076 = vunpack.c.h.b16 %v747
        %v2077 = vunpack.c.l.b16 %v748
        %v2078 = vunpack.c.h.b16 %v748
        %v2079 = vunpack.c.l.b16 %v749
        %v2080 = vunpack.c.h.b16 %v749
        %v2081 = vunpack.c.l.b16 %v750
        %v2082 = vunpack.c.h.b16 %v750
        %v2083 = vunpack.c.l.b16 %v751
        %v2084 = vunpack.c.h.b16 %v751
        %v2085 = vunpack.c.l.b16 %v752
        %v2086 = vunpack.c.h.b16 %v752
        %v2087 = vunpack.c.l.b16 %v753
        %v2088 = vunpack.c.h.b16 %v753
        %v2089 = vunpack.c.l.b16 %v754
        %v2090 = vunpack.c.h.b16 %v754
        %v2091 = vunpack.c.l.b16 %v755
        %v2092 = vunpack.c.h.b16 %v755
        %v2093 = vunpack.c.l.b16 %v756
        %v2094 = vunpack.c.h.b16 %v756
        %v2095 = vunpack.c.l.b16 %v757
        %v2096 = vunpack.c.h.b16 %v757
        %v2097 = vunpack.c.l.b16 %v758
        %v2098 = vunpack.c.h.b16 %v758
        %v2099 = vunpack.c.l.b16 %v759
        %v2100 = vunpack.c.h.b16 %v759
        %v2101 = vunpack.c.l.b16 %v760
        %v2102 = vunpack.c.h.b16 %v760
        %v2103 = vunpack.c.l.b16 %v761
        %v2104 = vunpack.c.h.b16 %v761
        %v2105 = vunpack.c.l.b16 %v762
        %v2106 = vunpack.c.h.b16 %v762
        %v2107 = vunpack.c.l.b16 %v763
        %v2108 = vunpack.c.h.b16 %v763
        %v2109 = vunpack.c.l.b16 %v764
        %v2110 = vunpack.c.h.b16 %v764
        %v2111 = vunpack.c.l.b16 %v765
        %v2112 = vunpack.c.h.b16 %v765
        %v2113 = vunpack.c.l.b16 %v766
        %v2114 = vunpack.c.h.b16 %v766
        %v2115 = vunpack.c.l.b16 %v767
        %v2116 = vunpack.c.h.b16 %v767
        %v2117 = vunpack.c.l.b16 %v768
        %v2118 = vunpack.c.h.b16 %v768
        %v2119 = vunpack.c.l.b16 %v769
        %v2120 = vunpack.c.h.b16 %v769
        %v2121 = vunpack.c.l.b16 %v770
        %v2122 = vunpack.c.h.b16 %v770
        %v2123 = vunpack.c.l.b16 %v771
        %v2124 = vunpack.c.h.b16 %v771
        %v2125 = vunpack.c.l.b16 %v772
        %v2126 = vunpack.c.h.b16 %v772
        %v2127 = vunpack.c.l.b16 %v773
        %v2128 = vunpack.c.h.b16 %v773
        %v2129 = vunpack.c.l.b16 %v774
        %v2130 = vunpack.c.h.b16 %v774
        %v2131 = vunpack.c.l.b16 %v775
        %v2132 = vunpack.c.h.b16 %v775
        %v2133 = vunpack.c.l.b16 %v776
        %v2134 = vunpack.c.h.b16 %v776
        %v2135 = vunpack.c.l.b16 %v777
        %v2136 = vunpack.c.h.b16 %v777
        %v2137 = vunpack.c.l.b16 %v778
        %v2138 = vunpack.c.h.b16 %v778
        %v2139 = vunpack.c.l.b16 %v779
        %v2140 = vunpack.c.h.b16 %v779
        %v2141 = vunpack.c.l.b16 %v780
        %v2142 = vunpack.c.h.b16 %v780
        %v2143 = vunpack.c.l.b16 %v781
        %v2144 = vunpack.c.h.b16 %v781
        %v2145 = vunpack.c.l.b16 %v782
        %v2146 = vunpack.c.h.b16 %v782
        %v2147 = vunpack.c.l.b16 %v783
        %v2148 = vunpack.c.h.b16 %v783
        %v2149 = vunpack.c.l.b16 %v784
        %v2150 = vunpack.c.h.b16 %v784
        %v2151 = vunpack.c.l.b16 %v785
        %v2152 = vunpack.c.h.b16 %v785
        %v2153 = vunpack.c.l.b16 %v786
        %v2154 = vunpack.c.h.b16 %v786
        %v2155 = vunpack.c.l.b16 %v787
        %v2156 = vunpack.c.h.b16 %v787
        %v2157 = vunpack.c.l.b16 %v788
        %v2158 = vunpack.c.h.b16 %v788
        %v2159 = vunpack.c.l.b16 %v789
        %v2160 = vunpack.c.h.b16 %v789
        %v2161 = vunpack.c.l.b16 %v790
        %v2162 = vunpack.c.h.b16 %v790
        %v2163 = vunpack.c.l.b16 %v791
        %v2164 = vunpack.c.h.b16 %v791
        %v2165 = vunpack.c.l.b16 %v792
        %v2166 = vunpack.c.h.b16 %v792
        %v2167 = vunpack.c.l.b16 %v793
        %v2168 = vunpack.c.h.b16 %v793
        %v2169 = vunpack.c.l.b16 %v794
        %v2170 = vunpack.c.h.b16 %v794
        %v2171 = vunpack.c.l.b16 %v795
        %v2172 = vunpack.c.h.b16 %v795
        %v2173 = vunpack.c.l.b16 %v796
        %v2174 = vunpack.c.h.b16 %v796
        %v2175 = vunpack.c.l.b16 %v797
        %v2176 = vunpack.c.h.b16 %v797
        %v2177 = vunpack.c.l.b16 %v798
        %v2178 = vunpack.c.h.b16 %v798
        %v2179 = vunpack.c.l.b16 %v799
        %v2180 = vunpack.c.h.b16 %v799
        %v2181 = vunpack.c.l.b16 %v800
        %v2182 = vunpack.c.h.b16 %v800
        %v2183 = vunpack.c.l.b16 %v801
        %v2184 = vunpack.c.h.b16 %v801
        %v2185 = vunpack.c.l.b16 %v802
        %v2186 = vunpack.c.h.b16 %v802
        %v2187 = vunpack.c.l.b16 %v803
        %v2188 = vunpack.c.h.b16 %v803
        %v2189 = vunpack.c.l.b16 %v804
        %v2190 = vunpack.c.h.b16 %v804
        %v2191 = vunpack.c.l.b16 %v805
        %v2192 = vunpack.c.h.b16 %v805
        %v2193 = vunpack.c.l.b16 %v806
        %v2194 = vunpack.c.h.b16 %v806
        %v2195 = vunpack.c.l.b16 %v807
        %v2196 = vunpack.c.h.b16 %v807
        %v2197 = vunpack.c.l.b16 %v808
        %v2198 = vunpack.c.h.b16 %v808
        %v2199 = vunpack.c.l.b16 %v809
        %v2200 = vunpack.c.h.b16 %v809
        %v2201 = vunpack.c.l.b16 %v810
        %v2202 = vunpack.c.h.b16 %v810
        %v2203 = vunpack.c.l.b16 %v811
        %v2204 = vunpack.c.h.b16 %v811
        %v2205 = vunpack.c.l.b16 %v812
        %v2206 = vunpack.c.h.b16 %v812
        %v2207 = vunpack.c.l.b16 %v813
        %v2208 = vunpack.c.h.b16 %v813
        %v2209 = vunpack.c.l.b16 %v814
        %v2210 = vunpack.c.h.b16 %v814
        %v2211 = vunpack.c.l.b16 %v815
        %v2212 = vunpack.c.h.b16 %v815
        %v2213 = vunpack.c.l.b16 %v816
        %v2214 = vunpack.c.h.b16 %v816
        %v2215 = vunpack.c.l.b16 %v817
        %v2216 = vunpack.c.h.b16 %v817
        %v2217 = vunpack.c.l.b16 %v818
        %v2218 = vunpack.c.h.b16 %v818
        %v2219 = vunpack.c.l.b16 %v819
        %v2220 = vunpack.c.h.b16 %v819
        %v2221 = vunpack.c.l.b16 %v820
        %v2222 = vunpack.c.h.b16 %v820
        %v2223 = vunpack.c.l.b16 %v821
        %v2224 = vunpack.c.h.b16 %v821
        %v2225 = vunpack.c.l.b16 %v822
        %v2226 = vunpack.c.h.b16 %v822
        %v2227 = vunpack.c.l.b16 %v823
        %v2228 = vunpack.c.h.b16 %v823
        %v2229 = vunpack.c.l.b16 %v824
        %v2230 = vunpack.c.h.b16 %v824
        %v2231 = vunpack.c.l.b16 %v825
        %v2232 = vunpack.c.h.b16 %v825
        %v2233 = vunpack.c.l.b16 %v826
        %v2234 = vunpack.c.h.b16 %v826
        %v2235 = vunpack.c.l.b16 %v827
        %v2236 = vunpack.c.h.b16 %v827
        %v2237 = vunpack.c.l.b16 %v828
        %v2238 = vunpack.c.h.b16 %v828
        %v2239 = vunpack.c.l.b16 %v829
        %v2240 = vunpack.c.h.b16 %v829
        %v2241 = vunpack.c.l.b16 %v830
        %v2242 = vunpack.c.h.b16 %v830
        %v2243 = vunpack.c.l.b16 %v831
        %v2244 = vunpack.c.h.b16 %v831
        %v2245 = vunpack.c.l.b16 %v832
        %v2246 = vunpack.c.h.b16 %v832
        %v2247 = vunpack.c.l.b16 %v833
        %v2248 = vunpack.c.h.b16 %v833
        %v2249 = vunpack.c.l.b16 %v834
        %v2250 = vunpack.c.h.b16 %v834
        %v2251 = vunpack.c.l.b16 %v835
        %v2252 = vunpack.c.h.b16 %v835
        %v2253 = vunpack.c.l.b16 %v836
        %v2254 = vunpack.c.h.b16 %v836
        %v2255 = vunpack.c.l.b16 %v837
        %v2256 = vunpack.c.h.b16 %v837
        %v2257 = vunpack.c.l.b16 %v838
        %v2258 = vunpack.c.h.b16 %v838
        %v2259 = vunpack.c.l.b16 %v839
        %v2260 = vunpack.c.h.b16 %v839
        %v2261 = vunpack.c.l.b16 %v840
        %v2262 = vunpack.c.h.b16 %v840
        %v2263 = vunpack.c.l.b16 %v841
        %v2264 = vunpack.c.h.b16 %v841
        %v2265 = vunpack.c.l.b16 %v842
        %v2266 = vunpack.c.h.b16 %v842
        %v2267 = vunpack.c.l.b16 %v843
        %v2268 = vunpack.c.h.b16 %v843
        %v2269 = vunpack.c.l.b16 %v844
        %v2270 = vunpack.c.h.b16 %v844
        %v2271 = vunpack.c.l.b16 %v845
        %v2272 = vunpack.c.h.b16 %v845
        %v2273 = vunpack.c.l.b16 %v846
        %v2274 = vunpack.c.h.b16 %v846
        %v2275 = vunpack.c.l.b16 %v847
        %v2276 = vunpack.c.h.b16 %v847
        %v2277 = vunpack.c.l.b16 %v848
        %v2278 = vunpack.c.h.b16 %v848
        %v2279 = vunpack.c.l.b16 %v849
        %v2280 = vunpack.c.h.b16 %v849
        %v2281 = vunpack.c.l.b16 %v850
        %v2282 = vunpack.c.h.b16 %v850
        %v2283 = vunpack.c.l.b16 %v851
        %v2284 = vunpack.c.h.b16 %v851
        %v2285 = vunpack.c.l.b16 %v852
        %v2286 = vunpack.c.h.b16 %v852
        %v2287 = vunpack.c.l.b16 %v853
        %v2288 = vunpack.c.h.b16 %v853
        %v2289 = vunpack.c.l.b16 %v854
        %v2290 = vunpack.c.h.b16 %v854
        %v2291 = vunpack.c.l.b16 %v855
        %v2292 = vunpack.c.h.b16 %v855
        %v2293 = vunpack.c.l.b16 %v856
        %v2294 = vunpack.c.h.b16 %v856
        %v2295 = vunpack.c.l.b16 %v857
        %v2296 = vunpack.c.h.b16 %v857
        %v2297 = vunpack.c.l.b16 %v858
        %v2298 = vunpack.c.h.b16 %v858
        %v2299 = vunpack.c.l.b16 %v859
        %v2300 = vunpack.c.h.b16 %v859
        %v2301 = vunpack.c.l.b16 %v860
        %v2302 = vunpack.c.h.b16 %v860
        %v2303 = vunpack.c.l.b16 %v861
        %v2304 = vunpack.c.h.b16 %v861
        %v2305 = vunpack.c.l.b16 %v862
        %v2306 = vunpack.c.h.b16 %v862
        %v2307 = vunpack.c.l.b16 %v863
        %v2308 = vunpack.c.h.b16 %v863
        %v2309 = vunpack.c.l.b16 %v864
        %v2310 = vunpack.c.h.b16 %v864
        %v2311 = vunpack.c.l.b16 %v865
        %v2312 = vunpack.c.h.b16 %v865
        %v2313 = vunpack.c.l.b16 %v866
        %v2314 = vunpack.c.h.b16 %v866
        %v2315 = vunpack.c.l.b16 %v867
        %v2316 = vunpack.c.h.b16 %v867
        %v2317 = vunpack.c.l.b16 %v868
        %v2318 = vunpack.c.h.b16 %v868
        %v2319 = vunpack.c.l.b16 %v869
        %v2320 = vunpack.c.h.b16 %v869
        %v2321 = vunpack.c.l.b16 %v870
        %v2322 = vunpack.c.h.b16 %v870
        %v2323 = vunpack.c.l.b16 %v871
        %v2324 = vunpack.c.h.b16 %v871
        %v2325 = vunpack.c.l.b16 %v872
        %v2326 = vunpack.c.h.b16 %v872
        %v2327 = vunpack.c.l.b16 %v873
        %v2328 = vunpack.c.h.b16 %v873
        %v2329 = vunpack.c.l.b16 %v874
        %v2330 = vunpack.c.h.b16 %v874
        %v2331 = vunpack.c.l.b16 %v875
        %v2332 = vunpack.c.h.b16 %v875
        %v2333 = vunpack.c.l.b16 %v876
        %v2334 = vunpack.c.h.b16 %v876
        %v2335 = vunpack.c.l.b16 %v877
        %v2336 = vunpack.c.h.b16 %v877
        %v2337 = vunpack.c.l.b16 %v878
        %v2338 = vunpack.c.h.b16 %v878
        %v2339 = vunpack.c.l.b16 %v879
        %v2340 = vunpack.c.h.b16 %v879
        %v2341 = vunpack.c.l.b16 %v880
        %v2342 = vunpack.c.h.b16 %v880
        %v2343 = vunpack.c.l.b16 %v881
        %v2344 = vunpack.c.h.b16 %v881
        %v2345 = vunpack.c.l.b16 %v882
        %v2346 = vunpack.c.h.b16 %v882
        %v2347 = vunpack.c.l.b16 %v883
        %v2348 = vunpack.c.h.b16 %v883
        %v2349 = vunpack.c.l.b16 %v884
        %v2350 = vunpack.c.h.b16 %v884
        %v2351 = vunpack.c.l.b16 %v885
        %v2352 = vunpack.c.h.b16 %v885
        %v2353 = vunpack.c.l.b16 %v886
        %v2354 = vunpack.c.h.b16 %v886
        %v2355 = vunpack.c.l.b16 %v887
        %v2356 = vunpack.c.h.b16 %v887
        %v2357 = vunpack.c.l.b16 %v888
        %v2358 = vunpack.c.h.b16 %v888
        %v2359 = vunpack.c.l.b16 %v889
        %v2360 = vunpack.c.h.b16 %v889
        %v2361 = vunpack.c.l.b16 %v890
        %v2362 = vunpack.c.h.b16 %v890
        %v2363 = vunpack.c.l.b16 %v891
        %v2364 = vunpack.c.h.b16 %v891
        %v2365 = vunpack.c.l.b16 %v892
        %v2366 = vunpack.c.h.b16 %v892
        %v2367 = vunpack.c.l.b16 %v893
        %v2368 = vunpack.c.h.b16 %v893
        %v2369 = vunpack.c.l.b16 %v894
        %v2370 = vunpack.c.h.b16 %v894
        %v2371 = vunpack.c.l.b16 %v895
        %v2372 = vunpack.c.h.b16 %v895
        %v2373 = vunpack.c.l.b16 %v896
        %v2374 = vunpack.c.h.b16 %v896
        %v2375 = vunpack.c.l.b16 %v897
        %v2376 = vunpack.c.h.b16 %v897
        %v2377 = vunpack.c.l.b16 %v898
        %v2378 = vunpack.c.h.b16 %v898
        %v2379 = vunpack.c.l.b16 %v899
        %v2380 = vunpack.c.h.b16 %v899
        %v2381 = vunpack.c.l.b16 %v900
        %v2382 = vunpack.c.h.b16 %v900
        %v2383 = vunpack.c.l.b16 %v901
        %v2384 = vunpack.c.h.b16 %v901
        %v2385 = vunpack.c.l.b16 %v902
        %v2386 = vunpack.c.h.b16 %v902
        %v2387 = vunpack.c.l.b16 %v903
        %v2388 = vunpack.c.h.b16 %v903
        %v2389 = vunpack.c.l.b16 %v904
        %v2390 = vunpack.c.h.b16 %v904
        %v2391 = vunpack.c.l.b16 %v905
        %v2392 = vunpack.c.h.b16 %v905
        %v2393 = vunpack.c.l.b16 %v906
        %v2394 = vunpack.c.h.b16 %v906
        %v2395 = vunpack.c.l.b16 %v907
        %v2396 = vunpack.c.h.b16 %v907
        %v2397 = vunpack.c.l.b16 %v908
        %v2398 = vunpack.c.h.b16 %v908
        %v2399 = vunpack.c.l.b16 %v909
        %v2400 = vunpack.c.h.b16 %v909
        %v2401 = vunpack.c.l.b16 %v910
        %v2402 = vunpack.c.h.b16 %v910
        %v2403 = vunpack.c.l.b16 %v911
        %v2404 = vunpack.c.h.b16 %v911
        %v2405 = vunpack.c.l.b16 %v912
        %v2406 = vunpack.c.h.b16 %v912
        %v2407 = vunpack.c.l.b16 %v913
        %v2408 = vunpack.c.h.b16 %v913
        %v2409 = vunpack.c.l.b16 %v914
        %v2410 = vunpack.c.h.b16 %v914
        %v2411 = vunpack.c.l.b16 %v915
        %v2412 = vunpack.c.h.b16 %v915
        %v2413 = vunpack.c.l.b16 %v916
        %v2414 = vunpack.c.h.b16 %v916
        %v2415 = vunpack.c.l.b16 %v917
        %v2416 = vunpack.c.h.b16 %v917
        %v2417 = vunpack.c.l.b16 %v918
        %v2418 = vunpack.c.h.b16 %v918
        %v2419 = vunpack.c.l.b16 %v919
        %v2420 = vunpack.c.h.b16 %v919
        %v2421 = vunpack.c.l.b16 %v920
        %v2422 = vunpack.c.h.b16 %v920
        %v2423 = vunpack.c.l.b16 %v921
        %v2424 = vunpack.c.h.b16 %v921
        %v2425 = vunpack.c.l.b16 %v922
        %v2426 = vunpack.c.h.b16 %v922
        %v2427 = vunpack.c.l.b16 %v923
        %v2428 = vunpack.c.h.b16 %v923
        %v2429 = vunpack.c.l.b16 %v924
        %v2430 = vunpack.c.h.b16 %v924
        %v2431 = vunpack.c.l.b16 %v925
        %v2432 = vunpack.c.h.b16 %v925
        %v2433 = vunpack.c.l.b16 %v926
        %v2434 = vunpack.c.h.b16 %v926
        %v2435 = vunpack.c.l.b16 %v927
        %v2436 = vunpack.c.h.b16 %v927
        %v2437 = vunpack.c.l.b16 %v928
        %v2438 = vunpack.c.h.b16 %v928
        %v2439 = vunpack.c.l.b16 %v929
        %v2440 = vunpack.c.h.b16 %v929
        %v2441 = vunpack.c.l.b16 %v930
        %v2442 = vunpack.c.h.b16 %v930
        %v2443 = vunpack.c.l.b16 %v931
        %v2444 = vunpack.c.h.b16 %v931
        %v2445 = vunpack.c.l.b16 %v932
        %v2446 = vunpack.c.h.b16 %v932
        %v2447 = vunpack.c.l.b16 %v933
        %v2448 = vunpack.c.h.b16 %v933
        %v2449 = vunpack.c.l.b16 %v934
        %v2450 = vunpack.c.h.b16 %v934
        %v2451 = vunpack.c.l.b16 %v935
        %v2452 = vunpack.c.h.b16 %v935
        %v2453 = vunpack.c.l.b16 %v936
        %v2454 = vunpack.c.h.b16 %v936
        %v2455 = vunpack.c.l.b16 %v937
        %v2456 = vunpack.c.h.b16 %v937
        %v2457 = vunpack.c.l.b16 %v938
        %v2458 = vunpack.c.h.b16 %v938
        %v2459 = vunpack.c.l.b16 %v939
        %v2460 = vunpack.c.h.b16 %v939
        %v2461 = vunpack.c.l.b16 %v940
        %v2462 = vunpack.c.h.b16 %v940
        %v2463 = vunpack.c.l.b16 %v941
        %v2464 = vunpack.c.h.b16 %v941
        %v2465 = vunpack.c.l.b16 %v942
        %v2466 = vunpack.c.h.b16 %v942
        %v2467 = vunpack.c.l.b16 %v943
        %v2468 = vunpack.c.h.b16 %v943
        %v2469 = vunpack.c.l.b16 %v944
        %v2470 = vunpack.c.h.b16 %v944
        %v2471 = vunpack.c.l.b16 %v945
        %v2472 = vunpack.c.h.b16 %v945
        %v2473 = vunpack.c.l.b16 %v946
        %v2474 = vunpack.c.h.b16 %v946
        %v2475 = vunpack.c.l.b16 %v947
        %v2476 = vunpack.c.h.b16 %v947
        %v2477 = vunpack.c.l.b16 %v948
        %v2478 = vunpack.c.h.b16 %v948
        %v2479 = vunpack.c.l.b16 %v949
        %v2480 = vunpack.c.h.b16 %v949
        %v2481 = vunpack.c.l.b16 %v950
        %v2482 = vunpack.c.h.b16 %v950
        %v2483 = vunpack.c.l.b16 %v951
        %v2484 = vunpack.c.h.b16 %v951
        %v2485 = vunpack.c.l.b16 %v952
        %v2486 = vunpack.c.h.b16 %v952
        %v2487 = vunpack.c.l.b16 %v953
        %v2488 = vunpack.c.h.b16 %v953
        %v2489 = vunpack.c.l.b16 %v954
        %v2490 = vunpack.c.h.b16 %v954
        %v2491 = vunpack.c.l.b16 %v955
        %v2492 = vunpack.c.h.b16 %v955
        %v2493 = vunpack.c.l.b16 %v956
        %v2494 = vunpack.c.h.b16 %v956
        %v2495 = vunpack.c.l.b16 %v957
        %v2496 = vunpack.c.h.b16 %v957
        %v2497 = vunpack.c.l.b16 %v958
        %v2498 = vunpack.c.h.b16 %v958
        %v2499 = vunpack.c.l.b16 %v959
        %v2500 = vunpack.c.h.b16 %v959
        %v2501 = vunpack.c.l.b16 %v960
        %v2502 = vunpack.c.h.b16 %v960
        %v2503 = vunpack.c.l.b16 %v961
        %v2504 = vunpack.c.h.b16 %v961
        %v2505 = vunpack.c.l.b16 %v962
        %v2506 = vunpack.c.h.b16 %v962
        %v2507 = vunpack.c.l.b16 %v963
        %v2508 = vunpack.c.h.b16 %v963
        %v2509 = vunpack.c.l.b16 %v964
        %v2510 = vunpack.c.h.b16 %v964
        %v2511 = vunpack.c.l.b16 %v965
        %v2512 = vunpack.c.h.b16 %v965
        %v2513 = vunpack.c.l.b16 %v966
        %v2514 = vunpack.c.h.b16 %v966
        %v2515 = vunpack.c.l.b16 %v967
        %v2516 = vunpack.c.h.b16 %v967
        %v2517 = vunpack.c.l.b16 %v968
        %v2518 = vunpack.c.h.b16 %v968
        %v2519 = vunpack.c.l.b16 %v969
        %v2520 = vunpack.c.h.b16 %v969
        %v2521 = vunpack.c.l.b16 %v970
        %v2522 = vunpack.c.h.b16 %v970
        %v2523 = vunpack.c.l.b16 %v971
        %v2524 = vunpack.c.h.b16 %v971
        %v2525 = vunpack.c.l.b16 %v972
        %v2526 = vunpack.c.h.b16 %v972
        %v2527 = vunpack.c.l.b16 %v973
        %v2528 = vunpack.c.h.b16 %v973
        %v2529 = vunpack.c.l.b16 %v974
        %v2530 = vunpack.c.h.b16 %v974
        %v2531 = vunpack.c.l.b16 %v975
        %v2532 = vunpack.c.h.b16 %v975
        %v2533 = vunpack.c.l.b16 %v976
        %v2534 = vunpack.c.h.b16 %v976
        %v2535 = vunpack.c.l.b16 %v977
        %v2536 = vunpack.c.h.b16 %v977
        %v2537 = vunpack.c.l.b16 %v978
        %v2538 = vunpack.c.h.b16 %v978
        %v2539 = vunpack.c.l.b16 %v979
        %v2540 = vunpack.c.h.b16 %v979
        %v2541 = vunpack.c.l.b16 %v980
        %v2542 = vunpack.c.h.b16 %v980
        %v2543 = vunpack.c.l.b16 %v981
        %v2544 = vunpack.c.h.b16 %v981
        %v2545 = vunpack.c.l.b16 %v982
        %v2546 = vunpack.c.h.b16 %v982
        %v2547 = vunpack.c.l.b16 %v983
        %v2548 = vunpack.c.h.b16 %v983
        %v2549 = vunpack.c.l.b16 %v984
        %v2550 = vunpack.c.h.b16 %v984
        %v2551 = vunpack.c.l.b16 %v985
        %v2552 = vunpack.c.h.b16 %v985
        %v2553 = vunpack.c.l.b16 %v986
        %v2554 = vunpack.c.h.b16 %v986
        %v2555 = vunpack.c.l.b16 %v987
        %v2556 = vunpack.c.h.b16 %v987
        %v2557 = vunpack.c.l.b16 %v988
        %v2558 = vunpack.c.h.b16 %v988
        %v2559 = vunpack.c.l.b16 %v989
        %v2560 = vunpack.c.h.b16 %v989
        %v2561 = vunpack.c.l.b16 %v990
        %v2562 = vunpack.c.h.b16 %v990
        %v2563 = vunpack.c.l.b16 %v991
        %v2564 = vunpack.c.h.b16 %v991
        %v2565 = vunpack.c.l.b16 %v992
        %v2566 = vunpack.c.h.b16 %v992
        %v2567 = vunpack.c.l.b16 %v993
        %v2568 = vunpack.c.h.b16 %v993
        %v2569 = vunpack.c.l.b16 %v994
        %v2570 = vunpack.c.h.b16 %v994
        %v2571 = vunpack.c.l.b16 %v995
        %v2572 = vunpack.c.h.b16 %v995
        %v2573 = vunpack.c.l.b16 %v996
        %v2574 = vunpack.c.h.b16 %v996
        %v2575 = vunpack.c.l.b16 %v997
        %v2576 = vunpack.c.h.b16 %v997
        %v2577 = vunpack.c.l.b16 %v998
        %v2578 = vunpack.c.h.b16 %v998
        %v2579 = vunpack.c.l.b16 %v999
        %v2580 = vunpack.c.h.b16 %v999
        %v2581 = vunpack.c.l.b16 %v1000
        %v2582 = vunpack.c.h.b16 %v1000
        %v2583 = vunpack.c.l.b16 %v1001
        %v2584 = vunpack.c.h.b16 %v1001
        %v2585 = vunpack.c.l.b16 %v1002
        %v2586 = vunpack.c.h.b16 %v1002
        %v2587 = vunpack.c.l.b16 %v1003
        %v2588 = vunpack.c.h.b16 %v1003
        %v2589 = vunpack.c.l.b16 %v1004
        %v2590 = vunpack.c.h.b16 %v1004
        %v2591 = vunpack.c.l.b16 %v1005
        %v2592 = vunpack.c.h.b16 %v1005
        %v2593 = vunpack.c.l.b16 %v1006
        %v2594 = vunpack.c.h.b16 %v1006
        %v2595 = vunpack.c.l.b16 %v1007
        %v2596 = vunpack.c.h.b16 %v1007
        %v2597 = vunpack.c.l.b16 %v1008
        %v2598 = vunpack.c.h.b16 %v1008
        %v2599 = vunpack.c.l.b16 %v1009
        %v2600 = vunpack.c.h.b16 %v1009
        %v2601 = vunpack.c.l.b16 %v1010
        %v2602 = vunpack.c.h.b16 %v1010
        %v2603 = vunpack.c.l.b16 %v1011
        %v2604 = vunpack.c.h.b16 %v1011
        %v2605 = vunpack.c.l.b16 %v1012
        %v2606 = vunpack.c.h.b16 %v1012
        %v2607 = vunpack.c.l.b16 %v1013
        %v2608 = vunpack.c.h.b16 %v1013
        %v2609 = vunpack.c.l.b16 %v1014
        %v2610 = vunpack.c.h.b16 %v1014
        %v2611 = vunpack.c.l.b16 %v1015
        %v2612 = vunpack.c.h.b16 %v1015
        %v2613 = vunpack.c.l.b16 %v1016
        %v2614 = vunpack.c.h.b16 %v1016
        %v2615 = vunpack.c.l.b16 %v1017
        %v2616 = vunpack.c.h.b16 %v1017
        %v2617 = vunpack.c.l.b16 %v1018
        %v2618 = vunpack.c.h.b16 %v1018
        %v2619 = vunpack.c.l.b16 %v1019
        %v2620 = vunpack.c.h.b16 %v1019
        %v2621 = vunpack.c.l.b16 %v1020
        %v2622 = vunpack.c.h.b16 %v1020
        %v2623 = vunpack.c.l.b16 %v1021
        %v2624 = vunpack.c.h.b16 %v1021
        %v2625 = vunpack.c.l.b16 %v1022
        %v2626 = vunpack.c.h.b16 %v1022
        %v2627 = vunpack.c.l.b16 %v1023
        %v2628 = vunpack.c.h.b16 %v1023
        %v2629 = vunpack.c.l.b16 %v1024
        %v2630 = vunpack.c.h.b16 %v1024
        %v2631 = vunpack.c.l.b16 %v1025
        %v2632 = vunpack.c.h.b16 %v1025
        %v2633 = vunpack.c.l.b16 %v1026
        %v2634 = vunpack.c.h.b16 %v1026
        %v2635 = vunpack.c.l.b16 %v1027
        %v2636 = vunpack.c.h.b16 %v1027
        %v2637 = vunpack.c.l.b16 %v1028
        %v2638 = vunpack.c.h.b16 %v1028
        %v2639 = vunpack.c.l.b16 %v1029
        %v2640 = vunpack.c.h.b16 %v1029
        %v2641 = vunpack.c.l.b16 %v1030
        %v2642 = vunpack.c.h.b16 %v1030
        %v2643 = vunpack.c.l.b16 %v1031
        %v2644 = vunpack.c.h.b16 %v1031
        %v2645 = vunpack.c.l.b16 %v1032
        %v2646 = vunpack.c.h.b16 %v1032
        %v2647 = vunpack.c.l.b16 %v1033
        %v2648 = vunpack.c.h.b16 %v1033
        %v2649 = vunpack.c.l.b16 %v1034
        %v2650 = vunpack.c.h.b16 %v1034
        %v2651 = vunpack.c.l.b16 %v1035
        %v2652 = vunpack.c.h.b16 %v1035
        %v2653 = vunpack.c.l.b16 %v1036
        %v2654 = vunpack.c.h.b16 %v1036
        %v2655 = vpack.c.b16 %v1639, %v1631
        %v2656 = vpack.c.b16 %v1640, %v1632
        %v2657 = vpack.c.b16 %v1641, %v1633
        %v2658 = vpack.c.b16 %v1642, %v1634
        %v2659 = vpack.c.b16 %v1643, %v1635
        %v2660 = vpack.c.b16 %v1644, %v1636
        %v2661 = vpack.c.b16 %v1645, %v1637
        %v2662 = vpack.c.b16 %v1646, %v1638
        %v2663 = vpack.c.b16 %v1655, %v1647
        %v2664 = vpack.c.b16 %v1656, %v1648
        %v2665 = vpack.c.b16 %v1657, %v1649
        %v2666 = vpack.c.b16 %v1658, %v1650
        %v2667 = vpack.c.b16 %v1659, %v1651
        %v2668 = vpack.c.b16 %v1660, %v1652
        %v2669 = vpack.c.b16 %v1661, %v1653
        %v2670 = vpack.c.b16 %v1662, %v1654
        %v2671 = vpack.c.b16 %v1671, %v1663
        %v2672 = vpack.c.b16 %v1672, %v1664
        %v2673 = vpack.c.b16 %v1673, %v1665
        %v2674 = vpack.c.b16 %v1674, %v1666
        %v2675 = vpack.c.b16 %v1675, %v1667
        %v2676 = vpack.c.b16 %v1676, %v1668
        %v2677 = vpack.c.b16 %v1677, %v1669
        %v2678 = vpack.c.b16 %v1678, %v1670
        %v2679 = vpack.c.b16 %v1687, %v1679
        %v2680 = vpack.c.b16 %v1688, %v1680
        %v2681 = vpack.c.b16 %v1689, %v1681
        %v2682 = vpack.c.b16 %v1690, %v1682
        %v2683 = vpack.c.b16 %v1691, %v1683
        %v2684 = vpack.c.b16 %v1692, %v1684
        %v2685 = vpack.c.b16 %v1693, %v1685
        %v2686 = vpack.c.b16 %v1694, %v1686
        %v2687 = vpack.c.b16 %v1703, %v1695
        %v2688 = vpack.c.b16 %v1704, %v1696
        %v2689 = vpack.c.b16 %v1705, %v1697
        %v2690 = vpack.c.b16 %v1706, %v1698
        %v2691 = vpack.c.b16 %v1707, %v1699
        %v2692 = vpack.c.b16 %v1708, %v1700
        %v2693 = vpack.c.b16 %v1709, %v1701
        %v2694 = vpack.c.b16 %v1710, %v1702
        %v2695 = vpack.c.b16 %v1719, %v1711
        %v2696 = vpack.c.b16 %v1720, %v1712
        %v2697 = vpack.c.b16 %v1721, %v1713
        %v2698 = vpack.c.b16 %v1722, %v1714
        %v2699 = vpack.c.b16 %v1723, %v1715
        %v2700 = vpack.c.b16 %v1724, %v1716
        %v2701 = vpack.c.b16 %v1725, %v1717
        %v2702 = vpack.c.b16 %v1726, %v1718
        %v2703 = vpack.c.b16 %v1735, %v1727
        %v2704 = vpack.c.b16 %v1736, %v1728
        %v2705 = vpack.c.b16 %v1737, %v1729
        %v2706 = vpack.c.b16 %v1738, %v1730
        %v2707 = vpack.c.b16 %v1739, %v1731
        %v2708 = vpack.c.b16 %v1740, %v1732
        %v2709 = vpack.c.b16 %v1741, %v1733
        %v2710 = vpack.c.b16 %v1742, %v1734
        %v2711 = vpack.c.b16 %v1751, %v1743
        %v2712 = vpack.c.b16 %v1752, %v1744
        %v2713 = vpack.c.b16 %v1753, %v1745
        %v2714 = vpack.c.b16 %v1754, %v1746
        %v2715 = vpack.c.b16 %v1755, %v1747
        %v2716 = vpack.c.b16 %v1756, %v1748
        %v2717 = vpack.c.b16 %v1757, %v1749
        %v2718 = vpack.c.b16 %v1758, %v1750
        %v2719 = vpack.c.b16 %v1767, %v1759
        %v2720 = vpack.c.b16 %v1768, %v1760
        %v2721 = vpack.c.b16 %v1769, %v1761
        %v2722 = vpack.c.b16 %v1770, %v1762
        %v2723 = vpack.c.b16 %v1771, %v1763
        %v2724 = vpack.c.b16 %v1772, %v1764
        %v2725 = vpack.c.b16 %v1773, %v1765
        %v2726 = vpack.c.b16 %v1774, %v1766
        %v2727 = vpack.c.b16 %v1783, %v1775
        %v2728 = vpack.c.b16 %v1784, %v1776
        %v2729 = vpack.c.b16 %v1785, %v1777
        %v2730 = vpack.c.b16 %v1786, %v1778
        %v2731 = vpack.c.b16 %v1787, %v1779
        %v2732 = vpack.c.b16 %v1788, %v1780
        %v2733 = vpack.c.b16 %v1789, %v1781
        %v2734 = vpack.c.b16 %v1790, %v1782
        %v2735 = vpack.c.b16 %v1799, %v1791
        %v2736 = vpack.c.b16 %v1800, %v1792
        %v2737 = vpack.c.b16 %v1801, %v1793
        %v2738 = vpack.c.b16 %v1802, %v1794
        %v2739 = vpack.c.b16 %v1803, %v1795
        %v2740 = vpack.c.b16 %v1804, %v1796
        %v2741 = vpack.c.b16 %v1805, %v1797
        %v2742 = vpack.c.b16 %v1806, %v1798
        %v2743 = vpack.c.b16 %v1815, %v1807
        %v2744 = vpack.c.b16 %v1816, %v1808
        %v2745 = vpack.c.b16 %v1817, %v1809
        %v2746 = vpack.c.b16 %v1818, %v1810
        %v2747 = vpack.c.b16 %v1819, %v1811
        %v2748 = vpack.c.b16 %v1820, %v1812
        %v2749 = vpack.c.b16 %v1821, %v1813
        %v2750 = vpack.c.b16 %v1822, %v1814
        %v2751 = vpack.c.b16 %v1831, %v1823
        %v2752 = vpack.c.b16 %v1832, %v1824
        %v2753 = vpack.c.b16 %v1833, %v1825
        %v2754 = vpack.c.b16 %v1834, %v1826
        %v2755 = vpack.c.b16 %v1835, %v1827
        %v2756 = vpack.c.b16 %v1836, %v1828
        %v2757 = vpack.c.b16 %v1837, %v1829
        %v2758 = vpack.c.b16 %v1838, %v1830
        %v2759 = vpack.c.b16 %v1847, %v1839
        %v2760 = vpack.c.b16 %v1848, %v1840
        %v2761 = vpack.c.b16 %v1849, %v1841
        %v2762 = vpack.c.b16 %v1850, %v1842
        %v2763 = vpack.c.b16 %v1851, %v1843
        %v2764 = vpack.c.b16 %v1852, %v1844
        %v2765 = vpack.c.b16 %v1853, %v1845
        %v2766 = vpack.c.b16 %v1854, %v1846
        %v2767 = vpack.c.b16 %v1863, %v1855
        %v2768 = vpack.c.b16 %v1864, %v1856
        %v2769 = vpack.c.b16 %v1865, %v1857
        %v2770 = vpack.c.b16 %v1866, %v1858
        %v2771 = vpack.c.b16 %v1867, %v1859
        %v2772 = vpack.c.b16 %v1868, %v1860
        %v2773 = vpack.c.b16 %v1869, %v1861
        %v2774 = vpack.c.b16 %v1870, %v1862
        %v2775 = vpack.c.b16 %v1879, %v1871
        %v2776 = vpack.c.b16 %v1880, %v1872
        %v2777 = vpack.c.b16 %v1881, %v1873
        %v2778 = vpack.c.b16 %v1882, %v1874
        %v2779 = vpack.c.b16 %v1883, %v1875
        %v2780 = vpack.c.b16 %v1884, %v1876
        %v2781 = vpack.c.b16 %v1885, %v1877
        %v2782 = vpack.c.b16 %v1886, %v1878
        %v2783 = vpack.c.b16 %v1895, %v1887
        %v2784 = vpack.c.b16 %v1896, %v1888
        %v2785 = vpack.c.b16 %v1897, %v1889
        %v2786 = vpack.c.b16 %v1898, %v1890
        %v2787 = vpack.c.b16 %v1899, %v1891
        %v2788 = vpack.c.b16 %v1900, %v1892
        %v2789 = vpack.c.b16 %v1901, %v1893
        %v2790 = vpack.c.b16 %v1902, %v1894
        %v2791 = vpack.c.b16 %v1911, %v1903
        %v2792 = vpack.c.b16 %v1912, %v1904
        %v2793 = vpack.c.b16 %v1913, %v1905
        %v2794 = vpack.c.b16 %v1914, %v1906
        %v2795 = vpack.c.b16 %v1915, %v1907
        %v2796 = vpack.c.b16 %v1916, %v1908
        %v2797 = vpack.c.b16 %v1917, %v1909
        %v2798 = vpack.c.b16 %v1918, %v1910
        %v2799 = vpack.c.b16 %v1927, %v1919
        %v2800 = vpack.c.b16 %v1928, %v1920
        %v2801 = vpack.c.b16 %v1929, %v1921
        %v2802 = vpack.c.b16 %v1930, %v1922
        %v2803 = vpack.c.b16 %v1931, %v1923
        %v2804 = vpack.c.b16 %v1932, %v1924
        %v2805 = vpack.c.b16 %v1933, %v1925
        %v2806 = vpack.c.b16 %v1934, %v1926
        %v2807 = vpack.c.b16 %v1943, %v1935
        %v2808 = vpack.c.b16 %v1944, %v1936
        %v2809 = vpack.c.b16 %v1945, %v1937
        %v2810 = vpack.c.b16 %v1946, %v1938
        %v2811 = vpack.c.b16 %v1947, %v1939
        %v2812 = vpack.c.b16 %v1948, %v1940
        %v2813 = vpack.c.b16 %v1949, %v1941
        %v2814 = vpack.c.b16 %v1950, %v1942
        %v2815 = vpack.c.b16 %v1959, %v1951
        %v2816 = vpack.c.b16 %v1960, %v1952
        %v2817 = vpack.c.b16 %v1961, %v1953
        %v2818 = vpack.c.b16 %v1962, %v1954
        %v2819 = vpack.c.b16 %v1963, %v1955
        %v2820 = vpack.c.b16 %v1964, %v1956
        %v2821 = vpack.c.b16 %v1965, %v1957
        %v2822 = vpack.c.b16 %v1966, %v1958
        %v2823 = vpack.c.b16 %v1975, %v1967
        %v2824 = vpack.c.b16 %v1976, %v1968
        %v2825 = vpack.c.b16 %v1977, %v1969
        %v2826 = vpack.c.b16 %v1978, %v1970
        %v2827 = vpack.c.b16 %v1979, %v1971
        %v2828 = vpack.c.b16 %v1980, %v1972
        %v2829 = vpack.c.b16 %v1981, %v1973
        %v2830 = vpack.c.b16 %v1982, %v1974
        %v2831 = vpack.c.b16 %v1991, %v1983
        %v2832 = vpack.c.b16 %v1992, %v1984
        %v2833 = vpack.c.b16 %v1993, %v1985
        %v2834 = vpack.c.b16 %v1994, %v1986
        %v2835 = vpack.c.b16 %v1995, %v1987
        %v2836 = vpack.c.b16 %v1996, %v1988
        %v2837 = vpack.c.b16 %v1997, %v1989
        %v2838 = vpack.c.b16 %v1998, %v1990
        %v2839 = vpack.c.b16 %v2007, %v1999
        %v2840 = vpack.c.b16 %v2008, %v2000
        %v2841 = vpack.c.b16 %v2009, %v2001
        %v2842 = vpack.c.b16 %v2010, %v2002
        %v2843 = vpack.c.b16 %v2011, %v2003
        %v2844 = vpack.c.b16 %v2012, %v2004
        %v2845 = vpack.c.b16 %v2013, %v2005
        %v2846 = vpack.c.b16 %v2014, %v2006
        %v2847 = vpack.c.b16 %v2023, %v2015
        %v2848 = vpack.c.b16 %v2024, %v2016
        %v2849 = vpack.c.b16 %v2025, %v2017
        %v2850 = vpack.c.b16 %v2026, %v2018
        %v2851 = vpack.c.b16 %v2027, %v2019
        %v2852 = vpack.c.b16 %v2028, %v2020
        %v2853 = vpack.c.b16 %v2029, %v2021
        %v2854 = vpack.c.b16 %v2030, %v2022
        %v2855 = vpack.c.b16 %v2039, %v2031
        %v2856 = vpack.c.b16 %v2040, %v2032
        %v2857 = vpack.c.b16 %v2041, %v2033
        %v2858 = vpack.c.b16 %v2042, %v2034
        %v2859 = vpack.c.b16 %v2043, %v2035
        %v2860 = vpack.c.b16 %v2044, %v2036
        %v2861 = vpack.c.b16 %v2045, %v2037
        %v2862 = vpack.c.b16 %v2046, %v2038
        %v2863 = vpack.c.b16 %v2055, %v2047
        %v2864 = vpack.c.b16 %v2056, %v2048
        %v2865 = vpack.c.b16 %v2057, %v2049
        %v2866 = vpack.c.b16 %v2058, %v2050
        %v2867 = vpack.c.b16 %v2059, %v2051
        %v2868 = vpack.c.b16 %v2060, %v2052
        %v2869 = vpack.c.b16 %v2061, %v2053
        %v2870 = vpack.c.b16 %v2062, %v2054
        %v2871 = vpack.c.b16 %v2071, %v2063
        %v2872 = vpack.c.b16 %v2072, %v2064
        %v2873 = vpack.c.b16 %v2073, %v2065
        %v2874 = vpack.c.b16 %v2074, %v2066
        %v2875 = vpack.c.b16 %v2075, %v2067
        %v2876 = vpack.c.b16 %v2076, %v2068
        %v2877 = vpack.c.b16 %v2077, %v2069
        %v2878 = vpack.c.b16 %v2078, %v2070
        %v2879 = vpack.c.b16 %v2087, %v2079
        %v2880 = vpack.c.b16 %v2088, %v2080
        %v2881 = vpack.c.b16 %v2089, %v2081
        %v2882 = vpack.c.b16 %v2090, %v2082
        %v2883 = vpack.c.b16 %v2091, %v2083
        %v2884 = vpack.c.b16 %v2092, %v2084
        %v2885 = vpack.c.b16 %v2093, %v2085
        %v2886 = vpack.c.b16 %v2094, %v2086
        %v2887 = vpack.c.b16 %v2103, %v2095
        %v2888 = vpack.c.b16 %v2104, %v2096
        %v2889 = vpack.c.b16 %v2105, %v2097
        %v2890 = vpack.c.b16 %v2106, %v2098
        %v2891 = vpack.c.b16 %v2107, %v2099
        %v2892 = vpack.c.b16 %v2108, %v2100
        %v2893 = vpack.c.b16 %v2109, %v2101
        %v2894 = vpack.c.b16 %v2110, %v2102
        %v2895 = vpack.c.b16 %v2119, %v2111
        %v2896 = vpack.c.b16 %v2120, %v2112
        %v2897 = vpack.c.b16 %v2121, %v2113
        %v2898 = vpack.c.b16 %v2122, %v2114
        %v2899 = vpack.c.b16 %v2123, %v2115
        %v2900 = vpack.c.b16 %v2124, %v2116
        %v2901 = vpack.c.b16 %v2125, %v2117
        %v2902 = vpack.c.b16 %v2126, %v2118
        %v2903 = vpack.c.b16 %v2135, %v2127
        %v2904 = vpack.c.b16 %v2136, %v2128
        %v2905 = vpack.c.b16 %v2137, %v2129
        %v2906 = vpack.c.b16 %v2138, %v2130
        %v2907 = vpack.c.b16 %v2139, %v2131
        %v2908 = vpack.c.b16 %v2140, %v2132
        %v2909 = vpack.c.b16 %v2141, %v2133
        %v2910 = vpack.c.b16 %v2142, %v2134
        %v2911 = vpack.c.b16 %v2151, %v2143
        %v2912 = vpack.c.b16 %v2152, %v2144
        %v2913 = vpack.c.b16 %v2153, %v2145
        %v2914 = vpack.c.b16 %v2154, %v2146
        %v2915 = vpack.c.b16 %v2155, %v2147
        %v2916 = vpack.c.b16 %v2156, %v2148
        %v2917 = vpack.c.b16 %v2157, %v2149
        %v2918 = vpack.c.b16 %v2158, %v2150
        %v2919 = vpack.c.b16 %v2167, %v2159
        %v2920 = vpack.c.b16 %v2168, %v2160
        %v2921 = vpack.c.b16 %v2169, %v2161
        %v2922 = vpack.c.b16 %v2170, %v2162
        %v2923 = vpack.c.b16 %v2171, %v2163
        %v2924 = vpack.c.b16 %v2172, %v2164
        %v2925 = vpack.c.b16 %v2173, %v2165
        %v2926 = vpack.c.b16 %v2174, %v2166
        %v2927 = vpack.c.b16 %v2183, %v2175
        %v2928 = vpack.c.b16 %v2184, %v2176
        %v2929 = vpack.c.b16 %v2185, %v2177
        %v2930 = vpack.c.b16 %v2186, %v2178
        %v2931 = vpack.c.b16 %v2187, %v2179
        %v2932 = vpack.c.b16 %v2188, %v2180
        %v2933 = vpack.c.b16 %v2189, %v2181
        %v2934 = vpack.c.b16 %v2190, %v2182
        %v2935 = vpack.c.b16 %v2199, %v2191
        %v2936 = vpack.c.b16 %v2200, %v2192
        %v2937 = vpack.c.b16 %v2201, %v2193
        %v2938 = vpack.c.b16 %v2202, %v2194
        %v2939 = vpack.c.b16 %v2203, %v2195
        %v2940 = vpack.c.b16 %v2204, %v2196
        %v2941 = vpack.c.b16 %v2205, %v2197
        %v2942 = vpack.c.b16 %v2206, %v2198
        %v2943 = vpack.c.b16 %v2215, %v2207
        %v2944 = vpack.c.b16 %v2216, %v2208
        %v2945 = vpack.c.b16 %v2217, %v2209
        %v2946 = vpack.c.b16 %v2218, %v2210
        %v2947 = vpack.c.b16 %v2219, %v2211
        %v2948 = vpack.c.b16 %v2220, %v2212
        %v2949 = vpack.c.b16 %v2221, %v2213
        %v2950 = vpack.c.b16 %v2222, %v2214
        %v2951 = vpack.c.b16 %v2231, %v2223
        %v2952 = vpack.c.b16 %v2232, %v2224
        %v2953 = vpack.c.b16 %v2233, %v2225
        %v2954 = vpack.c.b16 %v2234, %v2226
        %v2955 = vpack.c.b16 %v2235, %v2227
        %v2956 = vpack.c.b16 %v2236, %v2228
        %v2957 = vpack.c.b16 %v2237, %v2229
        %v2958 = vpack.c.b16 %v2238, %v2230
        %v2959 = vpack.c.b16 %v2247, %v2239
        %v2960 = vpack.c.b16 %v2248, %v2240
        %v2961 = vpack.c.b16 %v2249, %v2241
        %v2962 = vpack.c.b16 %v2250, %v2242
        %v2963 = vpack.c.b16 %v2251, %v2243
        %v2964 = vpack.c.b16 %v2252, %v2244
        %v2965 = vpack.c.b16 %v2253, %v2245
        %v2966 = vpack.c.b16 %v2254, %v2246
        %v2967 = vpack.c.b16 %v2263, %v2255
        %v2968 = vpack.c.b16 %v2264, %v2256
        %v2969 = vpack.c.b16 %v2265, %v2257
        %v2970 = vpack.c.b16 %v2266, %v2258
        %v2971 = vpack.c.b16 %v2267, %v2259
        %v2972 = vpack.c.b16 %v2268, %v2260
        %v2973 = vpack.c.b16 %v2269, %v2261
        %v2974 = vpack.c.b16 %v2270, %v2262
        %v2975 = vpack.c.b16 %v2279, %v2271
        %v2976 = vpack.c.b16 %v2280, %v2272
        %v2977 = vpack.c.b16 %v2281, %v2273
        %v2978 = vpack.c.b16 %v2282, %v2274
        %v2979 = vpack.c.b16 %v2283, %v2275
        %v2980 = vpack.c.b16 %v2284, %v2276
        %v2981 = vpack.c.b16 %v2285, %v2277
        %v2982 = vpack.c.b16 %v2286, %v2278
        %v2983 = vpack.c.b16 %v2295, %v2287
        %v2984 = vpack.c.b16 %v2296, %v2288
        %v2985 = vpack.c.b16 %v2297, %v2289
        %v2986 = vpack.c.b16 %v2298, %v2290
        %v2987 = vpack.c.b16 %v2299, %v2291
        %v2988 = vpack.c.b16 %v2300, %v2292
        %v2989 = vpack.c.b16 %v2301, %v2293
        %v2990 = vpack.c.b16 %v2302, %v2294
        %v2991 = vpack.c.b16 %v2311, %v2303
        %v2992 = vpack.c.b16 %v2312, %v2304
        %v2993 = vpack.c.b16 %v2313, %v2305
        %v2994 = vpack.c.b16 %v2314, %v2306
        %v2995 = vpack.c.b16 %v2315, %v2307
        %v2996 = vpack.c.b16 %v2316, %v2308
        %v2997 = vpack.c.b16 %v2317, %v2309
        %v2998 = vpack.c.b16 %v2318, %v2310
        %v2999 = vpack.c.b16 %v2327, %v2319
        %v3000 = vpack.c.b16 %v2328, %v2320
        %v3001 = vpack.c.b16 %v2329, %v2321
        %v3002 = vpack.c.b16 %v2330, %v2322
        %v3003 = vpack.c.b16 %v2331, %v2323
        %v3004 = vpack.c.b16 %v2332, %v2324
        %v3005 = vpack.c.b16 %v2333, %v2325
        %v3006 = vpack.c.b16 %v2334, %v2326
        %v3007 = vpack.c.b16 %v2343, %v2335
        %v3008 = vpack.c.b16 %v2344, %v2336
        %v3009 = vpack.c.b16 %v2345, %v2337
        %v3010 = vpack.c.b16 %v2346, %v2338
        %v3011 = vpack.c.b16 %v2347, %v2339
        %v3012 = vpack.c.b16 %v2348, %v2340
        %v3013 = vpack.c.b16 %v2349, %v2341
        %v3014 = vpack.c.b16 %v2350, %v2342
        %v3015 = vpack.c.b16 %v2359, %v2351
        %v3016 = vpack.c.b16 %v2360, %v2352
        %v3017 = vpack.c.b16 %v2361, %v2353
        %v3018 = vpack.c.b16 %v2362, %v2354
        %v3019 = vpack.c.b16 %v2363, %v2355
        %v3020 = vpack.c.b16 %v2364, %v2356
        %v3021 = vpack.c.b16 %v2365, %v2357
        %v3022 = vpack.c.b16 %v2366, %v2358
        %v3023 = vpack.c.b16 %v2375, %v2367
        %v3024 = vpack.c.b16 %v2376, %v2368
        %v3025 = vpack.c.b16 %v2377, %v2369
        %v3026 = vpack.c.b16 %v2378, %v2370
        %v3027 = vpack.c.b16 %v2379, %v2371
        %v3028 = vpack.c.b16 %v2380, %v2372
        %v3029 = vpack.c.b16 %v2381, %v2373
        %v3030 = vpack.c.b16 %v2382, %v2374
        %v3031 = vpack.c.b16 %v2391, %v2383
        %v3032 = vpack.c.b16 %v2392, %v2384
        %v3033 = vpack.c.b16 %v2393, %v2385
        %v3034 = vpack.c.b16 %v2394, %v2386
        %v3035 = vpack.c.b16 %v2395, %v2387
        %v3036 = vpack.c.b16 %v2396, %v2388
        %v3037 = vpack.c.b16 %v2397, %v2389
        %v3038 = vpack.c.b16 %v2398, %v2390
        %v3039 = vpack.c.b16 %v2407, %v2399
        %v3040 = vpack.c.b16 %v2408, %v2400
        %v3041 = vpack.c.b16 %v2409, %v2401
        %v3042 = vpack.c.b16 %v2410, %v2402
        %v3043 = vpack.c.b16 %v2411, %v2403
        %v3044 = vpack.c.b16 %v2412, %v2404
        %v3045 = vpack.c.b16 %v2413, %v2405
        %v3046 = vpack.c.b16 %v2414, %v2406
        %v3047 = vpack.c.b16 %v2423, %v2415
        %v3048 = vpack.c.b16 %v2424, %v2416
        %v3049 = vpack.c.b16 %v2425, %v2417
        %v3050 = vpack.c.b16 %v2426, %v2418
        %v3051 = vpack.c.b16 %v2427, %v2419
        %v3052 = vpack.c.b16 %v2428, %v2420
        %v3053 = vpack.c.b16 %v2429, %v2421
        %v3054 = vpack.c.b16 %v2430, %v2422
        %v3055 = vpack.c.b16 %v2439, %v2431
        %v3056 = vpack.c.b16 %v2440, %v2432
        %v3057 = vpack.c.b16 %v2441, %v2433
        %v3058 = vpack.c.b16 %v2442, %v2434
        %v3059 = vpack.c.b16 %v2443, %v2435
        %v3060 = vpack.c.b16 %v2444, %v2436
        %v3061 = vpack.c.b16 %v2445, %v2437
        %v3062 = vpack.c.b16 %v2446, %v2438
        %v3063 = vpack.c.b16 %v2455, %v2447
        %v3064 = vpack.c.b16 %v2456, %v2448
        %v3065 = vpack.c.b16 %v2457, %v2449
        %v3066 = vpack.c.b16 %v2458, %v2450
        %v3067 = vpack.c.b16 %v2459, %v2451
        %v3068 = vpack.c.b16 %v2460, %v2452
        %v3069 = vpack.c.b16 %v2461, %v2453
        %v3070 = vpack.c.b16 %v2462, %v2454
        %v3071 = vpack.c.b16 %v2471, %v2463
        %v3072 = vpack.c.b16 %v2472, %v2464
        %v3073 = vpack.c.b16 %v2473, %v2465
        %v3074 = vpack.c.b16 %v2474, %v2466
        %v3075 = vpack.c.b16 %v2475, %v2467
        %v3076 = vpack.c.b16 %v2476, %v2468
        %v3077 = vpack.c.b16 %v2477, %v2469
        %v3078 = vpack.c.b16 %v2478, %v2470
        %v3079 = vpack.c.b16 %v2487, %v2479
        %v3080 = vpack.c.b16 %v2488, %v2480
        %v3081 = vpack.c.b16 %v2489, %v2481
        %v3082 = vpack.c.b16 %v2490, %v2482
        %v3083 = vpack.c.b16 %v2491, %v2483
        %v3084 = vpack.c.b16 %v2492, %v2484
        %v3085 = vpack.c.b16 %v2493, %v2485
        %v3086 = vpack.c.b16 %v2494, %v2486
        %v3087 = vpack.c.b16 %v2503, %v2495
        %v3088 = vpack.c.b16 %v2504, %v2496
        %v3089 = vpack.c.b16 %v2505, %v2497
        %v3090 = vpack.c.b16 %v2506, %v2498
        %v3091 = vpack.c.b16 %v2507, %v2499
        %v3092 = vpack.c.b16 %v2508, %v2500
        %v3093 = vpack.c.b16 %v2509, %v2501
        %v3094 = vpack.c.b16 %v2510, %v2502
        %v3095 = vpack.c.b16 %v2519, %v2511
        %v3096 = vpack.c.b16 %v2520, %v2512
        %v3097 = vpack.c.b16 %v2521, %v2513
        %v3098 = vpack.c.b16 %v2522, %v2514
        %v3099 = vpack.c.b16 %v2523, %v2515
        %v3100 = vpack.c.b16 %v2524, %v2516
        %v3101 = vpack.c.b16 %v2525, %v2517
        %v3102 = vpack.c.b16 %v2526, %v2518
        %v3103 = vpack.c.b16 %v2535, %v2527
        %v3104 = vpack.c.b16 %v2536, %v2528
        %v3105 = vpack.c.b16 %v2537, %v2529
        %v3106 = vpack.c.b16 %v2538, %v2530
        %v3107 = vpack.c.b16 %v2539, %v2531
        %v3108 = vpack.c.b16 %v2540, %v2532
        %v3109 = vpack.c.b16 %v2541, %v2533
        %v3110 = vpack.c.b16 %v2542, %v2534
        %v3111 = vpack.c.b16 %v2551, %v2543
        %v3112 = vpack.c.b16 %v2552, %v2544
        %v3113 = vpack.c.b16 %v2553, %v2545
        %v3114 = vpack.c.b16 %v2554, %v2546
        %v3115 = vpack.c.b16 %v2555, %v2547
        %v3116 = vpack.c.b16 %v2556, %v2548
        %v3117 = vpack.c.b16 %v2557, %v2549
        %v3118 = vpack.c.b16 %v2558, %v2550
        %v3119 = vpack.c.b16 %v2567, %v2559
        %v3120 = vpack.c.b16 %v2568, %v2560
        %v3121 = vpack.c.b16 %v2569, %v2561
        %v3122 = vpack.c.b16 %v2570, %v2562
        %v3123 = vpack.c.b16 %v2571, %v2563
        %v3124 = vpack.c.b16 %v2572, %v2564
        %v3125 = vpack.c.b16 %v2573, %v2565
        %v3126 = vpack.c.b16 %v2574, %v2566
        %v3127 = vpack.c.b16 %v2583, %v2575
        %v3128 = vpack.c.b16 %v2584, %v2576
        %v3129 = vpack.c.b16 %v2585, %v2577
        %v3130 = vpack.c.b16 %v2586, %v2578
        %v3131 = vpack.c.b16 %v2587, %v2579
        %v3132 = vpack.c.b16 %v2588, %v2580
        %v3133 = vpack.c.b16 %v2589, %v2581
        %v3134 = vpack.c.b16 %v2590, %v2582
        %v3135 = vpack.c.b16 %v2599, %v2591
        %v3136 = vpack.c.b16 %v2600, %v2592
        %v3137 = vpack.c.b16 %v2601, %v2593
        %v3138 = vpack.c.b16 %v2602, %v2594
        %v3139 = vpack.c.b16 %v2603, %v2595
        %v3140 = vpack.c.b16 %v2604, %v2596
        %v3141 = vpack.c.b16 %v2605, %v2597
        %v3142 = vpack.c.b16 %v2606, %v2598
        %v3143 = vpack.c.b16 %v2615, %v2607
        %v3144 = vpack.c.b16 %v2616, %v2608
        %v3145 = vpack.c.b16 %v2617, %v2609
        %v3146 = vpack.c.b16 %v2618, %v2610
        %v3147 = vpack.c.b16 %v2619, %v2611
        %v3148 = vpack.c.b16 %v2620, %v2612
        %v3149 = vpack.c.b16 %v2621, %v2613
        %v3150 = vpack.c.b16 %v2622, %v2614
        %v3151 = vpack.c.b16 %v2631, %v2623
        %v3152 = vpack.c.b16 %v2632, %v2624
        %v3153 = vpack.c.b16 %v2633, %v2625
        %v3154 = vpack.c.b16 %v2634, %v2626
        %v3155 = vpack.c.b16 %v2635, %v2627
        %v3156 = vpack.c.b16 %v2636, %v2628
        %v3157 = vpack.c.b16 %v2637, %v2629
        %v3158 = vpack.c.b16 %v2638, %v2630
        %v3159 = vpack.c.b16 %v2647, %v2639
        %v3160 = vpack.c.b16 %v2648, %v2640
        %v3161 = vpack.c.b16 %v2649, %v2641
        %v3162 = vpack.c.b16 %v2650, %v2642
        %v3163 = vpack.c.b16 %v2651, %v2643
        %v3164 = vpack.c.b16 %v2652, %v2644
        %v3165 = vpack.c.b16 %v2653, %v2645
        %v3166 = vpack.c.b16 %v2654, %v2646
        %3679 = vmatprep.subr.bf16.mxu0 %v2656
        %3680 = vmatpush1.bf16.msra.mxu0 %v2655
        %3681 = vmatprep.subr.bf16.mxu0 %v2664
        %3682 = vmatpush1.bf16.msra.mxu0 %v2663
        %3683 = vmatprep.subr.bf16.mxu0 %v2672
        %3684 = vmatpush1.bf16.msra.mxu0 %v2671
        %3685 = vmatprep.subr.bf16.mxu0 %v2680
        %3686 = vmatpush1.bf16.msra.mxu0 %v2679
        %3687 = vmatprep.subr.bf16.mxu0 %v2688
        %3688 = vmatpush1.bf16.msra.mxu0 %v2687
        %3689 = vmatprep.subr.bf16.mxu0 %v2696
        %3690 = vmatpush1.bf16.msra.mxu0 %v2695
        %3691 = vmatprep.subr.bf16.mxu0 %v2704
        %3692 = vmatpush1.bf16.msra.mxu0 %v2703
        %3693 = vmatprep.subr.bf16.mxu0 %v2712
        %3694 = vmatpush1.bf16.msra.mxu0 %v2711
        %3695 = vmatprep.subr.bf16.mxu0 %v2720
        %3696 = vmatpush1.bf16.msra.mxu0 %v2719
        %3697 = vmatprep.subr.bf16.mxu0 %v2728
        %3698 = vmatpush1.bf16.msra.mxu0 %v2727
        %3699 = vmatprep.subr.bf16.mxu0 %v2736
        %3700 = vmatpush1.bf16.msra.mxu0 %v2735
        %3701 = vmatprep.subr.bf16.mxu0 %v2744
        %3702 = vmatpush1.bf16.msra.mxu0 %v2743
        %3703 = vmatprep.subr.bf16.mxu0 %v2752
        %3704 = vmatpush1.bf16.msra.mxu0 %v2751
        %3705 = vmatprep.subr.bf16.mxu0 %v2760
        %3706 = vmatpush1.bf16.msra.mxu0 %v2759
        %3707 = vmatprep.subr.bf16.mxu0 %v2768
        %3708 = vmatpush1.bf16.msra.mxu0 %v2767
        %3709 = vmatprep.subr.bf16.mxu0 %v2776
        %3710 = vmatpush1.bf16.msra.mxu0 %v2775
        %3711 = vmatprep.mubr.bf16.mxu0 %v1104
        %3712 = vmatmul.mubr.bf16.gmra.mrb[0].mxu0 %v1103
        %v3713 = vpop.f32.mrb[0].mxu0
        %v3714 = vadd.f32 %v1042, %v3713
        %v3715 = vpop.f32.mrb[0].mxu0
        %v3716 = vadd.f32 %v1046, %v3715
        %v3717 = vpop.f32.mrb[0].mxu0
        %v3718 = vadd.f32 %v1042, %v3717
        %v3719 = vpop.f32.mrb[0].mxu0
        %v3720 = vadd.f32 %v1046, %v3719
        %3721 = vdwg.mxu0
        %3722 = vmatprep.subr.bf16.mxu0 %v2784
        %3723 = vmatpush1.bf16.msra.mxu0 %v2783
        %3724 = vmatprep.subr.bf16.mxu0 %v2792
        %3725 = vmatpush1.bf16.msra.mxu0 %v2791
        %3726 = vmatprep.subr.bf16.mxu0 %v2800
        %3727 = vmatpush1.bf16.msra.mxu0 %v2799
        %3728 = vmatprep.subr.bf16.mxu0 %v2808
        %3729 = vmatpush1.bf16.msra.mxu0 %v2807
        %3730 = vmatprep.subr.bf16.mxu0 %v2816
        %3731 = vmatpush1.bf16.msra.mxu0 %v2815
        %3732 = vmatprep.subr.bf16.mxu0 %v2824
        %3733 = vmatpush1.bf16.msra.mxu0 %v2823
        %3734 = vmatprep.subr.bf16.mxu0 %v2832
        %3735 = vmatpush1.bf16.msra.mxu0 %v2831
        %3736 = vmatprep.subr.bf16.mxu0 %v2840
        %3737 = vmatpush1.bf16.msra.mxu0 %v2839
        %3738 = vmatprep.subr.bf16.mxu0 %v2848
        %3739 = vmatpush1.bf16.msra.mxu0 %v2847
        %3740 = vmatprep.subr.bf16.mxu0 %v2856
        %3741 = vmatpush1.bf16.msra.mxu0 %v2855
        %3742 = vmatprep.subr.bf16.mxu0 %v2864
        %3743 = vmatpush1.bf16.msra.mxu0 %v2863
        %3744 = vmatprep.subr.bf16.mxu0 %v2872
        %3745 = vmatpush1.bf16.msra.mxu0 %v2871
        %3746 = vmatprep.subr.bf16.mxu0 %v2880
        %3747 = vmatpush1.bf16.msra.mxu0 %v2879
        %3748 = vmatprep.subr.bf16.mxu0 %v2888
        %3749 = vmatpush1.bf16.msra.mxu0 %v2887
        %3750 = vmatprep.subr.bf16.mxu0 %v2896
        %3751 = vmatpush1.bf16.msra.mxu0 %v2895
        %3752 = vmatprep.subr.bf16.mxu0 %v2904
        %3753 = vmatpush1.bf16.msra.mxu0 %v2903
        %3754 = vmatprep.mubr.bf16.mxu0 %v1106
        %3755 = vmatmul.mubr.bf16.gmra.mrb[0].mxu0 %v1105
        %v3756 = vpop.f32.mrb[0].mxu0
        %v3757 = vadd.f32 %v3714, %v3756
        %v3758 = vpop.f32.mrb[0].mxu0
        %v3759 = vadd.f32 %v3716, %v3758
        %v3760 = vpop.f32.mrb[0].mxu0
        %v3761 = vadd.f32 %v3718, %v3760
        %v3762 = vpop.f32.mrb[0].mxu0
        %v3763 = vadd.f32 %v3720, %v3762
        %3764 = vdwg.mxu0
        %3765 = vmatprep.subr.bf16.mxu0 %v2912
        %3766 = vmatpush1.bf16.msra.mxu0 %v2911
        %3767 = vmatprep.subr.bf16.mxu0 %v2920
        %3768 = vmatpush1.bf16.msra.mxu0 %v2919
        %3769 = vmatprep.subr.bf16.mxu0 %v2928
        %3770 = vmatpush1.bf16.msra.mxu0 %v2927
        %3771 = vmatprep.subr.bf16.mxu0 %v2936
        %3772 = vmatpush1.bf16.msra.mxu0 %v2935
        %3773 = vmatprep.subr.bf16.mxu0 %v2944
        %3774 = vmatpush1.bf16.msra.mxu0 %v2943
        %3775 = vmatprep.subr.bf16.mxu0 %v2952
        %3776 = vmatpush1.bf16.msra.mxu0 %v2951
        %3777 = vmatprep.subr.bf16.mxu0 %v2960
        %3778 = vmatpush1.bf16.msra.mxu0 %v2959
        %3779 = vmatprep.subr.bf16.mxu0 %v2968
        %3780 = vmatpush1.bf16.msra.mxu0 %v2967
        %3781 = vmatprep.subr.bf16.mxu0 %v2976
        %3782 = vmatpush1.bf16.msra.mxu0 %v2975
        %3783 = vmatprep.subr.bf16.mxu0 %v2984
        %3784 = vmatpush1.bf16.msra.mxu0 %v2983
        %3785 = vmatprep.subr.bf16.mxu0 %v2992
        %3786 = vmatpush1.bf16.msra.mxu0 %v2991
        %3787 = vmatprep.subr.bf16.mxu0 %v3000
        %3788 = vmatpush1.bf16.msra.mxu0 %v2999
        %3789 = vmatprep.subr.bf16.mxu0 %v3008
        %3790 = vmatpush1.bf16.msra.mxu0 %v3007
        %3791 = vmatprep.subr.bf16.mxu0 %v3016
        %3792 = vmatpush1.bf16.msra.mxu0 %v3015
        %3793 = vmatprep.subr.bf16.mxu0 %v3024
        %3794 = vmatpush1.bf16.msra.mxu0 %v3023
        %3795 = vmatprep.subr.bf16.mxu0 %v3032
        %3796 = vmatpush1.bf16.msra.mxu0 %v3031
        %3797 = vmatprep.mubr.bf16.mxu0 %v1108
        %3798 = vmatmul.mubr.bf16.gmra.mrb[0].mxu0 %v1107
        %v3799 = vpop.f32.mrb[0].mxu0
        %v3800 = vadd.f32 %v3757, %v3799
        %v3801 = vpop.f32.mrb[0].mxu0
        %v3802 = vadd.f32 %v3759, %v3801
        %v3803 = vpop.f32.mrb[0].mxu0
        %v3804 = vadd.f32 %v3761, %v3803
        %v3805 = vpop.f32.mrb[0].mxu0
        %v3806 = vadd.f32 %v3763, %v3805
        %3807 = vdwg.mxu0
        %3808 = vmatprep.subr.bf16.mxu0 %v3040
        %3809 = vmatpush1.bf16.msra.mxu0 %v3039
        %3810 = vmatprep.subr.bf16.mxu0 %v3048
        %3811 = vmatpush1.bf16.msra.mxu0 %v3047
        %3812 = vmatprep.subr.bf16.mxu0 %v3056
        %3813 = vmatpush1.bf16.msra.mxu0 %v3055
        %3814 = vmatprep.subr.bf16.mxu0 %v3064
        %3815 = vmatpush1.bf16.msra.mxu0 %v3063
        %3816 = vmatprep.subr.bf16.mxu0 %v3072
        %3817 = vmatpush1.bf16.msra.mxu0 %v3071
        %3818 = vmatprep.subr.bf16.mxu0 %v3080
        %3819 = vmatpush1.bf16.msra.mxu0 %v3079
        %3820 = vmatprep.subr.bf16.mxu0 %v3088
        %3821 = vmatpush1.bf16.msra.mxu0 %v3087
        %3822 = vmatprep.subr.bf16.mxu0 %v3096
        %3823 = vmatpush1.bf16.msra.mxu0 %v3095
        %3824 = vmatprep.subr.bf16.mxu0 %v3104
        %3825 = vmatpush1.bf16.msra.mxu0 %v3103
        %3826 = vmatprep.subr.bf16.mxu0 %v3112
        %3827 = vmatpush1.bf16.msra.mxu0 %v3111
        %3828 = vmatprep.subr.bf16.mxu0 %v3120
        %3829 = vmatpush1.bf16.msra.mxu0 %v3119
        %3830 = vmatprep.subr.bf16.mxu0 %v3128
        %3831 = vmatpush1.bf16.msra.mxu0 %v3127
        %3832 = vmatprep.subr.bf16.mxu0 %v3136
        %3833 = vmatpush1.bf16.msra.mxu0 %v3135
        %3834 = vmatprep.subr.bf16.mxu0 %v3144
        %3835 = vmatpush1.bf16.msra.mxu0 %v3143
        %3836 = vmatprep.subr.bf16.mxu0 %v3152
        %3837 = vmatpush1.bf16.msra.mxu0 %v3151
        %3838 = vmatprep.subr.bf16.mxu0 %v3160
        %3839 = vmatpush1.bf16.msra.mxu0 %v3159
        %3840 = vmatprep.mubr.bf16.mxu0 %v1110
        %3841 = vmatmul.mubr.bf16.gmra.mrb[0].mxu0 %v1109
        %v3842 = vpop.f32.mrb[0].mxu0
        %v3843 = vadd.f32 %v3800, %v3842
        %v3844 = vpop.f32.mrb[0].mxu0
        %v3845 = vadd.f32 %v3802, %v3844
        %v3846 = vpop.f32.mrb[0].mxu0
        %v3847 = vadd.f32 %v3804, %v3846
        %v3848 = vpop.f32.mrb[0].mxu0
        %v3849 = vadd.f32 %v3806, %v3848
        %3850 = vdwg.mxu0
        %3851 = vmatprep.subr.bf16.mxu0 %v2658
        %3852 = vmatpush1.bf16.msra.mxu0 %v2657
        %3853 = vmatprep.subr.bf16.mxu0 %v2666
        %3854 = vmatpush1.bf16.msra.mxu0 %v2665
        %3855 = vmatprep.subr.bf16.mxu0 %v2674
        %3856 = vmatpush1.bf16.msra.mxu0 %v2673
        %3857 = vmatprep.subr.bf16.mxu0 %v2682
        %3858 = vmatpush1.bf16.msra.mxu0 %v2681
        %3859 = vmatprep.subr.bf16.mxu0 %v2690
        %3860 = vmatpush1.bf16.msra.mxu0 %v2689
        %3861 = vmatprep.subr.bf16.mxu0 %v2698
        %3862 = vmatpush1.bf16.msra.mxu0 %v2697
        %3863 = vmatprep.subr.bf16.mxu0 %v2706
        %3864 = vmatpush1.bf16.msra.mxu0 %v2705
        %3865 = vmatprep.subr.bf16.mxu0 %v2714
        %3866 = vmatpush1.bf16.msra.mxu0 %v2713
        %3867 = vmatprep.subr.bf16.mxu0 %v2722
        %3868 = vmatpush1.bf16.msra.mxu0 %v2721
        %3869 = vmatprep.subr.bf16.mxu0 %v2730
        %3870 = vmatpush1.bf16.msra.mxu0 %v2729
        %3871 = vmatprep.subr.bf16.mxu0 %v2738
        %3872 = vmatpush1.bf16.msra.mxu0 %v2737
        %3873 = vmatprep.subr.bf16.mxu0 %v2746
        %3874 = vmatpush1.bf16.msra.mxu0 %v2745
        %3875 = vmatprep.subr.bf16.mxu0 %v2754
        %3876 = vmatpush1.bf16.msra.mxu0 %v2753
        %3877 = vmatprep.subr.bf16.mxu0 %v2762
        %3878 = vmatpush1.bf16.msra.mxu0 %v2761
        %3879 = vmatprep.subr.bf16.mxu0 %v2770
        %3880 = vmatpush1.bf16.msra.mxu0 %v2769
        %3881 = vmatprep.subr.bf16.mxu0 %v2778
        %3882 = vmatpush1.bf16.msra.mxu0 %v2777
        %3883 = vmatprep.mubr.bf16.mxu0 %v1104
        %3884 = vmatmul.mubr.bf16.gmra.mrb[0].mxu0 %v1103
        %v3885 = vpop.f32.mrb[0].mxu0
        %v3886 = vadd.f32 %v1050, %v3885
        %v3887 = vpop.f32.mrb[0].mxu0
        %v3888 = vadd.f32 %v1054, %v3887
        %v3889 = vpop.f32.mrb[0].mxu0
        %v3890 = vadd.f32 %v1050, %v3889
        %v3891 = vpop.f32.mrb[0].mxu0
        %v3892 = vadd.f32 %v1054, %v3891
        %3893 = vdwg.mxu0
        %3894 = vmatprep.subr.bf16.mxu0 %v2786
        %3895 = vmatpush1.bf16.msra.mxu0 %v2785
        %3896 = vmatprep.subr.bf16.mxu0 %v2794
        %3897 = vmatpush1.bf16.msra.mxu0 %v2793
        %3898 = vmatprep.subr.bf16.mxu0 %v2802
        %3899 = vmatpush1.bf16.msra.mxu0 %v2801
        %3900 = vmatprep.subr.bf16.mxu0 %v2810
        %3901 = vmatpush1.bf16.msra.mxu0 %v2809
        %3902 = vmatprep.subr.bf16.mxu0 %v2818
        %3903 = vmatpush1.bf16.msra.mxu0 %v2817
        %3904 = vmatprep.subr.bf16.mxu0 %v2826
        %3905 = vmatpush1.bf16.msra.mxu0 %v2825
        %3906 = vmatprep.subr.bf16.mxu0 %v2834
        %3907 = vmatpush1.bf16.msra.mxu0 %v2833
        %3908 = vmatprep.subr.bf16.mxu0 %v2842
        %3909 = vmatpush1.bf16.msra.mxu0 %v2841
        %3910 = vmatprep.subr.bf16.mxu0 %v2850
        %3911 = vmatpush1.bf16.msra.mxu0 %v2849
        %3912 = vmatprep.subr.bf16.mxu0 %v2858
        %3913 = vmatpush1.bf16.msra.mxu0 %v2857
        %3914 = vmatprep.subr.bf16.mxu0 %v2866
        %3915 = vmatpush1.bf16.msra.mxu0 %v2865
        %3916 = vmatprep.subr.bf16.mxu0 %v2874
        %3917 = vmatpush1.bf16.msra.mxu0 %v2873
        %3918 = vmatprep.subr.bf16.mxu0 %v2882
        %3919 = vmatpush1.bf16.msra.mxu0 %v2881
        %3920 = vmatprep.subr.bf16.mxu0 %v2890
        %3921 = vmatpush1.bf16.msra.mxu0 %v2889
        %3922 = vmatprep.subr.bf16.mxu0 %v2898
        %3923 = vmatpush1.bf16.msra.mxu0 %v2897
        %3924 = vmatprep.subr.bf16.mxu0 %v2906
        %3925 = vmatpush1.bf16.msra.mxu0 %v2905
        %3926 = vmatprep.mubr.bf16.mxu0 %v1106
        %3927 = vmatmul.mubr.bf16.gmra.mrb[0].mxu0 %v1105
        %v3928 = vpop.f32.mrb[0].mxu0
        %v3929 = vadd.f32 %v3886, %v3928
        %v3930 = vpop.f32.mrb[0].mxu0
        %v3931 = vadd.f32 %v3888, %v3930
        %v3932 = vpop.f32.mrb[0].mxu0
        %v3933 = vadd.f32 %v3890, %v3932
        %v3934 = vpop.f32.mrb[0].mxu0
        %v3935 = vadd.f32 %v3892, %v3934
        %3936 = vdwg.mxu0
        %3937 = vmatprep.subr.bf16.mxu0 %v2914
        %3938 = vmatpush1.bf16.msra.mxu0 %v2913
        %3939 = vmatprep.subr.bf16.mxu0 %v2922
        %3940 = vmatpush1.bf16.msra.mxu0 %v2921
        %3941 = vmatprep.subr.bf16.mxu0 %v2930
        %3942 = vmatpush1.bf16.msra.mxu0 %v2929
        %3943 = vmatprep.subr.bf16.mxu0 %v2938
        %3944 = vmatpush1.bf16.msra.mxu0 %v2937
        %3945 = vmatprep.subr.bf16.mxu0 %v2946
        %3946 = vmatpush1.bf16.msra.mxu0 %v2945
        %3947 = vmatprep.subr.bf16.mxu0 %v2954
        %3948 = vmatpush1.bf16.msra.mxu0 %v2953
        %3949 = vmatprep.subr.bf16.mxu0 %v2962
        %3950 = vmatpush1.bf16.msra.mxu0 %v2961
        %3951 = vmatprep.subr.bf16.mxu0 %v2970
        %3952 = vmatpush1.bf16.msra.mxu0 %v2969
        %3953 = vmatprep.subr.bf16.mxu0 %v2978
        %3954 = vmatpush1.bf16.msra.mxu0 %v2977
        %3955 = vmatprep.subr.bf16.mxu0 %v2986
        %3956 = vmatpush1.bf16.msra.mxu0 %v2985
        %3957 = vmatprep.subr.bf16.mxu0 %v2994
        %3958 = vmatpush1.bf16.msra.mxu0 %v2993
        %3959 = vmatprep.subr.bf16.mxu0 %v3002
        %3960 = vmatpush1.bf16.msra.mxu0 %v3001
        %3961 = vmatprep.subr.bf16.mxu0 %v3010
        %3962 = vmatpush1.bf16.msra.mxu0 %v3009
        %3963 = vmatprep.subr.bf16.mxu0 %v3018
        %3964 = vmatpush1.bf16.msra.mxu0 %v3017
        %3965 = vmatprep.subr.bf16.mxu0 %v3026
        %3966 = vmatpush1.bf16.msra.mxu0 %v3025
        %3967 = vmatprep.subr.bf16.mxu0 %v3034
        %3968 = vmatpush1.bf16.msra.mxu0 %v3033
        %3969 = vmatprep.mubr.bf16.mxu0 %v1108
        %3970 = vmatmul.mubr.bf16.gmra.mrb[0].mxu0 %v1107
        %v3971 = vpop.f32.mrb[0].mxu0
        %v3972 = vadd.f32 %v3929, %v3971
        %v3973 = vpop.f32.mrb[0].mxu0
        %v3974 = vadd.f32 %v3931, %v3973
        %v3975 = vpop.f32.mrb[0].mxu0
        %v3976 = vadd.f32 %v3933, %v3975
        %v3977 = vpop.f32.mrb[0].mxu0
        %v3978 = vadd.f32 %v3935, %v3977
        %3979 = vdwg.mxu0
        %3980 = vmatprep.subr.bf16.mxu0 %v3042
        %3981 = vmatpush1.bf16.msra.mxu0 %v3041
        %3982 = vmatprep.subr.bf16.mxu0 %v3050
        %3983 = vmatpush1.bf16.msra.mxu0 %v3049
        %3984 = vmatprep.subr.bf16.mxu0 %v3058
        %3985 = vmatpush1.bf16.msra.mxu0 %v3057
        %3986 = vmatprep.subr.bf16.mxu0 %v3066
        %3987 = vmatpush1.bf16.msra.mxu0 %v3065
        %3988 = vmatprep.subr.bf16.mxu0 %v3074
        %3989 = vmatpush1.bf16.msra.mxu0 %v3073
        %3990 = vmatprep.subr.bf16.mxu0 %v3082
        %3991 = vmatpush1.bf16.msra.mxu0 %v3081
        %3992 = vmatprep.subr.bf16.mxu0 %v3090
        %3993 = vmatpush1.bf16.msra.mxu0 %v3089
        %3994 = vmatprep.subr.bf16.mxu0 %v3098
        %3995 = vmatpush1.bf16.msra.mxu0 %v3097
        %3996 = vmatprep.subr.bf16.mxu0 %v3106
        %3997 = vmatpush1.bf16.msra.mxu0 %v3105
        %3998 = vmatprep.subr.bf16.mxu0 %v3114
        %3999 = vmatpush1.bf16.msra.mxu0 %v3113
        %4000 = vmatprep.subr.bf16.mxu0 %v3122
        %4001 = vmatpush1.bf16.msra.mxu0 %v3121
        %4002 = vmatprep.subr.bf16.mxu0 %v3130
        %4003 = vmatpush1.bf16.msra.mxu0 %v3129
        %4004 = vmatprep.subr.bf16.mxu0 %v3138
        %4005 = vmatpush1.bf16.msra.mxu0 %v3137
        %4006 = vmatprep.subr.bf16.mxu0 %v3146
        %4007 = vmatpush1.bf16.msra.mxu0 %v3145
        %4008 = vmatprep.subr.bf16.mxu0 %v3154
        %4009 = vmatpush1.bf16.msra.mxu0 %v3153
        %4010 = vmatprep.subr.bf16.mxu0 %v3162
        %4011 = vmatpush1.bf16.msra.mxu0 %v3161
        %4012 = vmatprep.mubr.bf16.mxu0 %v1110
        %4013 = vmatmul.mubr.bf16.gmra.mrb[0].mxu0 %v1109
        %v4014 = vpop.f32.mrb[0].mxu0
        %v4015 = vadd.f32 %v3972, %v4014
        %v4016 = vpop.f32.mrb[0].mxu0
        %v4017 = vadd.f32 %v3974, %v4016
        %v4018 = vpop.f32.mrb[0].mxu0
        %v4019 = vadd.f32 %v3976, %v4018
        %v4020 = vpop.f32.mrb[0].mxu0
        %v4021 = vadd.f32 %v3978, %v4020
        %4022 = vdwg.mxu0
        %4023 = vmatprep.subr.bf16.mxu0 %v2660
        %4024 = vmatpush1.bf16.msra.mxu0 %v2659
        %4025 = vmatprep.subr.bf16.mxu0 %v2668
        %4026 = vmatpush1.bf16.msra.mxu0 %v2667
        %4027 = vmatprep.subr.bf16.mxu0 %v2676
        %4028 = vmatpush1.bf16.msra.mxu0 %v2675
        %4029 = vmatprep.subr.bf16.mxu0 %v2684
        %4030 = vmatpush1.bf16.msra.mxu0 %v2683
        %4031 = vmatprep.subr.bf16.mxu0 %v2692
        %4032 = vmatpush1.bf16.msra.mxu0 %v2691
        %4033 = vmatprep.subr.bf16.mxu0 %v2700
        %4034 = vmatpush1.bf16.msra.mxu0 %v2699
        %4035 = vmatprep.subr.bf16.mxu0 %v2708
        %4036 = vmatpush1.bf16.msra.mxu0 %v2707
        %4037 = vmatprep.subr.bf16.mxu0 %v2716
        %4038 = vmatpush1.bf16.msra.mxu0 %v2715
        %4039 = vmatprep.subr.bf16.mxu0 %v2724
        %4040 = vmatpush1.bf16.msra.mxu0 %v2723
        %4041 = vmatprep.subr.bf16.mxu0 %v2732
        %4042 = vmatpush1.bf16.msra.mxu0 %v2731
        %4043 = vmatprep.subr.bf16.mxu0 %v2740
        %4044 = vmatpush1.bf16.msra.mxu0 %v2739
        %4045 = vmatprep.subr.bf16.mxu0 %v2748
        %4046 = vmatpush1.bf16.msra.mxu0 %v2747
        %4047 = vmatprep.subr.bf16.mxu0 %v2756
        %4048 = vmatpush1.bf16.msra.mxu0 %v2755
        %4049 = vmatprep.subr.bf16.mxu0 %v2764
        %4050 = vmatpush1.bf16.msra.mxu0 %v2763
        %4051 = vmatprep.subr.bf16.mxu0 %v2772
        %4052 = vmatpush1.bf16.msra.mxu0 %v2771
        %4053 = vmatprep.subr.bf16.mxu0 %v2780
        %4054 = vmatpush1.bf16.msra.mxu0 %v2779
        %4055 = vmatprep.mubr.bf16.mxu0 %v1104
        %4056 = vmatmul.mubr.bf16.gmra.mrb[0].mxu0 %v1103
        %v4057 = vpop.f32.mrb[0].mxu0
        %v4058 = vadd.f32 %v1058, %v4057
        %v4059 = vpop.f32.mrb[0].mxu0
        %v4060 = vadd.f32 %v1062, %v4059
        %v4061 = vpop.f32.mrb[0].mxu0
        %v4062 = vadd.f32 %v1058, %v4061
        %v4063 = vpop.f32.mrb[0].mxu0
        %v4064 = vadd.f32 %v1062, %v4063
        %4065 = vdwg.mxu0
        %4066 = vmatprep.subr.bf16.mxu0 %v2788
        %4067 = vmatpush1.bf16.msra.mxu0 %v2787
        %4068 = vmatprep.subr.bf16.mxu0 %v2796
        %4069 = vmatpush1.bf16.msra.mxu0 %v2795
        %4070 = vmatprep.subr.bf16.mxu0 %v2804
        %4071 = vmatpush1.bf16.msra.mxu0 %v2803
        %4072 = vmatprep.subr.bf16.mxu0 %v2812
        %4073 = vmatpush1.bf16.msra.mxu0 %v2811
        %4074 = vmatprep.subr.bf16.mxu0 %v2820
        %4075 = vmatpush1.bf16.msra.mxu0 %v2819
        %4076 = vmatprep.subr.bf16.mxu0 %v2828
        %4077 = vmatpush1.bf16.msra.mxu0 %v2827
        %4078 = vmatprep.subr.bf16.mxu0 %v2836
        %4079 = vmatpush1.bf16.msra.mxu0 %v2835
        %4080 = vmatprep.subr.bf16.mxu0 %v2844
        %4081 = vmatpush1.bf16.msra.mxu0 %v2843
        %4082 = vmatprep.subr.bf16.mxu0 %v2852
        %4083 = vmatpush1.bf16.msra.mxu0 %v2851
        %4084 = vmatprep.subr.bf16.mxu0 %v2860
        %4085 = vmatpush1.bf16.msra.mxu0 %v2859
        %4086 = vmatprep.subr.bf16.mxu0 %v2868
        %4087 = vmatpush1.bf16.msra.mxu0 %v2867
        %4088 = vmatprep.subr.bf16.mxu0 %v2876
        %4089 = vmatpush1.bf16.msra.mxu0 %v2875
        %4090 = vmatprep.subr.bf16.mxu0 %v2884
        %4091 = vmatpush1.bf16.msra.mxu0 %v2883
        %4092 = vmatprep.subr.bf16.mxu0 %v2892
        %4093 = vmatpush1.bf16.msra.mxu0 %v2891
        %4094 = vmatprep.subr.bf16.mxu0 %v2900
        %4095 = vmatpush1.bf16.msra.mxu0 %v2899
        %4096 = vmatprep.subr.bf16.mxu0 %v2908
        %4097 = vmatpush1.bf16.msra.mxu0 %v2907
        %4098 = vmatprep.mubr.bf16.mxu0 %v1106
        %4099 = vmatmul.mubr.bf16.gmra.mrb[0].mxu0 %v1105
        %v4100 = vpop.f32.mrb[0].mxu0
        %v4101 = vadd.f32 %v4058, %v4100
        %v4102 = vpop.f32.mrb[0].mxu0
        %v4103 = vadd.f32 %v4060, %v4102
        %v4104 = vpop.f32.mrb[0].mxu0
        %v4105 = vadd.f32 %v4062, %v4104
        %v4106 = vpop.f32.mrb[0].mxu0
        %v4107 = vadd.f32 %v4064, %v4106
        %4108 = vdwg.mxu0
        %4109 = vmatprep.subr.bf16.mxu0 %v2916
        %4110 = vmatpush1.bf16.msra.mxu0 %v2915
        %4111 = vmatprep.subr.bf16.mxu0 %v2924
        %4112 = vmatpush1.bf16.msra.mxu0 %v2923
        %4113 = vmatprep.subr.bf16.mxu0 %v2932
        %4114 = vmatpush1.bf16.msra.mxu0 %v2931
        %4115 = vmatprep.subr.bf16.mxu0 %v2940
        %4116 = vmatpush1.bf16.msra.mxu0 %v2939
        %4117 = vmatprep.subr.bf16.mxu0 %v2948
        %4118 = vmatpush1.bf16.msra.mxu0 %v2947
        %4119 = vmatprep.subr.bf16.mxu0 %v2956
        %4120 = vmatpush1.bf16.msra.mxu0 %v2955
        %4121 = vmatprep.subr.bf16.mxu0 %v2964
        %4122 = vmatpush1.bf16.msra.mxu0 %v2963
        %4123 = vmatprep.subr.bf16.mxu0 %v2972
        %4124 = vmatpush1.bf16.msra.mxu0 %v2971
        %4125 = vmatprep.subr.bf16.mxu0 %v2980
        %4126 = vmatpush1.bf16.msra.mxu0 %v2979
        %4127 = vmatprep.subr.bf16.mxu0 %v2988
        %4128 = vmatpush1.bf16.msra.mxu0 %v2987
        %4129 = vmatprep.subr.bf16.mxu0 %v2996
        %4130 = vmatpush1.bf16.msra.mxu0 %v2995
        %4131 = vmatprep.subr.bf16.mxu0 %v3004
        %4132 = vmatpush1.bf16.msra.mxu0 %v3003
        %4133 = vmatprep.subr.bf16.mxu0 %v3012
        %4134 = vmatpush1.bf16.msra.mxu0 %v3011
        %4135 = vmatprep.subr.bf16.mxu0 %v3020
        %4136 = vmatpush1.bf16.msra.mxu0 %v3019
        %4137 = vmatprep.subr.bf16.mxu0 %v3028
        %4138 = vmatpush1.bf16.msra.mxu0 %v3027
        %4139 = vmatprep.subr.bf16.mxu0 %v3036
        %4140 = vmatpush1.bf16.msra.mxu0 %v3035
        %4141 = vmatprep.mubr.bf16.mxu0 %v1108
        %4142 = vmatmul.mubr.bf16.gmra.mrb[0].mxu0 %v1107
        %v4143 = vpop.f32.mrb[0].mxu0
        %v4144 = vadd.f32 %v4101, %v4143
        %v4145 = vpop.f32.mrb[0].mxu0
        %v4146 = vadd.f32 %v4103, %v4145
        %v4147 = vpop.f32.mrb[0].mxu0
        %v4148 = vadd.f32 %v4105, %v4147
        %v4149 = vpop.f32.mrb[0].mxu0
        %v4150 = vadd.f32 %v4107, %v4149
        %4151 = vdwg.mxu0
        %4152 = vmatprep.subr.bf16.mxu0 %v3044
        %4153 = vmatpush1.bf16.msra.mxu0 %v3043
        %4154 = vmatprep.subr.bf16.mxu0 %v3052
        %4155 = vmatpush1.bf16.msra.mxu0 %v3051
        %4156 = vmatprep.subr.bf16.mxu0 %v3060
        %4157 = vmatpush1.bf16.msra.mxu0 %v3059
        %4158 = vmatprep.subr.bf16.mxu0 %v3068
        %4159 = vmatpush1.bf16.msra.mxu0 %v3067
        %4160 = vmatprep.subr.bf16.mxu0 %v3076
        %4161 = vmatpush1.bf16.msra.mxu0 %v3075
        %4162 = vmatprep.subr.bf16.mxu0 %v3084
        %4163 = vmatpush1.bf16.msra.mxu0 %v3083
        %4164 = vmatprep.subr.bf16.mxu0 %v3092
        %4165 = vmatpush1.bf16.msra.mxu0 %v3091
        %4166 = vmatprep.subr.bf16.mxu0 %v3100
        %4167 = vmatpush1.bf16.msra.mxu0 %v3099
        %4168 = vmatprep.subr.bf16.mxu0 %v3108
        %4169 = vmatpush1.bf16.msra.mxu0 %v3107
        %4170 = vmatprep.subr.bf16.mxu0 %v3116
        %4171 = vmatpush1.bf16.msra.mxu0 %v3115
        %4172 = vmatprep.subr.bf16.mxu0 %v3124
        %4173 = vmatpush1.bf16.msra.mxu0 %v3123
        %4174 = vmatprep.subr.bf16.mxu0 %v3132
        %4175 = vmatpush1.bf16.msra.mxu0 %v3131
        %4176 = vmatprep.subr.bf16.mxu0 %v3140
        %4177 = vmatpush1.bf16.msra.mxu0 %v3139
        %4178 = vmatprep.subr.bf16.mxu0 %v3148
        %4179 = vmatpush1.bf16.msra.mxu0 %v3147
        %4180 = vmatprep.subr.bf16.mxu0 %v3156
        %4181 = vmatpush1.bf16.msra.mxu0 %v3155
        %4182 = vmatprep.subr.bf16.mxu0 %v3164
        %4183 = vmatpush1.bf16.msra.mxu0 %v3163
        %4184 = vmatprep.mubr.bf16.mxu0 %v1110
        %4185 = vmatmul.mubr.bf16.gmra.mrb[0].mxu0 %v1109
        %v4186 = vpop.f32.mrb[0].mxu0
        %v4187 = vadd.f32 %v4144, %v4186
        %v4188 = vpop.f32.mrb[0].mxu0
        %v4189 = vadd.f32 %v4146, %v4188
        %v4190 = vpop.f32.mrb[0].mxu0
        %v4191 = vadd.f32 %v4148, %v4190
        %v4192 = vpop.f32.mrb[0].mxu0
        %v4193 = vadd.f32 %v4150, %v4192
        %4194 = vdwg.mxu0
        %4195 = vmatprep.subr.bf16.mxu0 %v2662
        %4196 = vmatpush1.bf16.msra.mxu0 %v2661
        %4197 = vmatprep.subr.bf16.mxu0 %v2670
        %4198 = vmatpush1.bf16.msra.mxu0 %v2669
        %4199 = vmatprep.subr.bf16.mxu0 %v2678
        %4200 = vmatpush1.bf16.msra.mxu0 %v2677
        %4201 = vmatprep.subr.bf16.mxu0 %v2686
        %4202 = vmatpush1.bf16.msra.mxu0 %v2685
        %4203 = vmatprep.subr.bf16.mxu0 %v2694
        %4204 = vmatpush1.bf16.msra.mxu0 %v2693
        %4205 = vmatprep.subr.bf16.mxu0 %v2702
        %4206 = vmatpush1.bf16.msra.mxu0 %v2701
        %4207 = vmatprep.subr.bf16.mxu0 %v2710
        %4208 = vmatpush1.bf16.msra.mxu0 %v2709
        %4209 = vmatprep.subr.bf16.mxu0 %v2718
        %4210 = vmatpush1.bf16.msra.mxu0 %v2717
        %4211 = vmatprep.subr.bf16.mxu0 %v2726
        %4212 = vmatpush1.bf16.msra.mxu0 %v2725
        %4213 = vmatprep.subr.bf16.mxu0 %v2734
        %4214 = vmatpush1.bf16.msra.mxu0 %v2733
        %4215 = vmatprep.subr.bf16.mxu0 %v2742
        %4216 = vmatpush1.bf16.msra.mxu0 %v2741
        %4217 = vmatprep.subr.bf16.mxu0 %v2750
        %4218 = vmatpush1.bf16.msra.mxu0 %v2749
        %4219 = vmatprep.subr.bf16.mxu0 %v2758
        %4220 = vmatpush1.bf16.msra.mxu0 %v2757
        %4221 = vmatprep.subr.bf16.mxu0 %v2766
        %4222 = vmatpush1.bf16.msra.mxu0 %v2765
        %4223 = vmatprep.subr.bf16.mxu0 %v2774
        %4224 = vmatpush1.bf16.msra.mxu0 %v2773
        %4225 = vmatprep.subr.bf16.mxu0 %v2782
        %4226 = vmatpush1.bf16.msra.mxu0 %v2781
        %4227 = vmatprep.mubr.bf16.mxu0 %v1104
        %4228 = vmatmul.mubr.bf16.gmra.mrb[0].mxu0 %v1103
        %v4229 = vpop.f32.mrb[0].mxu0
        %v4230 = vadd.f32 %v1066, %v4229
        %v4231 = vpop.f32.mrb[0].mxu0
        %v4232 = vadd.f32 %v1070, %v4231
        %v4233 = vpop.f32.mrb[0].mxu0
        %v4234 = vadd.f32 %v1066, %v4233
        %v4235 = vpop.f32.mrb[0].mxu0
        %v4236 = vadd.f32 %v1070, %v4235
        %4237 = vdwg.mxu0
        %4238 = vmatprep.subr.bf16.mxu0 %v2790
        %4239 = vmatpush1.bf16.msra.mxu0 %v2789
        %4240 = vmatprep.subr.bf16.mxu0 %v2798
        %4241 = vmatpush1.bf16.msra.mxu0 %v2797
        %4242 = vmatprep.subr.bf16.mxu0 %v2806
        %4243 = vmatpush1.bf16.msra.mxu0 %v2805
        %4244 = vmatprep.subr.bf16.mxu0 %v2814
        %4245 = vmatpush1.bf16.msra.mxu0 %v2813
        %4246 = vmatprep.subr.bf16.mxu0 %v2822
        %4247 = vmatpush1.bf16.msra.mxu0 %v2821
        %4248 = vmatprep.subr.bf16.mxu0 %v2830
        %4249 = vmatpush1.bf16.msra.mxu0 %v2829
        %4250 = vmatprep.subr.bf16.mxu0 %v2838
        %4251 = vmatpush1.bf16.msra.mxu0 %v2837
        %4252 = vmatprep.subr.bf16.mxu0 %v2846
        %4253 = vmatpush1.bf16.msra.mxu0 %v2845
        %4254 = vmatprep.subr.bf16.mxu0 %v2854
        %4255 = vmatpush1.bf16.msra.mxu0 %v2853
        %4256 = vmatprep.subr.bf16.mxu0 %v2862
        %4257 = vmatpush1.bf16.msra.mxu0 %v2861
        %4258 = vmatprep.subr.bf16.mxu0 %v2870
        %4259 = vmatpush1.bf16.msra.mxu0 %v2869
        %4260 = vmatprep.subr.bf16.mxu0 %v2878
        %4261 = vmatpush1.bf16.msra.mxu0 %v2877
        %4262 = vmatprep.subr.bf16.mxu0 %v2886
        %4263 = vmatpush1.bf16.msra.mxu0 %v2885
        %4264 = vmatprep.subr.bf16.mxu0 %v2894
        %4265 = vmatpush1.bf16.msra.mxu0 %v2893
        %4266 = vmatprep.subr.bf16.mxu0 %v2902
        %4267 = vmatpush1.bf16.msra.mxu0 %v2901
        %4268 = vmatprep.subr.bf16.mxu0 %v2910
        %4269 = vmatpush1.bf16.msra.mxu0 %v2909
        %4270 = vmatprep.mubr.bf16.mxu0 %v1106
        %4271 = vmatmul.mubr.bf16.gmra.mrb[0].mxu0 %v1105
        %v4272 = vpop.f32.mrb[0].mxu0
        %v4273 = vadd.f32 %v4230, %v4272
        %v4274 = vpop.f32.mrb[0].mxu0
        %v4275 = vadd.f32 %v4232, %v4274
        %v4276 = vpop.f32.mrb[0].mxu0
        %v4277 = vadd.f32 %v4234, %v4276
        %v4278 = vpop.f32.mrb[0].mxu0
        %v4279 = vadd.f32 %v4236, %v4278
        %4280 = vdwg.mxu0
        %4281 = vmatprep.subr.bf16.mxu0 %v2918
        %4282 = vmatpush1.bf16.msra.mxu0 %v2917
        %4283 = vmatprep.subr.bf16.mxu0 %v2926
        %4284 = vmatpush1.bf16.msra.mxu0 %v2925
        %4285 = vmatprep.subr.bf16.mxu0 %v2934
        %4286 = vmatpush1.bf16.msra.mxu0 %v2933
        %4287 = vmatprep.subr.bf16.mxu0 %v2942
        %4288 = vmatpush1.bf16.msra.mxu0 %v2941
        %4289 = vmatprep.subr.bf16.mxu0 %v2950
        %4290 = vmatpush1.bf16.msra.mxu0 %v2949
        %4291 = vmatprep.subr.bf16.mxu0 %v2958
        %4292 = vmatpush1.bf16.msra.mxu0 %v2957
        %4293 = vmatprep.subr.bf16.mxu0 %v2966
        %4294 = vmatpush1.bf16.msra.mxu0 %v2965
        %4295 = vmatprep.subr.bf16.mxu0 %v2974
        %4296 = vmatpush1.bf16.msra.mxu0 %v2973
        %4297 = vmatprep.subr.bf16.mxu0 %v2982
        %4298 = vmatpush1.bf16.msra.mxu0 %v2981
        %4299 = vmatprep.subr.bf16.mxu0 %v2990
        %4300 = vmatpush1.bf16.msra.mxu0 %v2989
        %4301 = vmatprep.subr.bf16.mxu0 %v2998
        %4302 = vmatpush1.bf16.msra.mxu0 %v2997
        %4303 = vmatprep.subr.bf16.mxu0 %v3006
        %4304 = vmatpush1.bf16.msra.mxu0 %v3005
        %4305 = vmatprep.subr.bf16.mxu0 %v3014
        %4306 = vmatpush1.bf16.msra.mxu0 %v3013
        %4307 = vmatprep.subr.bf16.mxu0 %v3022
        %4308 = vmatpush1.bf16.msra.mxu0 %v3021
        %4309 = vmatprep.subr.bf16.mxu0 %v3030
        %4310 = vmatpush1.bf16.msra.mxu0 %v3029
        %4311 = vmatprep.subr.bf16.mxu0 %v3038
        %4312 = vmatpush1.bf16.msra.mxu0 %v3037
        %4313 = vmatprep.mubr.bf16.mxu0 %v1108
        %4314 = vmatmul.mubr.bf16.gmra.mrb[0].mxu0 %v1107
        %v4315 = vpop.f32.mrb[0].mxu0
        %v4316 = vadd.f32 %v4273, %v4315
        %v4317 = vpop.f32.mrb[0].mxu0
        %v4318 = vadd.f32 %v4275, %v4317
        %v4319 = vpop.f32.mrb[0].mxu0
        %v4320 = vadd.f32 %v4277, %v4319
        %v4321 = vpop.f32.mrb[0].mxu0
        %v4322 = vadd.f32 %v4279, %v4321
        %4323 = vdwg.mxu0
        %4324 = vmatprep.subr.bf16.mxu0 %v3046
        %4325 = vmatpush1.bf16.msra.mxu0 %v3045
        %4326 = vmatprep.subr.bf16.mxu0 %v3054
        %4327 = vmatpush1.bf16.msra.mxu0 %v3053
        %4328 = vmatprep.subr.bf16.mxu0 %v3062
        %4329 = vmatpush1.bf16.msra.mxu0 %v3061
        %4330 = vmatprep.subr.bf16.mxu0 %v3070
        %4331 = vmatpush1.bf16.msra.mxu0 %v3069
        %4332 = vmatprep.subr.bf16.mxu0 %v3078
        %4333 = vmatpush1.bf16.msra.mxu0 %v3077
        %4334 = vmatprep.subr.bf16.mxu0 %v3086
        %4335 = vmatpush1.bf16.msra.mxu0 %v3085
        %4336 = vmatprep.subr.bf16.mxu0 %v3094
        %4337 = vmatpush1.bf16.msra.mxu0 %v3093
        %4338 = vmatprep.subr.bf16.mxu0 %v3102
        %4339 = vmatpush1.bf16.msra.mxu0 %v3101
        %4340 = vmatprep.subr.bf16.mxu0 %v3110
        %4341 = vmatpush1.bf16.msra.mxu0 %v3109
        %4342 = vmatprep.subr.bf16.mxu0 %v3118
        %4343 = vmatpush1.bf16.msra.mxu0 %v3117
        %4344 = vmatprep.subr.bf16.mxu0 %v3126
        %4345 = vmatpush1.bf16.msra.mxu0 %v3125
        %4346 = vmatprep.subr.bf16.mxu0 %v3134
        %4347 = vmatpush1.bf16.msra.mxu0 %v3133
        %4348 = vmatprep.subr.bf16.mxu0 %v3142
        %4349 = vmatpush1.bf16.msra.mxu0 %v3141
        %4350 = vmatprep.subr.bf16.mxu0 %v3150
        %4351 = vmatpush1.bf16.msra.mxu0 %v3149
        %4352 = vmatprep.subr.bf16.mxu0 %v3158
        %4353 = vmatpush1.bf16.msra.mxu0 %v3157
        %4354 = vmatprep.subr.bf16.mxu0 %v3166
        %4355 = vmatpush1.bf16.msra.mxu0 %v3165
        %4356 = vmatprep.mubr.bf16.mxu0 %v1110
        %4357 = vmatmul.mubr.bf16.gmra.mrb[0].mxu0 %v1109
        %v4358 = vpop.f32.mrb[0].mxu0
        %v4359 = vadd.f32 %v4316, %v4358
        %v4360 = vpop.f32.mrb[0].mxu0
        %v4361 = vadd.f32 %v4318, %v4360
        %v4362 = vpop.f32.mrb[0].mxu0
        %v4363 = vadd.f32 %v4320, %v4362
        %v4364 = vpop.f32.mrb[0].mxu0
        %v4365 = vadd.f32 %v4322, %v4364
        %4366 = vdwg.mxu0
        %vm4367 = vcmp.gt.f32.partialorder %v3843, 0.0
        %vm4368 = vcmp.gt.f32.partialorder %v3845, 0.0
        %vm4369 = vcmp.gt.f32.partialorder %v4015, 0.0
        %vm4370 = vcmp.gt.f32.partialorder %v4017, 0.0
        %vm4371 = vcmp.gt.f32.partialorder %v4187, 0.0
        %vm4372 = vcmp.gt.f32.partialorder %v4189, 0.0
        %vm4373 = vcmp.gt.f32.partialorder %v4359, 0.0
        %vm4374 = vcmp.gt.f32.partialorder %v4361, 0.0
        %vm4375 = vcmp.gt.f32.partialorder %v3847, 0.0
        %vm4376 = vcmp.gt.f32.partialorder %v3849, 0.0
        %vm4377 = vcmp.gt.f32.partialorder %v4019, 0.0
        %vm4378 = vcmp.gt.f32.partialorder %v4021, 0.0
        %vm4379 = vcmp.gt.f32.partialorder %v4191, 0.0
        %vm4380 = vcmp.gt.f32.partialorder %v4193, 0.0
        %vm4381 = vcmp.gt.f32.partialorder %v4363, 0.0
        %vm4382 = vcmp.gt.f32.partialorder %v4365, 0.0
        %v4383 = vmul.f32 %v3843, 0.2
        %v4384 = vmul.f32 %v3845, 0.2
        %v4385 = vmul.f32 %v4015, 0.2
        %v4386 = vmul.f32 %v4017, 0.2
        %v4387 = vmul.f32 %v4187, 0.2
        %v4388 = vmul.f32 %v4189, 0.2
        %v4389 = vmul.f32 %v4359, 0.2
        %v4390 = vmul.f32 %v4361, 0.2
        %v4391 = vmul.f32 %v3847, 0.2
        %v4392 = vmul.f32 %v3849, 0.2
        %v4393 = vmul.f32 %v4019, 0.2
        %v4394 = vmul.f32 %v4021, 0.2
        %v4395 = vmul.f32 %v4191, 0.2
        %v4396 = vmul.f32 %v4193, 0.2
        %v4397 = vmul.f32 %v4363, 0.2
        %v4398 = vmul.f32 %v4365, 0.2
        %v4399 = vsel %vm4367, %v3843, %v4383
        %v4400 = vsel %vm4368, %v3845, %v4384
        %v4401 = vsel %vm4369, %v4015, %v4385
        %v4402 = vsel %vm4370, %v4017, %v4386
        %v4403 = vsel %vm4371, %v4187, %v4387
        %v4404 = vsel %vm4372, %v4189, %v4388
        %v4405 = vsel %vm4373, %v4359, %v4389
        %v4406 = vsel %vm4374, %v4361, %v4390
        %v4407 = vsel %vm4375, %v3847, %v4391
        %v4408 = vsel %vm4376, %v3849, %v4392
        %v4409 = vsel %vm4377, %v4019, %v4393
        %v4410 = vsel %vm4378, %v4021, %v4394
        %v4411 = vsel %vm4379, %v4191, %v4395
        %v4412 = vsel %vm4380, %v4193, %v4396
        %v4413 = vsel %vm4381, %v4363, %v4397
        %v4414 = vsel %vm4382, %v4365, %v4398
        %s4415 = scalar_lea.vmem [#allocation5], 1
        %v4416 = vld [vmem:[%s4415] ss:$4 sm:$0xff]
        %v4418 = vlaneseq
        %v4419 = vshrl.u32 %v4418, 7
        %v4420 = vsub.s32 0, %v4419
        %v4421 = vrot.slane %v4416, %v4420
        %v4422 = vlaneseq
        %v4423 = vshrl.u32 %v4422, 7
        %v4424 = vsub.s32 1, %v4423
        %v4425 = vrot.slane %v4416, %v4424
        %v4426 = vlaneseq
        %v4427 = vshrl.u32 %v4426, 7
        %v4428 = vsub.s32 2, %v4427
        %v4429 = vrot.slane %v4416, %v4428
        %v4430 = vlaneseq
        %v4431 = vshrl.u32 %v4430, 7
        %v4432 = vsub.s32 3, %v4431
        %v4433 = vrot.slane %v4416, %v4432
        %v4434 = vlaneseq
        %v4435 = vshrl.u32 %v4434, 7
        %v4436 = vsub.s32 4, %v4435
        %v4437 = vrot.slane %v4416, %v4436
        %v4438 = vlaneseq
        %v4439 = vshrl.u32 %v4438, 7
        %v4440 = vsub.s32 5, %v4439
        %v4441 = vrot.slane %v4416, %v4440
        %v4442 = vlaneseq
        %v4443 = vshrl.u32 %v4442, 7
        %v4444 = vsub.s32 6, %v4443
        %v4445 = vrot.slane %v4416, %v4444
        %v4446 = vlaneseq
        %v4447 = vshrl.u32 %v4446, 7
        %v4448 = vsub.s32 7, %v4447
        %v4449 = vrot.slane %v4416, %v4448
        %v4458 = vmul.f32 %v4399, %v4421
        %v4459 = vmul.f32 %v4400, %v4425
        %v4460 = vmul.f32 %v4401, %v4429
        %v4461 = vmul.f32 %v4402, %v4433
        %v4462 = vmul.f32 %v4403, %v4437
        %v4463 = vmul.f32 %v4404, %v4441
        %v4464 = vmul.f32 %v4405, %v4445
        %v4465 = vmul.f32 %v4406, %v4449
        %v4466 = vmul.f32 %v4407, %v4421
        %v4467 = vmul.f32 %v4408, %v4425
        %v4468 = vmul.f32 %v4409, %v4429
        %v4469 = vmul.f32 %v4410, %v4433
        %v4470 = vmul.f32 %v4411, %v4437
        %v4471 = vmul.f32 %v4412, %v4441
        %v4472 = vmul.f32 %v4413, %v4445
        %v4473 = vmul.f32 %v4414, %v4449
        %s4474 = scalar_lea.vmem [#allocation5], 2
        %v4475 = vld [vmem:[%s4474] ss:$4 sm:$0xff]
        %v4477 = vlaneseq
        %v4478 = vshrl.u32 %v4477, 7
        %v4479 = vsub.s32 0, %v4478
        %v4480 = vrot.slane %v4475, %v4479
        %v4481 = vlaneseq
        %v4482 = vshrl.u32 %v4481, 7
        %v4483 = vsub.s32 1, %v4482
        %v4484 = vrot.slane %v4475, %v4483
        %v4485 = vlaneseq
        %v4486 = vshrl.u32 %v4485, 7
        %v4487 = vsub.s32 2, %v4486
        %v4488 = vrot.slane %v4475, %v4487
        %v4489 = vlaneseq
        %v4490 = vshrl.u32 %v4489, 7
        %v4491 = vsub.s32 3, %v4490
        %v4492 = vrot.slane %v4475, %v4491
        %v4493 = vlaneseq
        %v4494 = vshrl.u32 %v4493, 7
        %v4495 = vsub.s32 4, %v4494
        %v4496 = vrot.slane %v4475, %v4495
        %v4497 = vlaneseq
        %v4498 = vshrl.u32 %v4497, 7
        %v4499 = vsub.s32 5, %v4498
        %v4500 = vrot.slane %v4475, %v4499
        %v4501 = vlaneseq
        %v4502 = vshrl.u32 %v4501, 7
        %v4503 = vsub.s32 6, %v4502
        %v4504 = vrot.slane %v4475, %v4503
        %v4505 = vlaneseq
        %v4506 = vshrl.u32 %v4505, 7
        %v4507 = vsub.s32 7, %v4506
        %v4508 = vrot.slane %v4475, %v4507
        %v4517 = vadd.f32 %v4458, %v4480
        %v4518 = vadd.f32 %v4459, %v4484
        %v4519 = vadd.f32 %v4460, %v4488
        %v4520 = vadd.f32 %v4461, %v4492
        %v4521 = vadd.f32 %v4462, %v4496
        %v4522 = vadd.f32 %v4463, %v4500
        %v4523 = vadd.f32 %v4464, %v4504
        %v4524 = vadd.f32 %v4465, %v4508
        %v4525 = vadd.f32 %v4466, %v4480
        %v4526 = vadd.f32 %v4467, %v4484
        %v4527 = vadd.f32 %v4468, %v4488
        %v4528 = vadd.f32 %v4469, %v4492
        %v4529 = vadd.f32 %v4470, %v4496
        %v4530 = vadd.f32 %v4471, %v4500
        %v4531 = vadd.f32 %v4472, %v4504
        %v4532 = vadd.f32 %v4473, %v4508
        %v4533 = vpack.c.bf16 %v4525, %v4517
        %v4534 = vpack.c.bf16 %v4526, %v4518
        %v4535 = vpack.c.bf16 %v4527, %v4519
        %v4536 = vpack.c.bf16 %v4528, %v4520
        %v4537 = vpack.c.bf16 %v4529, %v4521
        %v4538 = vpack.c.bf16 %v4530, %v4522
        %v4539 = vpack.c.bf16 %v4531, %v4523
        %v4540 = vpack.c.bf16 %v4532, %v4524
        %v4541 = vld [vmem:[#allocation7] sm:$0xff]
        %v4542 = vld [vmem:[#allocation7 + $0x8] sm:$0xff]
        %v4543 = vld [vmem:[#allocation7 + $0x10] sm:$0xff]
        %v4544 = vld [vmem:[#allocation7 + $0x18] sm:$0xff]
        %v4545 = vld [vmem:[#allocation7 + $0x20] sm:$0xff]
        %v4546 = vld [vmem:[#allocation7 + $0x28] sm:$0xff]
        %v4547 = vld [vmem:[#allocation7 + $0x30] sm:$0xff]
        %v4548 = vld [vmem:[#allocation7 + $0x38] sm:$0xff]
        %v4549 = vld [vmem:[#allocation7 + $0x40] sm:$0xff]
        %v4550 = vld [vmem:[#allocation7 + $0x48] sm:$0xff]
        %v4551 = vld [vmem:[#allocation7 + $0x50] sm:$0xff]
        %v4552 = vld [vmem:[#allocation7 + $0x58] sm:$0xff]
        %v4553 = vld [vmem:[#allocation7 + $0x60] sm:$0xff]
        %v4554 = vld [vmem:[#allocation7 + $0x68] sm:$0xff]
        %v4555 = vld [vmem:[#allocation7 + $0x70] sm:$0xff]
        %v4556 = vld [vmem:[#allocation7 + $0x78] sm:$0xff]
        %v4557 = vld [vmem:[#allocation7 + $0x80] sm:$0xff]
        %v4558 = vld [vmem:[#allocation7 + $0x88] sm:$0xff]
        %v4559 = vld [vmem:[#allocation7 + $0x90] sm:$0xff]
        %v4560 = vld [vmem:[#allocation7 + $0x98] sm:$0xff]
        %v4561 = vld [vmem:[#allocation7 + $0xa0] sm:$0xff]
        %v4562 = vld [vmem:[#allocation7 + $0xa8] sm:$0xff]
        %v4563 = vld [vmem:[#allocation7 + $0xb0] sm:$0xff]
        %v4564 = vld [vmem:[#allocation7 + $0xb8] sm:$0xff]
        %v4565 = vld [vmem:[#allocation7 + $0xc0] sm:$0xff]
        %v4566 = vld [vmem:[#allocation7 + $0xc8] sm:$0xff]
        %v4567 = vld [vmem:[#allocation7 + $0xd0] sm:$0xff]
        %v4568 = vld [vmem:[#allocation7 + $0xd8] sm:$0xff]
        %v4569 = vld [vmem:[#allocation7 + $0xe0] sm:$0xff]
        %v4570 = vld [vmem:[#allocation7 + $0xe8] sm:$0xff]
        %v4571 = vld [vmem:[#allocation7 + $0xf0] sm:$0xff]
        %v4572 = vld [vmem:[#allocation7 + $0xf8] sm:$0xff]
        %v4573 = vld [vmem:[#allocation7 + $0x100] sm:$0xff]
        %v4574 = vld [vmem:[#allocation7 + $0x108] sm:$0xff]
        %v4575 = vld [vmem:[#allocation7 + $0x110] sm:$0xff]
        %v4576 = vld [vmem:[#allocation7 + $0x118] sm:$0xff]
        %v4577 = vld [vmem:[#allocation7 + $0x120] sm:$0xff]
        %v4578 = vld [vmem:[#allocation7 + $0x128] sm:$0xff]
        %v4579 = vld [vmem:[#allocation7 + $0x130] sm:$0xff]
        %v4580 = vld [vmem:[#allocation7 + $0x138] sm:$0xff]
        %v4581 = vld [vmem:[#allocation7 + $0x140] sm:$0xff]
        %v4582 = vld [vmem:[#allocation7 + $0x148] sm:$0xff]
        %v4583 = vld [vmem:[#allocation7 + $0x150] sm:$0xff]
        %v4584 = vld [vmem:[#allocation7 + $0x158] sm:$0xff]
        %v4585 = vld [vmem:[#allocation7 + $0x160] sm:$0xff]
        %v4586 = vld [vmem:[#allocation7 + $0x168] sm:$0xff]
        %v4587 = vld [vmem:[#allocation7 + $0x170] sm:$0xff]
        %v4588 = vld [vmem:[#allocation7 + $0x178] sm:$0xff]
        %v4589 = vld [vmem:[#allocation7 + $0x180] sm:$0xff]
        %v4590 = vld [vmem:[#allocation7 + $0x188] sm:$0xff]
        %v4591 = vld [vmem:[#allocation7 + $0x190] sm:$0xff]
        %v4592 = vld [vmem:[#allocation7 + $0x198] sm:$0xff]
        %v4593 = vld [vmem:[#allocation7 + $0x1a0] sm:$0xff]
        %v4594 = vld [vmem:[#allocation7 + $0x1a8] sm:$0xff]
        %v4595 = vld [vmem:[#allocation7 + $0x1b0] sm:$0xff]
        %v4596 = vld [vmem:[#allocation7 + $0x1b8] sm:$0xff]
        %v4597 = vld [vmem:[#allocation7 + $0x1c0] sm:$0xff]
        %v4598 = vld [vmem:[#allocation7 + $0x1c8] sm:$0xff]
        %v4599 = vld [vmem:[#allocation7 + $0x1d0] sm:$0xff]
        %v4600 = vld [vmem:[#allocation7 + $0x1d8] sm:$0xff]
        %v4601 = vld [vmem:[#allocation7 + $0x1e0] sm:$0xff]
        %v4602 = vld [vmem:[#allocation7 + $0x1e8] sm:$0xff]
        %v4603 = vld [vmem:[#allocation7 + $0x1f0] sm:$0xff]
        %v4604 = vld [vmem:[#allocation7 + $0x1f8] sm:$0xff]
        %v4605 = vld [vmem:[#allocation7 + $0x200] sm:$0xff]
        %v4606 = vld [vmem:[#allocation7 + $0x208] sm:$0xff]
        %v4607 = vld [vmem:[#allocation7 + $0x210] sm:$0xff]
        %v4608 = vld [vmem:[#allocation7 + $0x218] sm:$0xff]
        %v4609 = vld [vmem:[#allocation7 + $0x220] sm:$0xff]
        %v4610 = vld [vmem:[#allocation7 + $0x228] sm:$0xff]
        %v4611 = vld [vmem:[#allocation7 + $0x230] sm:$0xff]
        %v4612 = vld [vmem:[#allocation7 + $0x238] sm:$0xff]
        %v4613 = vld [vmem:[#allocation7 + $0x240] sm:$0xff]
        %v4614 = vld [vmem:[#allocation7 + $0x248] sm:$0xff]
        %v4615 = vld [vmem:[#allocation7 + $0x250] sm:$0xff]
        %v4616 = vld [vmem:[#allocation7 + $0x258] sm:$0xff]
        %v4617 = vld [vmem:[#allocation7 + $0x260] sm:$0xff]
        %v4618 = vld [vmem:[#allocation7 + $0x268] sm:$0xff]
        %v4619 = vld [vmem:[#allocation7 + $0x270] sm:$0xff]
        %v4620 = vld [vmem:[#allocation7 + $0x278] sm:$0xff]
        %v4621 = vld [vmem:[#allocation7 + $0x280] sm:$0xff]
        %v4622 = vld [vmem:[#allocation7 + $0x288] sm:$0xff]
        %v4623 = vld [vmem:[#allocation7 + $0x290] sm:$0xff]
        %v4624 = vld [vmem:[#allocation7 + $0x298] sm:$0xff]
        %v4625 = vld [vmem:[#allocation7 + $0x2a0] sm:$0xff]
        %v4626 = vld [vmem:[#allocation7 + $0x2a8] sm:$0xff]
        %v4627 = vld [vmem:[#allocation7 + $0x2b0] sm:$0xff]
        %v4628 = vld [vmem:[#allocation7 + $0x2b8] sm:$0xff]
        %v4629 = vld [vmem:[#allocation7 + $0x2c0] sm:$0xff]
        %v4630 = vld [vmem:[#allocation7 + $0x2c8] sm:$0xff]
        %v4631 = vld [vmem:[#allocation7 + $0x2d0] sm:$0xff]
        %v4632 = vld [vmem:[#allocation7 + $0x2d8] sm:$0xff]
        %v4633 = vld [vmem:[#allocation7 + $0x2e0] sm:$0xff]
        %v4634 = vld [vmem:[#allocation7 + $0x2e8] sm:$0xff]
        %v4635 = vld [vmem:[#allocation7 + $0x2f0] sm:$0xff]
        %v4636 = vld [vmem:[#allocation7 + $0x2f8] sm:$0xff]
        %v4637 = vld [vmem:[#allocation7 + $0x300] sm:$0xff]
        %v4638 = vld [vmem:[#allocation7 + $0x308] sm:$0xff]
        %v4639 = vld [vmem:[#allocation7 + $0x310] sm:$0xff]
        %v4640 = vld [vmem:[#allocation7 + $0x318] sm:$0xff]
        %v4641 = vld [vmem:[#allocation7 + $0x320] sm:$0xff]
        %v4642 = vld [vmem:[#allocation7 + $0x328] sm:$0xff]
        %v4643 = vld [vmem:[#allocation7 + $0x330] sm:$0xff]
        %v4644 = vld [vmem:[#allocation7 + $0x338] sm:$0xff]
        %v4645 = vld [vmem:[#allocation7 + $0x340] sm:$0xff]
        %v4646 = vld [vmem:[#allocation7 + $0x348] sm:$0xff]
        %v4647 = vld [vmem:[#allocation7 + $0x350] sm:$0xff]
        %v4648 = vld [vmem:[#allocation7 + $0x358] sm:$0xff]
        %v4649 = vld [vmem:[#allocation7 + $0x360] sm:$0xff]
        %v4650 = vld [vmem:[#allocation7 + $0x368] sm:$0xff]
        %v4651 = vld [vmem:[#allocation7 + $0x370] sm:$0xff]
        %v4652 = vld [vmem:[#allocation7 + $0x378] sm:$0xff]
        %v4653 = vld [vmem:[#allocation7 + $0x380] sm:$0xff]
        %v4654 = vld [vmem:[#allocation7 + $0x388] sm:$0xff]
        %v4655 = vld [vmem:[#allocation7 + $0x390] sm:$0xff]
        %v4656 = vld [vmem:[#allocation7 + $0x398] sm:$0xff]
        %v4657 = vld [vmem:[#allocation7 + $0x3a0] sm:$0xff]
        %v4658 = vld [vmem:[#allocation7 + $0x3a8] sm:$0xff]
        %v4659 = vld [vmem:[#allocation7 + $0x3b0] sm:$0xff]
        %v4660 = vld [vmem:[#allocation7 + $0x3b8] sm:$0xff]
        %v4661 = vld [vmem:[#allocation7 + $0x3c0] sm:$0xff]
        %v4662 = vld [vmem:[#allocation7 + $0x3c8] sm:$0xff]
        %v4663 = vld [vmem:[#allocation7 + $0x3d0] sm:$0xff]
        %v4664 = vld [vmem:[#allocation7 + $0x3d8] sm:$0xff]
        %v4665 = vld [vmem:[#allocation7 + $0x3e0] sm:$0xff]
        %v4666 = vld [vmem:[#allocation7 + $0x3e8] sm:$0xff]
        %v4667 = vld [vmem:[#allocation7 + $0x3f0] sm:$0xff]
        %v4668 = vld [vmem:[#allocation7 + $0x3f8] sm:$0xff]
        %v4669 = vld [vmem:[#allocation7 + $0x400] sm:$0xff]
        %v4670 = vld [vmem:[#allocation7 + $0x408] sm:$0xff]
        %v4671 = vld [vmem:[#allocation7 + $0x410] sm:$0xff]
        %v4672 = vld [vmem:[#allocation7 + $0x418] sm:$0xff]
        %v4673 = vld [vmem:[#allocation7 + $0x420] sm:$0xff]
        %v4674 = vld [vmem:[#allocation7 + $0x428] sm:$0xff]
        %v4675 = vld [vmem:[#allocation7 + $0x430] sm:$0xff]
        %v4676 = vld [vmem:[#allocation7 + $0x438] sm:$0xff]
        %v4677 = vld [vmem:[#allocation7 + $0x440] sm:$0xff]
        %v4678 = vld [vmem:[#allocation7 + $0x448] sm:$0xff]
        %v4679 = vld [vmem:[#allocation7 + $0x450] sm:$0xff]
        %v4680 = vld [vmem:[#allocation7 + $0x458] sm:$0xff]
        %v4681 = vld [vmem:[#allocation7 + $0x460] sm:$0xff]
        %v4682 = vld [vmem:[#allocation7 + $0x468] sm:$0xff]
        %v4683 = vld [vmem:[#allocation7 + $0x470] sm:$0xff]
        %v4684 = vld [vmem:[#allocation7 + $0x478] sm:$0xff]
        %v4685 = vld [vmem:[#allocation7 + $0x480] sm:$0xff]
        %v4686 = vld [vmem:[#allocation7 + $0x488] sm:$0xff]
        %v4687 = vld [vmem:[#allocation7 + $0x490] sm:$0xff]
        %v4688 = vld [vmem:[#allocation7 + $0x498] sm:$0xff]
        %v4689 = vld [vmem:[#allocation7 + $0x4a0] sm:$0xff]
        %v4690 = vld [vmem:[#allocation7 + $0x4a8] sm:$0xff]
        %v4691 = vld [vmem:[#allocation7 + $0x4b0] sm:$0xff]
        %v4692 = vld [vmem:[#allocation7 + $0x4b8] sm:$0xff]
        %v4693 = vld [vmem:[#allocation7 + $0x4c0] sm:$0xff]
        %v4694 = vld [vmem:[#allocation7 + $0x4c8] sm:$0xff]
        %v4695 = vld [vmem:[#allocation7 + $0x4d0] sm:$0xff]
        %v4696 = vld [vmem:[#allocation7 + $0x4d8] sm:$0xff]
        %v4697 = vld [vmem:[#allocation7 + $0x4e0] sm:$0xff]
        %v4698 = vld [vmem:[#allocation7 + $0x4e8] sm:$0xff]
        %v4699 = vld [vmem:[#allocation7 + $0x4f0] sm:$0xff]
        %v4700 = vld [vmem:[#allocation7 + $0x4f8] sm:$0xff]
        %v4701 = vld [vmem:[#allocation7 + $0x500] sm:$0xff]
        %v4702 = vld [vmem:[#allocation7 + $0x508] sm:$0xff]
        %v4703 = vld [vmem:[#allocation7 + $0x510] sm:$0xff]
        %v4704 = vld [vmem:[#allocation7 + $0x518] sm:$0xff]
        %v4705 = vld [vmem:[#allocation7 + $0x520] sm:$0xff]
        %v4706 = vld [vmem:[#allocation7 + $0x528] sm:$0xff]
        %v4707 = vld [vmem:[#allocation7 + $0x530] sm:$0xff]
        %v4708 = vld [vmem:[#allocation7 + $0x538] sm:$0xff]
        %v4709 = vld [vmem:[#allocation7 + $0x540] sm:$0xff]
        %v4710 = vld [vmem:[#allocation7 + $0x548] sm:$0xff]
        %v4711 = vld [vmem:[#allocation7 + $0x550] sm:$0xff]
        %v4712 = vld [vmem:[#allocation7 + $0x558] sm:$0xff]
        %v4713 = vld [vmem:[#allocation7 + $0x560] sm:$0xff]
        %v4714 = vld [vmem:[#allocation7 + $0x568] sm:$0xff]
        %v4715 = vld [vmem:[#allocation7 + $0x570] sm:$0xff]
        %v4716 = vld [vmem:[#allocation7 + $0x578] sm:$0xff]
        %v4717 = vld [vmem:[#allocation7 + $0x580] sm:$0xff]
        %v4718 = vld [vmem:[#allocation7 + $0x588] sm:$0xff]
        %v4719 = vld [vmem:[#allocation7 + $0x590] sm:$0xff]
        %v4720 = vld [vmem:[#allocation7 + $0x598] sm:$0xff]
        %v4721 = vld [vmem:[#allocation7 + $0x5a0] sm:$0xff]
        %v4722 = vld [vmem:[#allocation7 + $0x5a8] sm:$0xff]
        %v4723 = vld [vmem:[#allocation7 + $0x5b0] sm:$0xff]
        %v4724 = vld [vmem:[#allocation7 + $0x5b8] sm:$0xff]
        %v4725 = vld [vmem:[#allocation7 + $0x5c0] sm:$0xff]
        %v4726 = vld [vmem:[#allocation7 + $0x5c8] sm:$0xff]
        %v4727 = vld [vmem:[#allocation7 + $0x5d0] sm:$0xff]
        %v4728 = vld [vmem:[#allocation7 + $0x5d8] sm:$0xff]
        %v4729 = vld [vmem:[#allocation7 + $0x5e0] sm:$0xff]
        %v4730 = vld [vmem:[#allocation7 + $0x5e8] sm:$0xff]
        %v4731 = vld [vmem:[#allocation7 + $0x5f0] sm:$0xff]
        %v4732 = vld [vmem:[#allocation7 + $0x5f8] sm:$0xff]
        %v4733 = vld [vmem:[#allocation7 + $0x600] sm:$0xff]
        %v4734 = vld [vmem:[#allocation7 + $0x608] sm:$0xff]
        %v4735 = vld [vmem:[#allocation7 + $0x610] sm:$0xff]
        %v4736 = vld [vmem:[#allocation7 + $0x618] sm:$0xff]
        %v4737 = vld [vmem:[#allocation7 + $0x620] sm:$0xff]
        %v4738 = vld [vmem:[#allocation7 + $0x628] sm:$0xff]
        %v4739 = vld [vmem:[#allocation7 + $0x630] sm:$0xff]
        %v4740 = vld [vmem:[#allocation7 + $0x638] sm:$0xff]
        %v4741 = vld [vmem:[#allocation7 + $0x640] sm:$0xff]
        %v4742 = vld [vmem:[#allocation7 + $0x648] sm:$0xff]
        %v4743 = vld [vmem:[#allocation7 + $0x650] sm:$0xff]
        %v4744 = vld [vmem:[#allocation7 + $0x658] sm:$0xff]
        %v4745 = vld [vmem:[#allocation7 + $0x660] sm:$0xff]
        %v4746 = vld [vmem:[#allocation7 + $0x668] sm:$0xff]
        %v4747 = vld [vmem:[#allocation7 + $0x670] sm:$0xff]
        %v4748 = vld [vmem:[#allocation7 + $0x678] sm:$0xff]
        %v4749 = vld [vmem:[#allocation7 + $0x680] sm:$0xff]
        %v4750 = vld [vmem:[#allocation7 + $0x688] sm:$0xff]
        %v4751 = vld [vmem:[#allocation7 + $0x690] sm:$0xff]
        %v4752 = vld [vmem:[#allocation7 + $0x698] sm:$0xff]
        %v4753 = vld [vmem:[#allocation7 + $0x6a0] sm:$0xff]
        %v4754 = vld [vmem:[#allocation7 + $0x6a8] sm:$0xff]
        %v4755 = vld [vmem:[#allocation7 + $0x6b0] sm:$0xff]
        %v4756 = vld [vmem:[#allocation7 + $0x6b8] sm:$0xff]
        %v4757 = vld [vmem:[#allocation7 + $0x6c0] sm:$0xff]
        %v4758 = vld [vmem:[#allocation7 + $0x6c8] sm:$0xff]
        %v4759 = vld [vmem:[#allocation7 + $0x6d0] sm:$0xff]
        %v4760 = vld [vmem:[#allocation7 + $0x6d8] sm:$0xff]
        %v4761 = vld [vmem:[#allocation7 + $0x6e0] sm:$0xff]
        %v4762 = vld [vmem:[#allocation7 + $0x6e8] sm:$0xff]
        %v4763 = vld [vmem:[#allocation7 + $0x6f0] sm:$0xff]
        %v4764 = vld [vmem:[#allocation7 + $0x6f8] sm:$0xff]
        %v4765 = vld [vmem:[#allocation7 + $0x700] sm:$0xff]
        %v4766 = vld [vmem:[#allocation7 + $0x708] sm:$0xff]
        %v4767 = vld [vmem:[#allocation7 + $0x710] sm:$0xff]
        %v4768 = vld [vmem:[#allocation7 + $0x718] sm:$0xff]
        %v4769 = vld [vmem:[#allocation7 + $0x720] sm:$0xff]
        %v4770 = vld [vmem:[#allocation7 + $0x728] sm:$0xff]
        %v4771 = vld [vmem:[#allocation7 + $0x730] sm:$0xff]
        %v4772 = vld [vmem:[#allocation7 + $0x738] sm:$0xff]
        %v4773 = vld [vmem:[#allocation7 + $0x740] sm:$0xff]
        %v4774 = vld [vmem:[#allocation7 + $0x748] sm:$0xff]
        %v4775 = vld [vmem:[#allocation7 + $0x750] sm:$0xff]
        %v4776 = vld [vmem:[#allocation7 + $0x758] sm:$0xff]
        %v4777 = vld [vmem:[#allocation7 + $0x760] sm:$0xff]
        %v4778 = vld [vmem:[#allocation7 + $0x768] sm:$0xff]
        %v4779 = vld [vmem:[#allocation7 + $0x770] sm:$0xff]
        %v4780 = vld [vmem:[#allocation7 + $0x778] sm:$0xff]
        %v4781 = vld [vmem:[#allocation7 + $0x780] sm:$0xff]
        %v4782 = vld [vmem:[#allocation7 + $0x788] sm:$0xff]
        %v4783 = vld [vmem:[#allocation7 + $0x790] sm:$0xff]
        %v4784 = vld [vmem:[#allocation7 + $0x798] sm:$0xff]
        %v4785 = vld [vmem:[#allocation7 + $0x7a0] sm:$0xff]
        %v4786 = vld [vmem:[#allocation7 + $0x7a8] sm:$0xff]
        %v4787 = vld [vmem:[#allocation7 + $0x7b0] sm:$0xff]
        %v4788 = vld [vmem:[#allocation7 + $0x7b8] sm:$0xff]
        %v4789 = vld [vmem:[#allocation7 + $0x7c0] sm:$0xff]
        %v4790 = vld [vmem:[#allocation7 + $0x7c8] sm:$0xff]
        %v4791 = vld [vmem:[#allocation7 + $0x7d0] sm:$0xff]
        %v4792 = vld [vmem:[#allocation7 + $0x7d8] sm:$0xff]
        %v4793 = vld [vmem:[#allocation7 + $0x7e0] sm:$0xff]
        %v4794 = vld [vmem:[#allocation7 + $0x7e8] sm:$0xff]
        %v4795 = vld [vmem:[#allocation7 + $0x7f0] sm:$0xff]
        %v4796 = vld [vmem:[#allocation7 + $0x7f8] sm:$0xff]
        %v4797 = vld [vmem:[#allocation8] ss:$4 sm:$0xf]
        %v4799 = vlaneseq
        %v4800 = vshrl.u32 %v4799, 7
        %v4801 = vsub.s32 0, %v4800
        %v4802 = vrot.slane %v4797, %v4801
        %v4803 = vlaneseq
        %v4804 = vshrl.u32 %v4803, 7
        %v4805 = vsub.s32 1, %v4804
        %v4806 = vrot.slane %v4797, %v4805
        %v4807 = vlaneseq
        %v4808 = vshrl.u32 %v4807, 7
        %v4809 = vsub.s32 2, %v4808
        %v4810 = vrot.slane %v4797, %v4809
        %v4811 = vlaneseq
        %v4812 = vshrl.u32 %v4811, 7
        %v4813 = vsub.s32 3, %v4812
        %v4814 = vrot.slane %v4797, %v4813
        %v5075 = vunpack.c.l.b16 %v4541
        %v5076 = vunpack.c.h.b16 %v4541
        %v5077 = vunpack.c.l.b16 %v4542
        %v5078 = vunpack.c.h.b16 %v4542
        %v5079 = vunpack.c.l.b16 %v4543
        %v5080 = vunpack.c.h.b16 %v4543
        %v5081 = vunpack.c.l.b16 %v4544
        %v5082 = vunpack.c.h.b16 %v4544
        %v5083 = vunpack.c.l.b16 %v4545
        %v5084 = vunpack.c.h.b16 %v4545
        %v5085 = vunpack.c.l.b16 %v4546
        %v5086 = vunpack.c.h.b16 %v4546
        %v5087 = vunpack.c.l.b16 %v4547
        %v5088 = vunpack.c.h.b16 %v4547
        %v5089 = vunpack.c.l.b16 %v4548
        %v5090 = vunpack.c.h.b16 %v4548
        %v5091 = vunpack.c.l.b16 %v4549
        %v5092 = vunpack.c.h.b16 %v4549
        %v5093 = vunpack.c.l.b16 %v4550
        %v5094 = vunpack.c.h.b16 %v4550
        %v5095 = vunpack.c.l.b16 %v4551
        %v5096 = vunpack.c.h.b16 %v4551
        %v5097 = vunpack.c.l.b16 %v4552
        %v5098 = vunpack.c.h.b16 %v4552
        %v5099 = vunpack.c.l.b16 %v4553
        %v5100 = vunpack.c.h.b16 %v4553
        %v5101 = vunpack.c.l.b16 %v4554
        %v5102 = vunpack.c.h.b16 %v4554
        %v5103 = vunpack.c.l.b16 %v4555
        %v5104 = vunpack.c.h.b16 %v4555
        %v5105 = vunpack.c.l.b16 %v4556
        %v5106 = vunpack.c.h.b16 %v4556
        %v5107 = vunpack.c.l.b16 %v4557
        %v5108 = vunpack.c.h.b16 %v4557
        %v5109 = vunpack.c.l.b16 %v4558
        %v5110 = vunpack.c.h.b16 %v4558
        %v5111 = vunpack.c.l.b16 %v4559
        %v5112 = vunpack.c.h.b16 %v4559
        %v5113 = vunpack.c.l.b16 %v4560
        %v5114 = vunpack.c.h.b16 %v4560
        %v5115 = vunpack.c.l.b16 %v4561
        %v5116 = vunpack.c.h.b16 %v4561
        %v5117 = vunpack.c.l.b16 %v4562
        %v5118 = vunpack.c.h.b16 %v4562
        %v5119 = vunpack.c.l.b16 %v4563
        %v5120 = vunpack.c.h.b16 %v4563
        %v5121 = vunpack.c.l.b16 %v4564
        %v5122 = vunpack.c.h.b16 %v4564
        %v5123 = vunpack.c.l.b16 %v4565
        %v5124 = vunpack.c.h.b16 %v4565
        %v5125 = vunpack.c.l.b16 %v4566
        %v5126 = vunpack.c.h.b16 %v4566
        %v5127 = vunpack.c.l.b16 %v4567
        %v5128 = vunpack.c.h.b16 %v4567
        %v5129 = vunpack.c.l.b16 %v4568
        %v5130 = vunpack.c.h.b16 %v4568
        %v5131 = vunpack.c.l.b16 %v4569
        %v5132 = vunpack.c.h.b16 %v4569
        %v5133 = vunpack.c.l.b16 %v4570
        %v5134 = vunpack.c.h.b16 %v4570
        %v5135 = vunpack.c.l.b16 %v4571
        %v5136 = vunpack.c.h.b16 %v4571
        %v5137 = vunpack.c.l.b16 %v4572
        %v5138 = vunpack.c.h.b16 %v4572
        %v5139 = vunpack.c.l.b16 %v4573
        %v5140 = vunpack.c.h.b16 %v4573
        %v5141 = vunpack.c.l.b16 %v4574
        %v5142 = vunpack.c.h.b16 %v4574
        %v5143 = vunpack.c.l.b16 %v4575
        %v5144 = vunpack.c.h.b16 %v4575
        %v5145 = vunpack.c.l.b16 %v4576
        %v5146 = vunpack.c.h.b16 %v4576
        %v5147 = vunpack.c.l.b16 %v4577
        %v5148 = vunpack.c.h.b16 %v4577
        %v5149 = vunpack.c.l.b16 %v4578
        %v5150 = vunpack.c.h.b16 %v4578
        %v5151 = vunpack.c.l.b16 %v4579
        %v5152 = vunpack.c.h.b16 %v4579
        %v5153 = vunpack.c.l.b16 %v4580
        %v5154 = vunpack.c.h.b16 %v4580
        %v5155 = vunpack.c.l.b16 %v4581
        %v5156 = vunpack.c.h.b16 %v4581
        %v5157 = vunpack.c.l.b16 %v4582
        %v5158 = vunpack.c.h.b16 %v4582
        %v5159 = vunpack.c.l.b16 %v4583
        %v5160 = vunpack.c.h.b16 %v4583
        %v5161 = vunpack.c.l.b16 %v4584
        %v5162 = vunpack.c.h.b16 %v4584
        %v5163 = vunpack.c.l.b16 %v4585
        %v5164 = vunpack.c.h.b16 %v4585
        %v5165 = vunpack.c.l.b16 %v4586
        %v5166 = vunpack.c.h.b16 %v4586
        %v5167 = vunpack.c.l.b16 %v4587
        %v5168 = vunpack.c.h.b16 %v4587
        %v5169 = vunpack.c.l.b16 %v4588
        %v5170 = vunpack.c.h.b16 %v4588
        %v5171 = vunpack.c.l.b16 %v4589
        %v5172 = vunpack.c.h.b16 %v4589
        %v5173 = vunpack.c.l.b16 %v4590
        %v5174 = vunpack.c.h.b16 %v4590
        %v5175 = vunpack.c.l.b16 %v4591
        %v5176 = vunpack.c.h.b16 %v4591
        %v5177 = vunpack.c.l.b16 %v4592
        %v5178 = vunpack.c.h.b16 %v4592
        %v5179 = vunpack.c.l.b16 %v4593
        %v5180 = vunpack.c.h.b16 %v4593
        %v5181 = vunpack.c.l.b16 %v4594
        %v5182 = vunpack.c.h.b16 %v4594
        %v5183 = vunpack.c.l.b16 %v4595
        %v5184 = vunpack.c.h.b16 %v4595
        %v5185 = vunpack.c.l.b16 %v4596
        %v5186 = vunpack.c.h.b16 %v4596
        %v5187 = vunpack.c.l.b16 %v4597
        %v5188 = vunpack.c.h.b16 %v4597
        %v5189 = vunpack.c.l.b16 %v4598
        %v5190 = vunpack.c.h.b16 %v4598
        %v5191 = vunpack.c.l.b16 %v4599
        %v5192 = vunpack.c.h.b16 %v4599
        %v5193 = vunpack.c.l.b16 %v4600
        %v5194 = vunpack.c.h.b16 %v4600
        %v5195 = vunpack.c.l.b16 %v4601
        %v5196 = vunpack.c.h.b16 %v4601
        %v5197 = vunpack.c.l.b16 %v4602
        %v5198 = vunpack.c.h.b16 %v4602
        %v5199 = vunpack.c.l.b16 %v4603
        %v5200 = vunpack.c.h.b16 %v4603
        %v5201 = vunpack.c.l.b16 %v4604
        %v5202 = vunpack.c.h.b16 %v4604
        %v5203 = vunpack.c.l.b16 %v4605
        %v5204 = vunpack.c.h.b16 %v4605
        %v5205 = vunpack.c.l.b16 %v4606
        %v5206 = vunpack.c.h.b16 %v4606
        %v5207 = vunpack.c.l.b16 %v4607
        %v5208 = vunpack.c.h.b16 %v4607
        %v5209 = vunpack.c.l.b16 %v4608
        %v5210 = vunpack.c.h.b16 %v4608
        %v5211 = vunpack.c.l.b16 %v4609
        %v5212 = vunpack.c.h.b16 %v4609
        %v5213 = vunpack.c.l.b16 %v4610
        %v5214 = vunpack.c.h.b16 %v4610
        %v5215 = vunpack.c.l.b16 %v4611
        %v5216 = vunpack.c.h.b16 %v4611
        %v5217 = vunpack.c.l.b16 %v4612
        %v5218 = vunpack.c.h.b16 %v4612
        %v5219 = vunpack.c.l.b16 %v4613
        %v5220 = vunpack.c.h.b16 %v4613
        %v5221 = vunpack.c.l.b16 %v4614
        %v5222 = vunpack.c.h.b16 %v4614
        %v5223 = vunpack.c.l.b16 %v4615
        %v5224 = vunpack.c.h.b16 %v4615
        %v5225 = vunpack.c.l.b16 %v4616
        %v5226 = vunpack.c.h.b16 %v4616
        %v5227 = vunpack.c.l.b16 %v4617
        %v5228 = vunpack.c.h.b16 %v4617
        %v5229 = vunpack.c.l.b16 %v4618
        %v5230 = vunpack.c.h.b16 %v4618
        %v5231 = vunpack.c.l.b16 %v4619
        %v5232 = vunpack.c.h.b16 %v4619
        %v5233 = vunpack.c.l.b16 %v4620
        %v5234 = vunpack.c.h.b16 %v4620
        %v5235 = vunpack.c.l.b16 %v4621
        %v5236 = vunpack.c.h.b16 %v4621
        %v5237 = vunpack.c.l.b16 %v4622
        %v5238 = vunpack.c.h.b16 %v4622
        %v5239 = vunpack.c.l.b16 %v4623
        %v5240 = vunpack.c.h.b16 %v4623
        %v5241 = vunpack.c.l.b16 %v4624
        %v5242 = vunpack.c.h.b16 %v4624
        %v5243 = vunpack.c.l.b16 %v4625
        %v5244 = vunpack.c.h.b16 %v4625
        %v5245 = vunpack.c.l.b16 %v4626
        %v5246 = vunpack.c.h.b16 %v4626
        %v5247 = vunpack.c.l.b16 %v4627
        %v5248 = vunpack.c.h.b16 %v4627
        %v5249 = vunpack.c.l.b16 %v4628
        %v5250 = vunpack.c.h.b16 %v4628
        %v5251 = vunpack.c.l.b16 %v4629
        %v5252 = vunpack.c.h.b16 %v4629
        %v5253 = vunpack.c.l.b16 %v4630
        %v5254 = vunpack.c.h.b16 %v4630
        %v5255 = vunpack.c.l.b16 %v4631
        %v5256 = vunpack.c.h.b16 %v4631
        %v5257 = vunpack.c.l.b16 %v4632
        %v5258 = vunpack.c.h.b16 %v4632
        %v5259 = vunpack.c.l.b16 %v4633
        %v5260 = vunpack.c.h.b16 %v4633
        %v5261 = vunpack.c.l.b16 %v4634
        %v5262 = vunpack.c.h.b16 %v4634
        %v5263 = vunpack.c.l.b16 %v4635
        %v5264 = vunpack.c.h.b16 %v4635
        %v5265 = vunpack.c.l.b16 %v4636
        %v5266 = vunpack.c.h.b16 %v4636
        %v5267 = vunpack.c.l.b16 %v4637
        %v5268 = vunpack.c.h.b16 %v4637
        %v5269 = vunpack.c.l.b16 %v4638
        %v5270 = vunpack.c.h.b16 %v4638
        %v5271 = vunpack.c.l.b16 %v4639
        %v5272 = vunpack.c.h.b16 %v4639
        %v5273 = vunpack.c.l.b16 %v4640
        %v5274 = vunpack.c.h.b16 %v4640
        %v5275 = vunpack.c.l.b16 %v4641
        %v5276 = vunpack.c.h.b16 %v4641
        %v5277 = vunpack.c.l.b16 %v4642
        %v5278 = vunpack.c.h.b16 %v4642
        %v5279 = vunpack.c.l.b16 %v4643
        %v5280 = vunpack.c.h.b16 %v4643
        %v5281 = vunpack.c.l.b16 %v4644
        %v5282 = vunpack.c.h.b16 %v4644
        %v5283 = vunpack.c.l.b16 %v4645
        %v5284 = vunpack.c.h.b16 %v4645
        %v5285 = vunpack.c.l.b16 %v4646
        %v5286 = vunpack.c.h.b16 %v4646
        %v5287 = vunpack.c.l.b16 %v4647
        %v5288 = vunpack.c.h.b16 %v4647
        %v5289 = vunpack.c.l.b16 %v4648
        %v5290 = vunpack.c.h.b16 %v4648
        %v5291 = vunpack.c.l.b16 %v4649
        %v5292 = vunpack.c.h.b16 %v4649
        %v5293 = vunpack.c.l.b16 %v4650
        %v5294 = vunpack.c.h.b16 %v4650
        %v5295 = vunpack.c.l.b16 %v4651
        %v5296 = vunpack.c.h.b16 %v4651
        %v5297 = vunpack.c.l.b16 %v4652
        %v5298 = vunpack.c.h.b16 %v4652
        %v5299 = vunpack.c.l.b16 %v4653
        %v5300 = vunpack.c.h.b16 %v4653
        %v5301 = vunpack.c.l.b16 %v4654
        %v5302 = vunpack.c.h.b16 %v4654
        %v5303 = vunpack.c.l.b16 %v4655
        %v5304 = vunpack.c.h.b16 %v4655
        %v5305 = vunpack.c.l.b16 %v4656
        %v5306 = vunpack.c.h.b16 %v4656
        %v5307 = vunpack.c.l.b16 %v4657
        %v5308 = vunpack.c.h.b16 %v4657
        %v5309 = vunpack.c.l.b16 %v4658
        %v5310 = vunpack.c.h.b16 %v4658
        %v5311 = vunpack.c.l.b16 %v4659
        %v5312 = vunpack.c.h.b16 %v4659
        %v5313 = vunpack.c.l.b16 %v4660
        %v5314 = vunpack.c.h.b16 %v4660
        %v5315 = vunpack.c.l.b16 %v4661
        %v5316 = vunpack.c.h.b16 %v4661
        %v5317 = vunpack.c.l.b16 %v4662
        %v5318 = vunpack.c.h.b16 %v4662
        %v5319 = vunpack.c.l.b16 %v4663
        %v5320 = vunpack.c.h.b16 %v4663
        %v5321 = vunpack.c.l.b16 %v4664
        %v5322 = vunpack.c.h.b16 %v4664
        %v5323 = vunpack.c.l.b16 %v4665
        %v5324 = vunpack.c.h.b16 %v4665
        %v5325 = vunpack.c.l.b16 %v4666
        %v5326 = vunpack.c.h.b16 %v4666
        %v5327 = vunpack.c.l.b16 %v4667
        %v5328 = vunpack.c.h.b16 %v4667
        %v5329 = vunpack.c.l.b16 %v4668
        %v5330 = vunpack.c.h.b16 %v4668
        %v5331 = vunpack.c.l.b16 %v4669
        %v5332 = vunpack.c.h.b16 %v4669
        %v5333 = vunpack.c.l.b16 %v4670
        %v5334 = vunpack.c.h.b16 %v4670
        %v5335 = vunpack.c.l.b16 %v4671
        %v5336 = vunpack.c.h.b16 %v4671
        %v5337 = vunpack.c.l.b16 %v4672
        %v5338 = vunpack.c.h.b16 %v4672
        %v5339 = vunpack.c.l.b16 %v4673
        %v5340 = vunpack.c.h.b16 %v4673
        %v5341 = vunpack.c.l.b16 %v4674
        %v5342 = vunpack.c.h.b16 %v4674
        %v5343 = vunpack.c.l.b16 %v4675
        %v5344 = vunpack.c.h.b16 %v4675
        %v5345 = vunpack.c.l.b16 %v4676
        %v5346 = vunpack.c.h.b16 %v4676
        %v5347 = vunpack.c.l.b16 %v4677
        %v5348 = vunpack.c.h.b16 %v4677
        %v5349 = vunpack.c.l.b16 %v4678
        %v5350 = vunpack.c.h.b16 %v4678
        %v5351 = vunpack.c.l.b16 %v4679
        %v5352 = vunpack.c.h.b16 %v4679
        %v5353 = vunpack.c.l.b16 %v4680
        %v5354 = vunpack.c.h.b16 %v4680
        %v5355 = vunpack.c.l.b16 %v4681
        %v5356 = vunpack.c.h.b16 %v4681
        %v5357 = vunpack.c.l.b16 %v4682
        %v5358 = vunpack.c.h.b16 %v4682
        %v5359 = vunpack.c.l.b16 %v4683
        %v5360 = vunpack.c.h.b16 %v4683
        %v5361 = vunpack.c.l.b16 %v4684
        %v5362 = vunpack.c.h.b16 %v4684
        %v5363 = vunpack.c.l.b16 %v4685
        %v5364 = vunpack.c.h.b16 %v4685
        %v5365 = vunpack.c.l.b16 %v4686
        %v5366 = vunpack.c.h.b16 %v4686
        %v5367 = vunpack.c.l.b16 %v4687
        %v5368 = vunpack.c.h.b16 %v4687
        %v5369 = vunpack.c.l.b16 %v4688
        %v5370 = vunpack.c.h.b16 %v4688
        %v5371 = vunpack.c.l.b16 %v4689
        %v5372 = vunpack.c.h.b16 %v4689
        %v5373 = vunpack.c.l.b16 %v4690
        %v5374 = vunpack.c.h.b16 %v4690
        %v5375 = vunpack.c.l.b16 %v4691
        %v5376 = vunpack.c.h.b16 %v4691
        %v5377 = vunpack.c.l.b16 %v4692
        %v5378 = vunpack.c.h.b16 %v4692
        %v5379 = vunpack.c.l.b16 %v4693
        %v5380 = vunpack.c.h.b16 %v4693
        %v5381 = vunpack.c.l.b16 %v4694
        %v5382 = vunpack.c.h.b16 %v4694
        %v5383 = vunpack.c.l.b16 %v4695
        %v5384 = vunpack.c.h.b16 %v4695
        %v5385 = vunpack.c.l.b16 %v4696
        %v5386 = vunpack.c.h.b16 %v4696
        %v5387 = vunpack.c.l.b16 %v4697
        %v5388 = vunpack.c.h.b16 %v4697
        %v5389 = vunpack.c.l.b16 %v4698
        %v5390 = vunpack.c.h.b16 %v4698
        %v5391 = vunpack.c.l.b16 %v4699
        %v5392 = vunpack.c.h.b16 %v4699
        %v5393 = vunpack.c.l.b16 %v4700
        %v5394 = vunpack.c.h.b16 %v4700
        %v5395 = vunpack.c.l.b16 %v4701
        %v5396 = vunpack.c.h.b16 %v4701
        %v5397 = vunpack.c.l.b16 %v4702
        %v5398 = vunpack.c.h.b16 %v4702
        %v5399 = vunpack.c.l.b16 %v4703
        %v5400 = vunpack.c.h.b16 %v4703
        %v5401 = vunpack.c.l.b16 %v4704
        %v5402 = vunpack.c.h.b16 %v4704
        %v5403 = vunpack.c.l.b16 %v4705
        %v5404 = vunpack.c.h.b16 %v4705
        %v5405 = vunpack.c.l.b16 %v4706
        %v5406 = vunpack.c.h.b16 %v4706
        %v5407 = vunpack.c.l.b16 %v4707
        %v5408 = vunpack.c.h.b16 %v4707
        %v5409 = vunpack.c.l.b16 %v4708
        %v5410 = vunpack.c.h.b16 %v4708
        %v5411 = vunpack.c.l.b16 %v4709
        %v5412 = vunpack.c.h.b16 %v4709
        %v5413 = vunpack.c.l.b16 %v4710
        %v5414 = vunpack.c.h.b16 %v4710
        %v5415 = vunpack.c.l.b16 %v4711
        %v5416 = vunpack.c.h.b16 %v4711
        %v5417 = vunpack.c.l.b16 %v4712
        %v5418 = vunpack.c.h.b16 %v4712
        %v5419 = vunpack.c.l.b16 %v4713
        %v5420 = vunpack.c.h.b16 %v4713
        %v5421 = vunpack.c.l.b16 %v4714
        %v5422 = vunpack.c.h.b16 %v4714
        %v5423 = vunpack.c.l.b16 %v4715
        %v5424 = vunpack.c.h.b16 %v4715
        %v5425 = vunpack.c.l.b16 %v4716
        %v5426 = vunpack.c.h.b16 %v4716
        %v5427 = vunpack.c.l.b16 %v4717
        %v5428 = vunpack.c.h.b16 %v4717
        %v5429 = vunpack.c.l.b16 %v4718
        %v5430 = vunpack.c.h.b16 %v4718
        %v5431 = vunpack.c.l.b16 %v4719
        %v5432 = vunpack.c.h.b16 %v4719
        %v5433 = vunpack.c.l.b16 %v4720
        %v5434 = vunpack.c.h.b16 %v4720
        %v5435 = vunpack.c.l.b16 %v4721
        %v5436 = vunpack.c.h.b16 %v4721
        %v5437 = vunpack.c.l.b16 %v4722
        %v5438 = vunpack.c.h.b16 %v4722
        %v5439 = vunpack.c.l.b16 %v4723
        %v5440 = vunpack.c.h.b16 %v4723
        %v5441 = vunpack.c.l.b16 %v4724
        %v5442 = vunpack.c.h.b16 %v4724
        %v5443 = vunpack.c.l.b16 %v4725
        %v5444 = vunpack.c.h.b16 %v4725
        %v5445 = vunpack.c.l.b16 %v4726
        %v5446 = vunpack.c.h.b16 %v4726
        %v5447 = vunpack.c.l.b16 %v4727
        %v5448 = vunpack.c.h.b16 %v4727
        %v5449 = vunpack.c.l.b16 %v4728
        %v5450 = vunpack.c.h.b16 %v4728
        %v5451 = vunpack.c.l.b16 %v4729
        %v5452 = vunpack.c.h.b16 %v4729
        %v5453 = vunpack.c.l.b16 %v4730
        %v5454 = vunpack.c.h.b16 %v4730
        %v5455 = vunpack.c.l.b16 %v4731
        %v5456 = vunpack.c.h.b16 %v4731
        %v5457 = vunpack.c.l.b16 %v4732
        %v5458 = vunpack.c.h.b16 %v4732
        %v5459 = vunpack.c.l.b16 %v4733
        %v5460 = vunpack.c.h.b16 %v4733
        %v5461 = vunpack.c.l.b16 %v4734
        %v5462 = vunpack.c.h.b16 %v4734
        %v5463 = vunpack.c.l.b16 %v4735
        %v5464 = vunpack.c.h.b16 %v4735
        %v5465 = vunpack.c.l.b16 %v4736
        %v5466 = vunpack.c.h.b16 %v4736
        %v5467 = vunpack.c.l.b16 %v4737
        %v5468 = vunpack.c.h.b16 %v4737
        %v5469 = vunpack.c.l.b16 %v4738
        %v5470 = vunpack.c.h.b16 %v4738
        %v5471 = vunpack.c.l.b16 %v4739
        %v5472 = vunpack.c.h.b16 %v4739
        %v5473 = vunpack.c.l.b16 %v4740
        %v5474 = vunpack.c.h.b16 %v4740
        %v5475 = vunpack.c.l.b16 %v4741
        %v5476 = vunpack.c.h.b16 %v4741
        %v5477 = vunpack.c.l.b16 %v4742
        %v5478 = vunpack.c.h.b16 %v4742
        %v5479 = vunpack.c.l.b16 %v4743
        %v5480 = vunpack.c.h.b16 %v4743
        %v5481 = vunpack.c.l.b16 %v4744
        %v5482 = vunpack.c.h.b16 %v4744
        %v5483 = vunpack.c.l.b16 %v4745
        %v5484 = vunpack.c.h.b16 %v4745
        %v5485 = vunpack.c.l.b16 %v4746
        %v5486 = vunpack.c.h.b16 %v4746
        %v5487 = vunpack.c.l.b16 %v4747
        %v5488 = vunpack.c.h.b16 %v4747
        %v5489 = vunpack.c.l.b16 %v4748
        %v5490 = vunpack.c.h.b16 %v4748
        %v5491 = vunpack.c.l.b16 %v4749
        %v5492 = vunpack.c.h.b16 %v4749
        %v5493 = vunpack.c.l.b16 %v4750
        %v5494 = vunpack.c.h.b16 %v4750
        %v5495 = vunpack.c.l.b16 %v4751
        %v5496 = vunpack.c.h.b16 %v4751
        %v5497 = vunpack.c.l.b16 %v4752
        %v5498 = vunpack.c.h.b16 %v4752
        %v5499 = vunpack.c.l.b16 %v4753
        %v5500 = vunpack.c.h.b16 %v4753
        %v5501 = vunpack.c.l.b16 %v4754
        %v5502 = vunpack.c.h.b16 %v4754
        %v5503 = vunpack.c.l.b16 %v4755
        %v5504 = vunpack.c.h.b16 %v4755
        %v5505 = vunpack.c.l.b16 %v4756
        %v5506 = vunpack.c.h.b16 %v4756
        %v5507 = vunpack.c.l.b16 %v4757
        %v5508 = vunpack.c.h.b16 %v4757
        %v5509 = vunpack.c.l.b16 %v4758
        %v5510 = vunpack.c.h.b16 %v4758
        %v5511 = vunpack.c.l.b16 %v4759
        %v5512 = vunpack.c.h.b16 %v4759
        %v5513 = vunpack.c.l.b16 %v4760
        %v5514 = vunpack.c.h.b16 %v4760
        %v5515 = vunpack.c.l.b16 %v4761
        %v5516 = vunpack.c.h.b16 %v4761
        %v5517 = vunpack.c.l.b16 %v4762
        %v5518 = vunpack.c.h.b16 %v4762
        %v5519 = vunpack.c.l.b16 %v4763
        %v5520 = vunpack.c.h.b16 %v4763
        %v5521 = vunpack.c.l.b16 %v4764
        %v5522 = vunpack.c.h.b16 %v4764
        %v5523 = vunpack.c.l.b16 %v4765
        %v5524 = vunpack.c.h.b16 %v4765
        %v5525 = vunpack.c.l.b16 %v4766
        %v5526 = vunpack.c.h.b16 %v4766
        %v5527 = vunpack.c.l.b16 %v4767
        %v5528 = vunpack.c.h.b16 %v4767
        %v5529 = vunpack.c.l.b16 %v4768
        %v5530 = vunpack.c.h.b16 %v4768
        %v5531 = vunpack.c.l.b16 %v4769
        %v5532 = vunpack.c.h.b16 %v4769
        %v5533 = vunpack.c.l.b16 %v4770
        %v5534 = vunpack.c.h.b16 %v4770
        %v5535 = vunpack.c.l.b16 %v4771
        %v5536 = vunpack.c.h.b16 %v4771
        %v5537 = vunpack.c.l.b16 %v4772
        %v5538 = vunpack.c.h.b16 %v4772
        %v5539 = vunpack.c.l.b16 %v4773
        %v5540 = vunpack.c.h.b16 %v4773
        %v5541 = vunpack.c.l.b16 %v4774
        %v5542 = vunpack.c.h.b16 %v4774
        %v5543 = vunpack.c.l.b16 %v4775
        %v5544 = vunpack.c.h.b16 %v4775
        %v5545 = vunpack.c.l.b16 %v4776
        %v5546 = vunpack.c.h.b16 %v4776
        %v5547 = vunpack.c.l.b16 %v4777
        %v5548 = vunpack.c.h.b16 %v4777
        %v5549 = vunpack.c.l.b16 %v4778
        %v5550 = vunpack.c.h.b16 %v4778
        %v5551 = vunpack.c.l.b16 %v4779
        %v5552 = vunpack.c.h.b16 %v4779
        %v5553 = vunpack.c.l.b16 %v4780
        %v5554 = vunpack.c.h.b16 %v4780
        %v5555 = vunpack.c.l.b16 %v4781
        %v5556 = vunpack.c.h.b16 %v4781
        %v5557 = vunpack.c.l.b16 %v4782
        %v5558 = vunpack.c.h.b16 %v4782
        %v5559 = vunpack.c.l.b16 %v4783
        %v5560 = vunpack.c.h.b16 %v4783
        %v5561 = vunpack.c.l.b16 %v4784
        %v5562 = vunpack.c.h.b16 %v4784
        %v5563 = vunpack.c.l.b16 %v4785
        %v5564 = vunpack.c.h.b16 %v4785
        %v5565 = vunpack.c.l.b16 %v4786
        %v5566 = vunpack.c.h.b16 %v4786
        %v5567 = vunpack.c.l.b16 %v4787
        %v5568 = vunpack.c.h.b16 %v4787
        %v5569 = vunpack.c.l.b16 %v4788
        %v5570 = vunpack.c.h.b16 %v4788
        %v5571 = vunpack.c.l.b16 %v4789
        %v5572 = vunpack.c.h.b16 %v4789
        %v5573 = vunpack.c.l.b16 %v4790
        %v5574 = vunpack.c.h.b16 %v4790
        %v5575 = vunpack.c.l.b16 %v4791
        %v5576 = vunpack.c.h.b16 %v4791
        %v5577 = vunpack.c.l.b16 %v4792
        %v5578 = vunpack.c.h.b16 %v4792
        %v5579 = vunpack.c.l.b16 %v4793
        %v5580 = vunpack.c.h.b16 %v4793
        %v5581 = vunpack.c.l.b16 %v4794
        %v5582 = vunpack.c.h.b16 %v4794
        %v5583 = vunpack.c.l.b16 %v4795
        %v5584 = vunpack.c.h.b16 %v4795
        %v5585 = vunpack.c.l.b16 %v4796
        %v5586 = vunpack.c.h.b16 %v4796
        %v5587 = vpack.c.b16 %v5079, %v5075
        %v5588 = vpack.c.b16 %v5080, %v5076
        %v5589 = vpack.c.b16 %v5081, %v5077
        %v5590 = vpack.c.b16 %v5082, %v5078
        %v5591 = vpack.c.b16 %v5087, %v5083
        %v5592 = vpack.c.b16 %v5088, %v5084
        %v5593 = vpack.c.b16 %v5089, %v5085
        %v5594 = vpack.c.b16 %v5090, %v5086
        %v5595 = vpack.c.b16 %v5095, %v5091
        %v5596 = vpack.c.b16 %v5096, %v5092
        %v5597 = vpack.c.b16 %v5097, %v5093
        %v5598 = vpack.c.b16 %v5098, %v5094
        %v5599 = vpack.c.b16 %v5103, %v5099
        %v5600 = vpack.c.b16 %v5104, %v5100
        %v5601 = vpack.c.b16 %v5105, %v5101
        %v5602 = vpack.c.b16 %v5106, %v5102
        %v5603 = vpack.c.b16 %v5111, %v5107
        %v5604 = vpack.c.b16 %v5112, %v5108
        %v5605 = vpack.c.b16 %v5113, %v5109
        %v5606 = vpack.c.b16 %v5114, %v5110
        %v5607 = vpack.c.b16 %v5119, %v5115
        %v5608 = vpack.c.b16 %v5120, %v5116
        %v5609 = vpack.c.b16 %v5121, %v5117
        %v5610 = vpack.c.b16 %v5122, %v5118
        %v5611 = vpack.c.b16 %v5127, %v5123
        %v5612 = vpack.c.b16 %v5128, %v5124
        %v5613 = vpack.c.b16 %v5129, %v5125
        %v5614 = vpack.c.b16 %v5130, %v5126
        %v5615 = vpack.c.b16 %v5135, %v5131
        %v5616 = vpack.c.b16 %v5136, %v5132
        %v5617 = vpack.c.b16 %v5137, %v5133
        %v5618 = vpack.c.b16 %v5138, %v5134
        %v5619 = vpack.c.b16 %v5143, %v5139
        %v5620 = vpack.c.b16 %v5144, %v5140
        %v5621 = vpack.c.b16 %v5145, %v5141
        %v5622 = vpack.c.b16 %v5146, %v5142
        %v5623 = vpack.c.b16 %v5151, %v5147
        %v5624 = vpack.c.b16 %v5152, %v5148
        %v5625 = vpack.c.b16 %v5153, %v5149
        %v5626 = vpack.c.b16 %v5154, %v5150
        %v5627 = vpack.c.b16 %v5159, %v5155
        %v5628 = vpack.c.b16 %v5160, %v5156
        %v5629 = vpack.c.b16 %v5161, %v5157
        %v5630 = vpack.c.b16 %v5162, %v5158
        %v5631 = vpack.c.b16 %v5167, %v5163
        %v5632 = vpack.c.b16 %v5168, %v5164
        %v5633 = vpack.c.b16 %v5169, %v5165
        %v5634 = vpack.c.b16 %v5170, %v5166
        %v5635 = vpack.c.b16 %v5175, %v5171
        %v5636 = vpack.c.b16 %v5176, %v5172
        %v5637 = vpack.c.b16 %v5177, %v5173
        %v5638 = vpack.c.b16 %v5178, %v5174
        %v5639 = vpack.c.b16 %v5183, %v5179
        %v5640 = vpack.c.b16 %v5184, %v5180
        %v5641 = vpack.c.b16 %v5185, %v5181
        %v5642 = vpack.c.b16 %v5186, %v5182
        %v5643 = vpack.c.b16 %v5191, %v5187
        %v5644 = vpack.c.b16 %v5192, %v5188
        %v5645 = vpack.c.b16 %v5193, %v5189
        %v5646 = vpack.c.b16 %v5194, %v5190
        %v5647 = vpack.c.b16 %v5199, %v5195
        %v5648 = vpack.c.b16 %v5200, %v5196
        %v5649 = vpack.c.b16 %v5201, %v5197
        %v5650 = vpack.c.b16 %v5202, %v5198
        %v5651 = vpack.c.b16 %v5207, %v5203
        %v5652 = vpack.c.b16 %v5208, %v5204
        %v5653 = vpack.c.b16 %v5209, %v5205
        %v5654 = vpack.c.b16 %v5210, %v5206
        %v5655 = vpack.c.b16 %v5215, %v5211
        %v5656 = vpack.c.b16 %v5216, %v5212
        %v5657 = vpack.c.b16 %v5217, %v5213
        %v5658 = vpack.c.b16 %v5218, %v5214
        %v5659 = vpack.c.b16 %v5223, %v5219
        %v5660 = vpack.c.b16 %v5224, %v5220
        %v5661 = vpack.c.b16 %v5225, %v5221
        %v5662 = vpack.c.b16 %v5226, %v5222
        %v5663 = vpack.c.b16 %v5231, %v5227
        %v5664 = vpack.c.b16 %v5232, %v5228
        %v5665 = vpack.c.b16 %v5233, %v5229
        %v5666 = vpack.c.b16 %v5234, %v5230
        %v5667 = vpack.c.b16 %v5239, %v5235
        %v5668 = vpack.c.b16 %v5240, %v5236
        %v5669 = vpack.c.b16 %v5241, %v5237
        %v5670 = vpack.c.b16 %v5242, %v5238
        %v5671 = vpack.c.b16 %v5247, %v5243
        %v5672 = vpack.c.b16 %v5248, %v5244
        %v5673 = vpack.c.b16 %v5249, %v5245
        %v5674 = vpack.c.b16 %v5250, %v5246
        %v5675 = vpack.c.b16 %v5255, %v5251
        %v5676 = vpack.c.b16 %v5256, %v5252
        %v5677 = vpack.c.b16 %v5257, %v5253
        %v5678 = vpack.c.b16 %v5258, %v5254
        %v5679 = vpack.c.b16 %v5263, %v5259
        %v5680 = vpack.c.b16 %v5264, %v5260
        %v5681 = vpack.c.b16 %v5265, %v5261
        %v5682 = vpack.c.b16 %v5266, %v5262
        %v5683 = vpack.c.b16 %v5271, %v5267
        %v5684 = vpack.c.b16 %v5272, %v5268
        %v5685 = vpack.c.b16 %v5273, %v5269
        %v5686 = vpack.c.b16 %v5274, %v5270
        %v5687 = vpack.c.b16 %v5279, %v5275
        %v5688 = vpack.c.b16 %v5280, %v5276
        %v5689 = vpack.c.b16 %v5281, %v5277
        %v5690 = vpack.c.b16 %v5282, %v5278
        %v5691 = vpack.c.b16 %v5287, %v5283
        %v5692 = vpack.c.b16 %v5288, %v5284
        %v5693 = vpack.c.b16 %v5289, %v5285
        %v5694 = vpack.c.b16 %v5290, %v5286
        %v5695 = vpack.c.b16 %v5295, %v5291
        %v5696 = vpack.c.b16 %v5296, %v5292
        %v5697 = vpack.c.b16 %v5297, %v5293
        %v5698 = vpack.c.b16 %v5298, %v5294
        %v5699 = vpack.c.b16 %v5303, %v5299
        %v5700 = vpack.c.b16 %v5304, %v5300
        %v5701 = vpack.c.b16 %v5305, %v5301
        %v5702 = vpack.c.b16 %v5306, %v5302
        %v5703 = vpack.c.b16 %v5311, %v5307
        %v5704 = vpack.c.b16 %v5312, %v5308
        %v5705 = vpack.c.b16 %v5313, %v5309
        %v5706 = vpack.c.b16 %v5314, %v5310
        %v5707 = vpack.c.b16 %v5319, %v5315
        %v5708 = vpack.c.b16 %v5320, %v5316
        %v5709 = vpack.c.b16 %v5321, %v5317
        %v5710 = vpack.c.b16 %v5322, %v5318
        %v5711 = vpack.c.b16 %v5327, %v5323
        %v5712 = vpack.c.b16 %v5328, %v5324
        %v5713 = vpack.c.b16 %v5329, %v5325
        %v5714 = vpack.c.b16 %v5330, %v5326
        %v5715 = vpack.c.b16 %v5335, %v5331
        %v5716 = vpack.c.b16 %v5336, %v5332
        %v5717 = vpack.c.b16 %v5337, %v5333
        %v5718 = vpack.c.b16 %v5338, %v5334
        %v5719 = vpack.c.b16 %v5343, %v5339
        %v5720 = vpack.c.b16 %v5344, %v5340
        %v5721 = vpack.c.b16 %v5345, %v5341
        %v5722 = vpack.c.b16 %v5346, %v5342
        %v5723 = vpack.c.b16 %v5351, %v5347
        %v5724 = vpack.c.b16 %v5352, %v5348
        %v5725 = vpack.c.b16 %v5353, %v5349
        %v5726 = vpack.c.b16 %v5354, %v5350
        %v5727 = vpack.c.b16 %v5359, %v5355
        %v5728 = vpack.c.b16 %v5360, %v5356
        %v5729 = vpack.c.b16 %v5361, %v5357
        %v5730 = vpack.c.b16 %v5362, %v5358
        %v5731 = vpack.c.b16 %v5367, %v5363
        %v5732 = vpack.c.b16 %v5368, %v5364
        %v5733 = vpack.c.b16 %v5369, %v5365
        %v5734 = vpack.c.b16 %v5370, %v5366
        %v5735 = vpack.c.b16 %v5375, %v5371
        %v5736 = vpack.c.b16 %v5376, %v5372
        %v5737 = vpack.c.b16 %v5377, %v5373
        %v5738 = vpack.c.b16 %v5378, %v5374
        %v5739 = vpack.c.b16 %v5383, %v5379
        %v5740 = vpack.c.b16 %v5384, %v5380
        %v5741 = vpack.c.b16 %v5385, %v5381
        %v5742 = vpack.c.b16 %v5386, %v5382
        %v5743 = vpack.c.b16 %v5391, %v5387
        %v5744 = vpack.c.b16 %v5392, %v5388
        %v5745 = vpack.c.b16 %v5393, %v5389
        %v5746 = vpack.c.b16 %v5394, %v5390
        %v5747 = vpack.c.b16 %v5399, %v5395
        %v5748 = vpack.c.b16 %v5400, %v5396
        %v5749 = vpack.c.b16 %v5401, %v5397
        %v5750 = vpack.c.b16 %v5402, %v5398
        %v5751 = vpack.c.b16 %v5407, %v5403
        %v5752 = vpack.c.b16 %v5408, %v5404
        %v5753 = vpack.c.b16 %v5409, %v5405
        %v5754 = vpack.c.b16 %v5410, %v5406
        %v5755 = vpack.c.b16 %v5415, %v5411
        %v5756 = vpack.c.b16 %v5416, %v5412
        %v5757 = vpack.c.b16 %v5417, %v5413
        %v5758 = vpack.c.b16 %v5418, %v5414
        %v5759 = vpack.c.b16 %v5423, %v5419
        %v5760 = vpack.c.b16 %v5424, %v5420
        %v5761 = vpack.c.b16 %v5425, %v5421
        %v5762 = vpack.c.b16 %v5426, %v5422
        %v5763 = vpack.c.b16 %v5431, %v5427
        %v5764 = vpack.c.b16 %v5432, %v5428
        %v5765 = vpack.c.b16 %v5433, %v5429
        %v5766 = vpack.c.b16 %v5434, %v5430
        %v5767 = vpack.c.b16 %v5439, %v5435
        %v5768 = vpack.c.b16 %v5440, %v5436
        %v5769 = vpack.c.b16 %v5441, %v5437
        %v5770 = vpack.c.b16 %v5442, %v5438
        %v5771 = vpack.c.b16 %v5447, %v5443
        %v5772 = vpack.c.b16 %v5448, %v5444
        %v5773 = vpack.c.b16 %v5449, %v5445
        %v5774 = vpack.c.b16 %v5450, %v5446
        %v5775 = vpack.c.b16 %v5455, %v5451
        %v5776 = vpack.c.b16 %v5456, %v5452
        %v5777 = vpack.c.b16 %v5457, %v5453
        %v5778 = vpack.c.b16 %v5458, %v5454
        %v5779 = vpack.c.b16 %v5463, %v5459
        %v5780 = vpack.c.b16 %v5464, %v5460
        %v5781 = vpack.c.b16 %v5465, %v5461
        %v5782 = vpack.c.b16 %v5466, %v5462
        %v5783 = vpack.c.b16 %v5471, %v5467
        %v5784 = vpack.c.b16 %v5472, %v5468
        %v5785 = vpack.c.b16 %v5473, %v5469
        %v5786 = vpack.c.b16 %v5474, %v5470
        %v5787 = vpack.c.b16 %v5479, %v5475
        %v5788 = vpack.c.b16 %v5480, %v5476
        %v5789 = vpack.c.b16 %v5481, %v5477
        %v5790 = vpack.c.b16 %v5482, %v5478
        %v5791 = vpack.c.b16 %v5487, %v5483
        %v5792 = vpack.c.b16 %v5488, %v5484
        %v5793 = vpack.c.b16 %v5489, %v5485
        %v5794 = vpack.c.b16 %v5490, %v5486
        %v5795 = vpack.c.b16 %v5495, %v5491
        %v5796 = vpack.c.b16 %v5496, %v5492
        %v5797 = vpack.c.b16 %v5497, %v5493
        %v5798 = vpack.c.b16 %v5498, %v5494
        %v5799 = vpack.c.b16 %v5503, %v5499
        %v5800 = vpack.c.b16 %v5504, %v5500
        %v5801 = vpack.c.b16 %v5505, %v5501
        %v5802 = vpack.c.b16 %v5506, %v5502
        %v5803 = vpack.c.b16 %v5511, %v5507
        %v5804 = vpack.c.b16 %v5512, %v5508
        %v5805 = vpack.c.b16 %v5513, %v5509
        %v5806 = vpack.c.b16 %v5514, %v5510
        %v5807 = vpack.c.b16 %v5519, %v5515
        %v5808 = vpack.c.b16 %v5520, %v5516
        %v5809 = vpack.c.b16 %v5521, %v5517
        %v5810 = vpack.c.b16 %v5522, %v5518
        %v5811 = vpack.c.b16 %v5527, %v5523
        %v5812 = vpack.c.b16 %v5528, %v5524
        %v5813 = vpack.c.b16 %v5529, %v5525
        %v5814 = vpack.c.b16 %v5530, %v5526
        %v5815 = vpack.c.b16 %v5535, %v5531
        %v5816 = vpack.c.b16 %v5536, %v5532
        %v5817 = vpack.c.b16 %v5537, %v5533
        %v5818 = vpack.c.b16 %v5538, %v5534
        %v5819 = vpack.c.b16 %v5543, %v5539
        %v5820 = vpack.c.b16 %v5544, %v5540
        %v5821 = vpack.c.b16 %v5545, %v5541
        %v5822 = vpack.c.b16 %v5546, %v5542
        %v5823 = vpack.c.b16 %v5551, %v5547
        %v5824 = vpack.c.b16 %v5552, %v5548
        %v5825 = vpack.c.b16 %v5553, %v5549
        %v5826 = vpack.c.b16 %v5554, %v5550
        %v5827 = vpack.c.b16 %v5559, %v5555
        %v5828 = vpack.c.b16 %v5560, %v5556
        %v5829 = vpack.c.b16 %v5561, %v5557
        %v5830 = vpack.c.b16 %v5562, %v5558
        %v5831 = vpack.c.b16 %v5567, %v5563
        %v5832 = vpack.c.b16 %v5568, %v5564
        %v5833 = vpack.c.b16 %v5569, %v5565
        %v5834 = vpack.c.b16 %v5570, %v5566
        %v5835 = vpack.c.b16 %v5575, %v5571
        %v5836 = vpack.c.b16 %v5576, %v5572
        %v5837 = vpack.c.b16 %v5577, %v5573
        %v5838 = vpack.c.b16 %v5578, %v5574
        %v5839 = vpack.c.b16 %v5583, %v5579
        %v5840 = vpack.c.b16 %v5584, %v5580
        %v5841 = vpack.c.b16 %v5585, %v5581
        %v5842 = vpack.c.b16 %v5586, %v5582
        %6099 = vmatprep.subr.bf16.mxu0 %v5588
        %6100 = vmatpush1.bf16.msra.mxu0 %v5587
        %6101 = vmatprep.subr.bf16.mxu0 %v5592
        %6102 = vmatpush1.bf16.msra.mxu0 %v5591
        %6103 = vmatprep.subr.bf16.mxu0 %v5596
        %6104 = vmatpush1.bf16.msra.mxu0 %v5595
        %6105 = vmatprep.subr.bf16.mxu0 %v5600
        %6106 = vmatpush1.bf16.msra.mxu0 %v5599
        %6107 = vmatprep.subr.bf16.mxu0 %v5604
        %6108 = vmatpush1.bf16.msra.mxu0 %v5603
        %6109 = vmatprep.subr.bf16.mxu0 %v5608
        %6110 = vmatpush1.bf16.msra.mxu0 %v5607
        %6111 = vmatprep.subr.bf16.mxu0 %v5612
        %6112 = vmatpush1.bf16.msra.mxu0 %v5611
        %6113 = vmatprep.subr.bf16.mxu0 %v5616
        %6114 = vmatpush1.bf16.msra.mxu0 %v5615
        %6115 = vmatprep.subr.bf16.mxu0 %v5620
        %6116 = vmatpush1.bf16.msra.mxu0 %v5619
        %6117 = vmatprep.subr.bf16.mxu0 %v5624
        %6118 = vmatpush1.bf16.msra.mxu0 %v5623
        %6119 = vmatprep.subr.bf16.mxu0 %v5628
        %6120 = vmatpush1.bf16.msra.mxu0 %v5627
        %6121 = vmatprep.subr.bf16.mxu0 %v5632
        %6122 = vmatpush1.bf16.msra.mxu0 %v5631
        %6123 = vmatprep.subr.bf16.mxu0 %v5636
        %6124 = vmatpush1.bf16.msra.mxu0 %v5635
        %6125 = vmatprep.subr.bf16.mxu0 %v5640
        %6126 = vmatpush1.bf16.msra.mxu0 %v5639
        %6127 = vmatprep.subr.bf16.mxu0 %v5644
        %6128 = vmatpush1.bf16.msra.mxu0 %v5643
        %6129 = vmatprep.subr.bf16.mxu0 %v5648
        %6130 = vmatpush1.bf16.msra.mxu0 %v5647
        %6131 = vmatprep.mubr.bf16.mxu0 %v4534
        %6132 = vmatmul.mubr.bf16.gmra.mrb[0].mxu0 %v4533
        %v6133 = vpop.f32.mrb[0].mxu0
        %v6134 = vadd.f32 %v4802, %v6133
        %v6135 = vpop.f32.mrb[0].mxu0
        %v6136 = vadd.f32 %v4806, %v6135
        %v6137 = vpop.f32.mrb[0].mxu0
        %v6138 = vadd.f32 %v4802, %v6137
        %v6139 = vpop.f32.mrb[0].mxu0
        %v6140 = vadd.f32 %v4806, %v6139
        %6141 = vdwg.mxu0
        %6142 = vmatprep.subr.bf16.mxu0 %v5652
        %6143 = vmatpush1.bf16.msra.mxu0 %v5651
        %6144 = vmatprep.subr.bf16.mxu0 %v5656
        %6145 = vmatpush1.bf16.msra.mxu0 %v5655
        %6146 = vmatprep.subr.bf16.mxu0 %v5660
        %6147 = vmatpush1.bf16.msra.mxu0 %v5659
        %6148 = vmatprep.subr.bf16.mxu0 %v5664
        %6149 = vmatpush1.bf16.msra.mxu0 %v5663
        %6150 = vmatprep.subr.bf16.mxu0 %v5668
        %6151 = vmatpush1.bf16.msra.mxu0 %v5667
        %6152 = vmatprep.subr.bf16.mxu0 %v5672
        %6153 = vmatpush1.bf16.msra.mxu0 %v5671
        %6154 = vmatprep.subr.bf16.mxu0 %v5676
        %6155 = vmatpush1.bf16.msra.mxu0 %v5675
        %6156 = vmatprep.subr.bf16.mxu0 %v5680
        %6157 = vmatpush1.bf16.msra.mxu0 %v5679
        %6158 = vmatprep.subr.bf16.mxu0 %v5684
        %6159 = vmatpush1.bf16.msra.mxu0 %v5683
        %6160 = vmatprep.subr.bf16.mxu0 %v5688
        %6161 = vmatpush1.bf16.msra.mxu0 %v5687
        %6162 = vmatprep.subr.bf16.mxu0 %v5692
        %6163 = vmatpush1.bf16.msra.mxu0 %v5691
        %6164 = vmatprep.subr.bf16.mxu0 %v5696
        %6165 = vmatpush1.bf16.msra.mxu0 %v5695
        %6166 = vmatprep.subr.bf16.mxu0 %v5700
        %6167 = vmatpush1.bf16.msra.mxu0 %v5699
        %6168 = vmatprep.subr.bf16.mxu0 %v5704
        %6169 = vmatpush1.bf16.msra.mxu0 %v5703
        %6170 = vmatprep.subr.bf16.mxu0 %v5708
        %6171 = vmatpush1.bf16.msra.mxu0 %v5707
        %6172 = vmatprep.subr.bf16.mxu0 %v5712
        %6173 = vmatpush1.bf16.msra.mxu0 %v5711
        %6174 = vmatprep.mubr.bf16.mxu0 %v4536
        %6175 = vmatmul.mubr.bf16.gmra.mrb[0].mxu0 %v4535
        %v6176 = vpop.f32.mrb[0].mxu0
        %v6177 = vadd.f32 %v6134, %v6176
        %v6178 = vpop.f32.mrb[0].mxu0
        %v6179 = vadd.f32 %v6136, %v6178
        %v6180 = vpop.f32.mrb[0].mxu0
        %v6181 = vadd.f32 %v6138, %v6180
        %v6182 = vpop.f32.mrb[0].mxu0
        %v6183 = vadd.f32 %v6140, %v6182
        %6184 = vdwg.mxu0
        %6185 = vmatprep.subr.bf16.mxu0 %v5716
        %6186 = vmatpush1.bf16.msra.mxu0 %v5715
        %6187 = vmatprep.subr.bf16.mxu0 %v5720
        %6188 = vmatpush1.bf16.msra.mxu0 %v5719
        %6189 = vmatprep.subr.bf16.mxu0 %v5724
        %6190 = vmatpush1.bf16.msra.mxu0 %v5723
        %6191 = vmatprep.subr.bf16.mxu0 %v5728
        %6192 = vmatpush1.bf16.msra.mxu0 %v5727
        %6193 = vmatprep.subr.bf16.mxu0 %v5732
        %6194 = vmatpush1.bf16.msra.mxu0 %v5731
        %6195 = vmatprep.subr.bf16.mxu0 %v5736
        %6196 = vmatpush1.bf16.msra.mxu0 %v5735
        %6197 = vmatprep.subr.bf16.mxu0 %v5740
        %6198 = vmatpush1.bf16.msra.mxu0 %v5739
        %6199 = vmatprep.subr.bf16.mxu0 %v5744
        %6200 = vmatpush1.bf16.msra.mxu0 %v5743
        %6201 = vmatprep.subr.bf16.mxu0 %v5748
        %6202 = vmatpush1.bf16.msra.mxu0 %v5747
        %6203 = vmatprep.subr.bf16.mxu0 %v5752
        %6204 = vmatpush1.bf16.msra.mxu0 %v5751
        %6205 = vmatprep.subr.bf16.mxu0 %v5756
        %6206 = vmatpush1.bf16.msra.mxu0 %v5755
        %6207 = vmatprep.subr.bf16.mxu0 %v5760
        %6208 = vmatpush1.bf16.msra.mxu0 %v5759
        %6209 = vmatprep.subr.bf16.mxu0 %v5764
        %6210 = vmatpush1.bf16.msra.mxu0 %v5763
        %6211 = vmatprep.subr.bf16.mxu0 %v5768
        %6212 = vmatpush1.bf16.msra.mxu0 %v5767
        %6213 = vmatprep.subr.bf16.mxu0 %v5772
        %6214 = vmatpush1.bf16.msra.mxu0 %v5771
        %6215 = vmatprep.subr.bf16.mxu0 %v5776
        %6216 = vmatpush1.bf16.msra.mxu0 %v5775
        %6217 = vmatprep.mubr.bf16.mxu0 %v4538
        %6218 = vmatmul.mubr.bf16.gmra.mrb[0].mxu0 %v4537
        %v6219 = vpop.f32.mrb[0].mxu0
        %v6220 = vadd.f32 %v6177, %v6219
        %v6221 = vpop.f32.mrb[0].mxu0
        %v6222 = vadd.f32 %v6179, %v6221
        %v6223 = vpop.f32.mrb[0].mxu0
        %v6224 = vadd.f32 %v6181, %v6223
        %v6225 = vpop.f32.mrb[0].mxu0
        %v6226 = vadd.f32 %v6183, %v6225
        %6227 = vdwg.mxu0
        %6228 = vmatprep.subr.bf16.mxu0 %v5780
        %6229 = vmatpush1.bf16.msra.mxu0 %v5779
        %6230 = vmatprep.subr.bf16.mxu0 %v5784
        %6231 = vmatpush1.bf16.msra.mxu0 %v5783
        %6232 = vmatprep.subr.bf16.mxu0 %v5788
        %6233 = vmatpush1.bf16.msra.mxu0 %v5787
        %6234 = vmatprep.subr.bf16.mxu0 %v5792
        %6235 = vmatpush1.bf16.msra.mxu0 %v5791
        %6236 = vmatprep.subr.bf16.mxu0 %v5796
        %6237 = vmatpush1.bf16.msra.mxu0 %v5795
        %6238 = vmatprep.subr.bf16.mxu0 %v5800
        %6239 = vmatpush1.bf16.msra.mxu0 %v5799
        %6240 = vmatprep.subr.bf16.mxu0 %v5804
        %6241 = vmatpush1.bf16.msra.mxu0 %v5803
        %6242 = vmatprep.subr.bf16.mxu0 %v5808
        %6243 = vmatpush1.bf16.msra.mxu0 %v5807
        %6244 = vmatprep.subr.bf16.mxu0 %v5812
        %6245 = vmatpush1.bf16.msra.mxu0 %v5811
        %6246 = vmatprep.subr.bf16.mxu0 %v5816
        %6247 = vmatpush1.bf16.msra.mxu0 %v5815
        %6248 = vmatprep.subr.bf16.mxu0 %v5820
        %6249 = vmatpush1.bf16.msra.mxu0 %v5819
        %6250 = vmatprep.subr.bf16.mxu0 %v5824
        %6251 = vmatpush1.bf16.msra.mxu0 %v5823
        %6252 = vmatprep.subr.bf16.mxu0 %v5828
        %6253 = vmatpush1.bf16.msra.mxu0 %v5827
        %6254 = vmatprep.subr.bf16.mxu0 %v5832
        %6255 = vmatpush1.bf16.msra.mxu0 %v5831
        %6256 = vmatprep.subr.bf16.mxu0 %v5836
        %6257 = vmatpush1.bf16.msra.mxu0 %v5835
        %6258 = vmatprep.subr.bf16.mxu0 %v5840
        %6259 = vmatpush1.bf16.msra.mxu0 %v5839
        %6260 = vmatprep.mubr.bf16.mxu0 %v4540
        %6261 = vmatmul.mubr.bf16.gmra.mrb[0].mxu0 %v4539
        %v6262 = vpop.f32.mrb[0].mxu0
        %v6263 = vadd.f32 %v6220, %v6262
        %v6264 = vpop.f32.mrb[0].mxu0
        %v6265 = vadd.f32 %v6222, %v6264
        %v6266 = vpop.f32.mrb[0].mxu0
        %v6267 = vadd.f32 %v6224, %v6266
        %v6268 = vpop.f32.mrb[0].mxu0
        %v6269 = vadd.f32 %v6226, %v6268
        %6270 = vdwg.mxu0
        %6271 = vmatprep.subr.bf16.mxu0 %v5590
        %6272 = vmatpush1.bf16.msra.mxu0 %v5589
        %6273 = vmatprep.subr.bf16.mxu0 %v5594
        %6274 = vmatpush1.bf16.msra.mxu0 %v5593
        %6275 = vmatprep.subr.bf16.mxu0 %v5598
        %6276 = vmatpush1.bf16.msra.mxu0 %v5597
        %6277 = vmatprep.subr.bf16.mxu0 %v5602
        %6278 = vmatpush1.bf16.msra.mxu0 %v5601
        %6279 = vmatprep.subr.bf16.mxu0 %v5606
        %6280 = vmatpush1.bf16.msra.mxu0 %v5605
        %6281 = vmatprep.subr.bf16.mxu0 %v5610
        %6282 = vmatpush1.bf16.msra.mxu0 %v5609
        %6283 = vmatprep.subr.bf16.mxu0 %v5614
        %6284 = vmatpush1.bf16.msra.mxu0 %v5613
        %6285 = vmatprep.subr.bf16.mxu0 %v5618
        %6286 = vmatpush1.bf16.msra.mxu0 %v5617
        %6287 = vmatprep.subr.bf16.mxu0 %v5622
        %6288 = vmatpush1.bf16.msra.mxu0 %v5621
        %6289 = vmatprep.subr.bf16.mxu0 %v5626
        %6290 = vmatpush1.bf16.msra.mxu0 %v5625
        %6291 = vmatprep.subr.bf16.mxu0 %v5630
        %6292 = vmatpush1.bf16.msra.mxu0 %v5629
        %6293 = vmatprep.subr.bf16.mxu0 %v5634
        %6294 = vmatpush1.bf16.msra.mxu0 %v5633
        %6295 = vmatprep.subr.bf16.mxu0 %v5638
        %6296 = vmatpush1.bf16.msra.mxu0 %v5637
        %6297 = vmatprep.subr.bf16.mxu0 %v5642
        %6298 = vmatpush1.bf16.msra.mxu0 %v5641
        %6299 = vmatprep.subr.bf16.mxu0 %v5646
        %6300 = vmatpush1.bf16.msra.mxu0 %v5645
        %6301 = vmatprep.subr.bf16.mxu0 %v5650
        %6302 = vmatpush1.bf16.msra.mxu0 %v5649
        %6303 = vmatprep.mubr.bf16.mxu0 %v4534
        %6304 = vmatmul.mubr.bf16.gmra.mrb[0].mxu0 %v4533
        %v6305 = vpop.f32.mrb[0].mxu0
        %v6306 = vadd.f32 %v4810, %v6305
        %v6307 = vpop.f32.mrb[0].mxu0
        %v6308 = vadd.f32 %v4814, %v6307
        %v6309 = vpop.f32.mrb[0].mxu0
        %v6310 = vadd.f32 %v4810, %v6309
        %v6311 = vpop.f32.mrb[0].mxu0
        %v6312 = vadd.f32 %v4814, %v6311
        %6313 = vdwg.mxu0
        %6314 = vmatprep.subr.bf16.mxu0 %v5654
        %6315 = vmatpush1.bf16.msra.mxu0 %v5653
        %6316 = vmatprep.subr.bf16.mxu0 %v5658
        %6317 = vmatpush1.bf16.msra.mxu0 %v5657
        %6318 = vmatprep.subr.bf16.mxu0 %v5662
        %6319 = vmatpush1.bf16.msra.mxu0 %v5661
        %6320 = vmatprep.subr.bf16.mxu0 %v5666
        %6321 = vmatpush1.bf16.msra.mxu0 %v5665
        %6322 = vmatprep.subr.bf16.mxu0 %v5670
        %6323 = vmatpush1.bf16.msra.mxu0 %v5669
        %6324 = vmatprep.subr.bf16.mxu0 %v5674
        %6325 = vmatpush1.bf16.msra.mxu0 %v5673
        %6326 = vmatprep.subr.bf16.mxu0 %v5678
        %6327 = vmatpush1.bf16.msra.mxu0 %v5677
        %6328 = vmatprep.subr.bf16.mxu0 %v5682
        %6329 = vmatpush1.bf16.msra.mxu0 %v5681
        %6330 = vmatprep.subr.bf16.mxu0 %v5686
        %6331 = vmatpush1.bf16.msra.mxu0 %v5685
        %6332 = vmatprep.subr.bf16.mxu0 %v5690
        %6333 = vmatpush1.bf16.msra.mxu0 %v5689
        %6334 = vmatprep.subr.bf16.mxu0 %v5694
        %6335 = vmatpush1.bf16.msra.mxu0 %v5693
        %6336 = vmatprep.subr.bf16.mxu0 %v5698
        %6337 = vmatpush1.bf16.msra.mxu0 %v5697
        %6338 = vmatprep.subr.bf16.mxu0 %v5702
        %6339 = vmatpush1.bf16.msra.mxu0 %v5701
        %6340 = vmatprep.subr.bf16.mxu0 %v5706
        %6341 = vmatpush1.bf16.msra.mxu0 %v5705
        %6342 = vmatprep.subr.bf16.mxu0 %v5710
        %6343 = vmatpush1.bf16.msra.mxu0 %v5709
        %6344 = vmatprep.subr.bf16.mxu0 %v5714
        %6345 = vmatpush1.bf16.msra.mxu0 %v5713
        %6346 = vmatprep.mubr.bf16.mxu0 %v4536
        %6347 = vmatmul.mubr.bf16.gmra.mrb[0].mxu0 %v4535
        %v6348 = vpop.f32.mrb[0].mxu0
        %v6349 = vadd.f32 %v6306, %v6348
        %v6350 = vpop.f32.mrb[0].mxu0
        %v6351 = vadd.f32 %v6308, %v6350
        %v6352 = vpop.f32.mrb[0].mxu0
        %v6353 = vadd.f32 %v6310, %v6352
        %v6354 = vpop.f32.mrb[0].mxu0
        %v6355 = vadd.f32 %v6312, %v6354
        %6356 = vdwg.mxu0
        %6357 = vmatprep.subr.bf16.mxu0 %v5718
        %6358 = vmatpush1.bf16.msra.mxu0 %v5717
        %6359 = vmatprep.subr.bf16.mxu0 %v5722
        %6360 = vmatpush1.bf16.msra.mxu0 %v5721
        %6361 = vmatprep.subr.bf16.mxu0 %v5726
        %6362 = vmatpush1.bf16.msra.mxu0 %v5725
        %6363 = vmatprep.subr.bf16.mxu0 %v5730
        %6364 = vmatpush1.bf16.msra.mxu0 %v5729
        %6365 = vmatprep.subr.bf16.mxu0 %v5734
        %6366 = vmatpush1.bf16.msra.mxu0 %v5733
        %6367 = vmatprep.subr.bf16.mxu0 %v5738
        %6368 = vmatpush1.bf16.msra.mxu0 %v5737
        %6369 = vmatprep.subr.bf16.mxu0 %v5742
        %6370 = vmatpush1.bf16.msra.mxu0 %v5741
        %6371 = vmatprep.subr.bf16.mxu0 %v5746
        %6372 = vmatpush1.bf16.msra.mxu0 %v5745
        %6373 = vmatprep.subr.bf16.mxu0 %v5750
        %6374 = vmatpush1.bf16.msra.mxu0 %v5749
        %6375 = vmatprep.subr.bf16.mxu0 %v5754
        %6376 = vmatpush1.bf16.msra.mxu0 %v5753
        %6377 = vmatprep.subr.bf16.mxu0 %v5758
        %6378 = vmatpush1.bf16.msra.mxu0 %v5757
        %6379 = vmatprep.subr.bf16.mxu0 %v5762
        %6380 = vmatpush1.bf16.msra.mxu0 %v5761
        %6381 = vmatprep.subr.bf16.mxu0 %v5766
        %6382 = vmatpush1.bf16.msra.mxu0 %v5765
        %6383 = vmatprep.subr.bf16.mxu0 %v5770
        %6384 = vmatpush1.bf16.msra.mxu0 %v5769
        %6385 = vmatprep.subr.bf16.mxu0 %v5774
        %6386 = vmatpush1.bf16.msra.mxu0 %v5773
        %6387 = vmatprep.subr.bf16.mxu0 %v5778
        %6388 = vmatpush1.bf16.msra.mxu0 %v5777
        %6389 = vmatprep.mubr.bf16.mxu0 %v4538
        %6390 = vmatmul.mubr.bf16.gmra.mrb[0].mxu0 %v4537
        %v6391 = vpop.f32.mrb[0].mxu0
        %v6392 = vadd.f32 %v6349, %v6391
        %v6393 = vpop.f32.mrb[0].mxu0
        %v6394 = vadd.f32 %v6351, %v6393
        %v6395 = vpop.f32.mrb[0].mxu0
        %v6396 = vadd.f32 %v6353, %v6395
        %v6397 = vpop.f32.mrb[0].mxu0
        %v6398 = vadd.f32 %v6355, %v6397
        %6399 = vdwg.mxu0
        %6400 = vmatprep.subr.bf16.mxu0 %v5782
        %6401 = vmatpush1.bf16.msra.mxu0 %v5781
        %6402 = vmatprep.subr.bf16.mxu0 %v5786
        %6403 = vmatpush1.bf16.msra.mxu0 %v5785
        %6404 = vmatprep.subr.bf16.mxu0 %v5790
        %6405 = vmatpush1.bf16.msra.mxu0 %v5789
        %6406 = vmatprep.subr.bf16.mxu0 %v5794
        %6407 = vmatpush1.bf16.msra.mxu0 %v5793
        %6408 = vmatprep.subr.bf16.mxu0 %v5798
        %6409 = vmatpush1.bf16.msra.mxu0 %v5797
        %6410 = vmatprep.subr.bf16.mxu0 %v5802
        %6411 = vmatpush1.bf16.msra.mxu0 %v5801
        %6412 = vmatprep.subr.bf16.mxu0 %v5806
        %6413 = vmatpush1.bf16.msra.mxu0 %v5805
        %6414 = vmatprep.subr.bf16.mxu0 %v5810
        %6415 = vmatpush1.bf16.msra.mxu0 %v5809
        %6416 = vmatprep.subr.bf16.mxu0 %v5814
        %6417 = vmatpush1.bf16.msra.mxu0 %v5813
        %6418 = vmatprep.subr.bf16.mxu0 %v5818
        %6419 = vmatpush1.bf16.msra.mxu0 %v5817
        %6420 = vmatprep.subr.bf16.mxu0 %v5822
        %6421 = vmatpush1.bf16.msra.mxu0 %v5821
        %6422 = vmatprep.subr.bf16.mxu0 %v5826
        %6423 = vmatpush1.bf16.msra.mxu0 %v5825
        %6424 = vmatprep.subr.bf16.mxu0 %v5830
        %6425 = vmatpush1.bf16.msra.mxu0 %v5829
        %6426 = vmatprep.subr.bf16.mxu0 %v5834
        %6427 = vmatpush1.bf16.msra.mxu0 %v5833
        %6428 = vmatprep.subr.bf16.mxu0 %v5838
        %6429 = vmatpush1.bf16.msra.mxu0 %v5837
        %6430 = vmatprep.subr.bf16.mxu0 %v5842
        %6431 = vmatpush1.bf16.msra.mxu0 %v5841
        %6432 = vmatprep.mubr.bf16.mxu0 %v4540
        %6433 = vmatmul.mubr.bf16.gmra.mrb[0].mxu0 %v4539
        %v6434 = vpop.f32.mrb[0].mxu0
        %v6435 = vadd.f32 %v6392, %v6434
        %v6436 = vpop.f32.mrb[0].mxu0
        %v6437 = vadd.f32 %v6394, %v6436
        %v6438 = vpop.f32.mrb[0].mxu0
        %v6439 = vadd.f32 %v6396, %v6438
        %v6440 = vpop.f32.mrb[0].mxu0
        %v6441 = vadd.f32 %v6398, %v6440
        %6442 = vdwg.mxu0
        %vm6443 = vcmp.gt.f32.partialorder %v6263, 0.0
        %vm6444 = vcmp.gt.f32.partialorder %v6265, 0.0
        %vm6445 = vcmp.gt.f32.partialorder %v6435, 0.0
        %vm6446 = vcmp.gt.f32.partialorder %v6437, 0.0
        %vm6447 = vcmp.gt.f32.partialorder %v6267, 0.0
        %vm6448 = vcmp.gt.f32.partialorder %v6269, 0.0
        %vm6449 = vcmp.gt.f32.partialorder %v6439, 0.0
        %vm6450 = vcmp.gt.f32.partialorder %v6441, 0.0
        %v6451 = vmul.f32 %v6263, 0.2
        %v6452 = vmul.f32 %v6265, 0.2
        %v6453 = vmul.f32 %v6435, 0.2
        %v6454 = vmul.f32 %v6437, 0.2
        %v6455 = vmul.f32 %v6267, 0.2
        %v6456 = vmul.f32 %v6269, 0.2
        %v6457 = vmul.f32 %v6439, 0.2
        %v6458 = vmul.f32 %v6441, 0.2
        %v6459 = vsel %vm6443, %v6263, %v6451
        %v6460 = vsel %vm6444, %v6265, %v6452
        %v6461 = vsel %vm6445, %v6435, %v6453
        %v6462 = vsel %vm6446, %v6437, %v6454
        %v6463 = vsel %vm6447, %v6267, %v6455
        %v6464 = vsel %vm6448, %v6269, %v6456
        %v6465 = vsel %vm6449, %v6439, %v6457
        %v6466 = vsel %vm6450, %v6441, %v6458
        %s6467 = scalar_lea.vmem [#allocation8], 1
        %v6468 = vld [vmem:[%s6467] ss:$4 sm:$0xf]
        %v6470 = vlaneseq
        %v6471 = vshrl.u32 %v6470, 7
        %v6472 = vsub.s32 0, %v6471
        %v6473 = vrot.slane %v6468, %v6472
        %v6474 = vlaneseq
        %v6475 = vshrl.u32 %v6474, 7
        %v6476 = vsub.s32 1, %v6475
        %v6477 = vrot.slane %v6468, %v6476
        %v6478 = vlaneseq
        %v6479 = vshrl.u32 %v6478, 7
        %v6480 = vsub.s32 2, %v6479
        %v6481 = vrot.slane %v6468, %v6480
        %v6482 = vlaneseq
        %v6483 = vshrl.u32 %v6482, 7
        %v6484 = vsub.s32 3, %v6483
        %v6485 = vrot.slane %v6468, %v6484
        %v6490 = vmul.f32 %v6459, %v6473
        %v6491 = vmul.f32 %v6460, %v6477
        %v6492 = vmul.f32 %v6461, %v6481
        %v6493 = vmul.f32 %v6462, %v6485
        %v6494 = vmul.f32 %v6463, %v6473
        %v6495 = vmul.f32 %v6464, %v6477
        %v6496 = vmul.f32 %v6465, %v6481
        %v6497 = vmul.f32 %v6466, %v6485
        %s6498 = scalar_lea.vmem [#allocation8], 2
        %v6499 = vld [vmem:[%s6498] ss:$4 sm:$0xf]
        %v6501 = vlaneseq
        %v6502 = vshrl.u32 %v6501, 7
        %v6503 = vsub.s32 0, %v6502
        %v6504 = vrot.slane %v6499, %v6503
        %v6505 = vlaneseq
        %v6506 = vshrl.u32 %v6505, 7
        %v6507 = vsub.s32 1, %v6506
        %v6508 = vrot.slane %v6499, %v6507
        %v6509 = vlaneseq
        %v6510 = vshrl.u32 %v6509, 7
        %v6511 = vsub.s32 2, %v6510
        %v6512 = vrot.slane %v6499, %v6511
        %v6513 = vlaneseq
        %v6514 = vshrl.u32 %v6513, 7
        %v6515 = vsub.s32 3, %v6514
        %v6516 = vrot.slane %v6499, %v6515
        %v6521 = vadd.f32 %v6490, %v6504
        %v6522 = vadd.f32 %v6491, %v6508
        %v6523 = vadd.f32 %v6492, %v6512
        %v6524 = vadd.f32 %v6493, %v6516
        %v6525 = vadd.f32 %v6494, %v6504
        %v6526 = vadd.f32 %v6495, %v6508
        %v6527 = vadd.f32 %v6496, %v6512
        %v6528 = vadd.f32 %v6497, %v6516
        %v6529 = vpack.c.bf16 %v6525, %v6521
        %v6530 = vpack.c.bf16 %v6526, %v6522
        %v6531 = vpack.c.bf16 %v6527, %v6523
        %v6532 = vpack.c.bf16 %v6528, %v6524
        %v6533 = vld [vmem:[#allocation10] sm:$0xff]
        %v6534 = vld [vmem:[#allocation10 + $0x8] sm:$0xff]
        %v6535 = vld [vmem:[#allocation10 + $0x10] sm:$0xff]
        %v6536 = vld [vmem:[#allocation10 + $0x18] sm:$0xff]
        %v6537 = vld [vmem:[#allocation10 + $0x20] sm:$0xff]
        %v6538 = vld [vmem:[#allocation10 + $0x28] sm:$0xff]
        %v6539 = vld [vmem:[#allocation10 + $0x30] sm:$0xff]
        %v6540 = vld [vmem:[#allocation10 + $0x38] sm:$0xff]
        %v6541 = vld [vmem:[#allocation10 + $0x40] sm:$0xff]
        %v6542 = vld [vmem:[#allocation10 + $0x48] sm:$0xff]
        %v6543 = vld [vmem:[#allocation10 + $0x50] sm:$0xff]
        %v6544 = vld [vmem:[#allocation10 + $0x58] sm:$0xff]
        %v6545 = vld [vmem:[#allocation10 + $0x60] sm:$0xff]
        %v6546 = vld [vmem:[#allocation10 + $0x68] sm:$0xff]
        %v6547 = vld [vmem:[#allocation10 + $0x70] sm:$0xff]
        %v6548 = vld [vmem:[#allocation10 + $0x78] sm:$0xff]
        %v6549 = vld [vmem:[#allocation10 + $0x80] sm:$0xff]
        %v6550 = vld [vmem:[#allocation10 + $0x88] sm:$0xff]
        %v6551 = vld [vmem:[#allocation10 + $0x90] sm:$0xff]
        %v6552 = vld [vmem:[#allocation10 + $0x98] sm:$0xff]
        %v6553 = vld [vmem:[#allocation10 + $0xa0] sm:$0xff]
        %v6554 = vld [vmem:[#allocation10 + $0xa8] sm:$0xff]
        %v6555 = vld [vmem:[#allocation10 + $0xb0] sm:$0xff]
        %v6556 = vld [vmem:[#allocation10 + $0xb8] sm:$0xff]
        %v6557 = vld [vmem:[#allocation10 + $0xc0] sm:$0xff]
        %v6558 = vld [vmem:[#allocation10 + $0xc8] sm:$0xff]
        %v6559 = vld [vmem:[#allocation10 + $0xd0] sm:$0xff]
        %v6560 = vld [vmem:[#allocation10 + $0xd8] sm:$0xff]
        %v6561 = vld [vmem:[#allocation10 + $0xe0] sm:$0xff]
        %v6562 = vld [vmem:[#allocation10 + $0xe8] sm:$0xff]
        %v6563 = vld [vmem:[#allocation10 + $0xf0] sm:$0xff]
        %v6564 = vld [vmem:[#allocation10 + $0xf8] sm:$0xff]
        %v6565 = vld [vmem:[#allocation10 + $0x100] sm:$0xff]
        %v6566 = vld [vmem:[#allocation10 + $0x108] sm:$0xff]
        %v6567 = vld [vmem:[#allocation10 + $0x110] sm:$0xff]
        %v6568 = vld [vmem:[#allocation10 + $0x118] sm:$0xff]
        %v6569 = vld [vmem:[#allocation10 + $0x120] sm:$0xff]
        %v6570 = vld [vmem:[#allocation10 + $0x128] sm:$0xff]
        %v6571 = vld [vmem:[#allocation10 + $0x130] sm:$0xff]
        %v6572 = vld [vmem:[#allocation10 + $0x138] sm:$0xff]
        %v6573 = vld [vmem:[#allocation10 + $0x140] sm:$0xff]
        %v6574 = vld [vmem:[#allocation10 + $0x148] sm:$0xff]
        %v6575 = vld [vmem:[#allocation10 + $0x150] sm:$0xff]
        %v6576 = vld [vmem:[#allocation10 + $0x158] sm:$0xff]
        %v6577 = vld [vmem:[#allocation10 + $0x160] sm:$0xff]
        %v6578 = vld [vmem:[#allocation10 + $0x168] sm:$0xff]
        %v6579 = vld [vmem:[#allocation10 + $0x170] sm:$0xff]
        %v6580 = vld [vmem:[#allocation10 + $0x178] sm:$0xff]
        %v6581 = vld [vmem:[#allocation10 + $0x180] sm:$0xff]
        %v6582 = vld [vmem:[#allocation10 + $0x188] sm:$0xff]
        %v6583 = vld [vmem:[#allocation10 + $0x190] sm:$0xff]
        %v6584 = vld [vmem:[#allocation10 + $0x198] sm:$0xff]
        %v6585 = vld [vmem:[#allocation10 + $0x1a0] sm:$0xff]
        %v6586 = vld [vmem:[#allocation10 + $0x1a8] sm:$0xff]
        %v6587 = vld [vmem:[#allocation10 + $0x1b0] sm:$0xff]
        %v6588 = vld [vmem:[#allocation10 + $0x1b8] sm:$0xff]
        %v6589 = vld [vmem:[#allocation10 + $0x1c0] sm:$0xff]
        %v6590 = vld [vmem:[#allocation10 + $0x1c8] sm:$0xff]
        %v6591 = vld [vmem:[#allocation10 + $0x1d0] sm:$0xff]
        %v6592 = vld [vmem:[#allocation10 + $0x1d8] sm:$0xff]
        %v6593 = vld [vmem:[#allocation10 + $0x1e0] sm:$0xff]
        %v6594 = vld [vmem:[#allocation10 + $0x1e8] sm:$0xff]
        %v6595 = vld [vmem:[#allocation10 + $0x1f0] sm:$0xff]
        %v6596 = vld [vmem:[#allocation10 + $0x1f8] sm:$0xff]
        %v6597 = vld [vmem:[#allocation11] ss:$4 sm:$0x3]
        %v6599 = vlaneseq
        %v6600 = vshrl.u32 %v6599, 7
        %v6601 = vsub.s32 0, %v6600
        %v6602 = vrot.slane %v6597, %v6601
        %v6603 = vlaneseq
        %v6604 = vshrl.u32 %v6603, 7
        %v6605 = vsub.s32 1, %v6604
        %v6606 = vrot.slane %v6597, %v6605
        %v6673 = vunpack.c.l.b16 %v6533
        %v6674 = vunpack.c.h.b16 %v6533
        %v6675 = vunpack.c.l.b16 %v6534
        %v6676 = vunpack.c.h.b16 %v6534
        %v6677 = vunpack.c.l.b16 %v6535
        %v6678 = vunpack.c.h.b16 %v6535
        %v6679 = vunpack.c.l.b16 %v6536
        %v6680 = vunpack.c.h.b16 %v6536
        %v6681 = vunpack.c.l.b16 %v6537
        %v6682 = vunpack.c.h.b16 %v6537
        %v6683 = vunpack.c.l.b16 %v6538
        %v6684 = vunpack.c.h.b16 %v6538
        %v6685 = vunpack.c.l.b16 %v6539
        %v6686 = vunpack.c.h.b16 %v6539
        %v6687 = vunpack.c.l.b16 %v6540
        %v6688 = vunpack.c.h.b16 %v6540
        %v6689 = vunpack.c.l.b16 %v6541
        %v6690 = vunpack.c.h.b16 %v6541
        %v6691 = vunpack.c.l.b16 %v6542
        %v6692 = vunpack.c.h.b16 %v6542
        %v6693 = vunpack.c.l.b16 %v6543
        %v6694 = vunpack.c.h.b16 %v6543
        %v6695 = vunpack.c.l.b16 %v6544
        %v6696 = vunpack.c.h.b16 %v6544
        %v6697 = vunpack.c.l.b16 %v6545
        %v6698 = vunpack.c.h.b16 %v6545
        %v6699 = vunpack.c.l.b16 %v6546
        %v6700 = vunpack.c.h.b16 %v6546
        %v6701 = vunpack.c.l.b16 %v6547
        %v6702 = vunpack.c.h.b16 %v6547
        %v6703 = vunpack.c.l.b16 %v6548
        %v6704 = vunpack.c.h.b16 %v6548
        %v6705 = vunpack.c.l.b16 %v6549
        %v6706 = vunpack.c.h.b16 %v6549
        %v6707 = vunpack.c.l.b16 %v6550
        %v6708 = vunpack.c.h.b16 %v6550
        %v6709 = vunpack.c.l.b16 %v6551
        %v6710 = vunpack.c.h.b16 %v6551
        %v6711 = vunpack.c.l.b16 %v6552
        %v6712 = vunpack.c.h.b16 %v6552
        %v6713 = vunpack.c.l.b16 %v6553
        %v6714 = vunpack.c.h.b16 %v6553
        %v6715 = vunpack.c.l.b16 %v6554
        %v6716 = vunpack.c.h.b16 %v6554
        %v6717 = vunpack.c.l.b16 %v6555
        %v6718 = vunpack.c.h.b16 %v6555
        %v6719 = vunpack.c.l.b16 %v6556
        %v6720 = vunpack.c.h.b16 %v6556
        %v6721 = vunpack.c.l.b16 %v6557
        %v6722 = vunpack.c.h.b16 %v6557
        %v6723 = vunpack.c.l.b16 %v6558
        %v6724 = vunpack.c.h.b16 %v6558
        %v6725 = vunpack.c.l.b16 %v6559
        %v6726 = vunpack.c.h.b16 %v6559
        %v6727 = vunpack.c.l.b16 %v6560
        %v6728 = vunpack.c.h.b16 %v6560
        %v6729 = vunpack.c.l.b16 %v6561
        %v6730 = vunpack.c.h.b16 %v6561
        %v6731 = vunpack.c.l.b16 %v6562
        %v6732 = vunpack.c.h.b16 %v6562
        %v6733 = vunpack.c.l.b16 %v6563
        %v6734 = vunpack.c.h.b16 %v6563
        %v6735 = vunpack.c.l.b16 %v6564
        %v6736 = vunpack.c.h.b16 %v6564
        %v6737 = vunpack.c.l.b16 %v6565
        %v6738 = vunpack.c.h.b16 %v6565
        %v6739 = vunpack.c.l.b16 %v6566
        %v6740 = vunpack.c.h.b16 %v6566
        %v6741 = vunpack.c.l.b16 %v6567
        %v6742 = vunpack.c.h.b16 %v6567
        %v6743 = vunpack.c.l.b16 %v6568
        %v6744 = vunpack.c.h.b16 %v6568
        %v6745 = vunpack.c.l.b16 %v6569
        %v6746 = vunpack.c.h.b16 %v6569
        %v6747 = vunpack.c.l.b16 %v6570
        %v6748 = vunpack.c.h.b16 %v6570
        %v6749 = vunpack.c.l.b16 %v6571
        %v6750 = vunpack.c.h.b16 %v6571
        %v6751 = vunpack.c.l.b16 %v6572
        %v6752 = vunpack.c.h.b16 %v6572
        %v6753 = vunpack.c.l.b16 %v6573
        %v6754 = vunpack.c.h.b16 %v6573
        %v6755 = vunpack.c.l.b16 %v6574
        %v6756 = vunpack.c.h.b16 %v6574
        %v6757 = vunpack.c.l.b16 %v6575
        %v6758 = vunpack.c.h.b16 %v6575
        %v6759 = vunpack.c.l.b16 %v6576
        %v6760 = vunpack.c.h.b16 %v6576
        %v6761 = vunpack.c.l.b16 %v6577
        %v6762 = vunpack.c.h.b16 %v6577
        %v6763 = vunpack.c.l.b16 %v6578
        %v6764 = vunpack.c.h.b16 %v6578
        %v6765 = vunpack.c.l.b16 %v6579
        %v6766 = vunpack.c.h.b16 %v6579
        %v6767 = vunpack.c.l.b16 %v6580
        %v6768 = vunpack.c.h.b16 %v6580
        %v6769 = vunpack.c.l.b16 %v6581
        %v6770 = vunpack.c.h.b16 %v6581
        %v6771 = vunpack.c.l.b16 %v6582
        %v6772 = vunpack.c.h.b16 %v6582
        %v6773 = vunpack.c.l.b16 %v6583
        %v6774 = vunpack.c.h.b16 %v6583
        %v6775 = vunpack.c.l.b16 %v6584
        %v6776 = vunpack.c.h.b16 %v6584
        %v6777 = vunpack.c.l.b16 %v6585
        %v6778 = vunpack.c.h.b16 %v6585
        %v6779 = vunpack.c.l.b16 %v6586
        %v6780 = vunpack.c.h.b16 %v6586
        %v6781 = vunpack.c.l.b16 %v6587
        %v6782 = vunpack.c.h.b16 %v6587
        %v6783 = vunpack.c.l.b16 %v6588
        %v6784 = vunpack.c.h.b16 %v6588
        %v6785 = vunpack.c.l.b16 %v6589
        %v6786 = vunpack.c.h.b16 %v6589
        %v6787 = vunpack.c.l.b16 %v6590
        %v6788 = vunpack.c.h.b16 %v6590
        %v6789 = vunpack.c.l.b16 %v6591
        %v6790 = vunpack.c.h.b16 %v6591
        %v6791 = vunpack.c.l.b16 %v6592
        %v6792 = vunpack.c.h.b16 %v6592
        %v6793 = vunpack.c.l.b16 %v6593
        %v6794 = vunpack.c.h.b16 %v6593
        %v6795 = vunpack.c.l.b16 %v6594
        %v6796 = vunpack.c.h.b16 %v6594
        %v6797 = vunpack.c.l.b16 %v6595
        %v6798 = vunpack.c.h.b16 %v6595
        %v6799 = vunpack.c.l.b16 %v6596
        %v6800 = vunpack.c.h.b16 %v6596
        %v6801 = vpack.c.b16 %v6675, %v6673
        %v6802 = vpack.c.b16 %v6676, %v6674
        %v6803 = vpack.c.b16 %v6679, %v6677
        %v6804 = vpack.c.b16 %v6680, %v6678
        %v6805 = vpack.c.b16 %v6683, %v6681
        %v6806 = vpack.c.b16 %v6684, %v6682
        %v6807 = vpack.c.b16 %v6687, %v6685
        %v6808 = vpack.c.b16 %v6688, %v6686
        %v6809 = vpack.c.b16 %v6691, %v6689
        %v6810 = vpack.c.b16 %v6692, %v6690
        %v6811 = vpack.c.b16 %v6695, %v6693
        %v6812 = vpack.c.b16 %v6696, %v6694
        %v6813 = vpack.c.b16 %v6699, %v6697
        %v6814 = vpack.c.b16 %v6700, %v6698
        %v6815 = vpack.c.b16 %v6703, %v6701
        %v6816 = vpack.c.b16 %v6704, %v6702
        %v6817 = vpack.c.b16 %v6707, %v6705
        %v6818 = vpack.c.b16 %v6708, %v6706
        %v6819 = vpack.c.b16 %v6711, %v6709
        %v6820 = vpack.c.b16 %v6712, %v6710
        %v6821 = vpack.c.b16 %v6715, %v6713
        %v6822 = vpack.c.b16 %v6716, %v6714
        %v6823 = vpack.c.b16 %v6719, %v6717
        %v6824 = vpack.c.b16 %v6720, %v6718
        %v6825 = vpack.c.b16 %v6723, %v6721
        %v6826 = vpack.c.b16 %v6724, %v6722
        %v6827 = vpack.c.b16 %v6727, %v6725
        %v6828 = vpack.c.b16 %v6728, %v6726
        %v6829 = vpack.c.b16 %v6731, %v6729
        %v6830 = vpack.c.b16 %v6732, %v6730
        %v6831 = vpack.c.b16 %v6735, %v6733
        %v6832 = vpack.c.b16 %v6736, %v6734
        %v6833 = vpack.c.b16 %v6739, %v6737
        %v6834 = vpack.c.b16 %v6740, %v6738
        %v6835 = vpack.c.b16 %v6743, %v6741
        %v6836 = vpack.c.b16 %v6744, %v6742
        %v6837 = vpack.c.b16 %v6747, %v6745
        %v6838 = vpack.c.b16 %v6748, %v6746
        %v6839 = vpack.c.b16 %v6751, %v6749
        %v6840 = vpack.c.b16 %v6752, %v6750
        %v6841 = vpack.c.b16 %v6755, %v6753
        %v6842 = vpack.c.b16 %v6756, %v6754
        %v6843 = vpack.c.b16 %v6759, %v6757
        %v6844 = vpack.c.b16 %v6760, %v6758
        %v6845 = vpack.c.b16 %v6763, %v6761
        %v6846 = vpack.c.b16 %v6764, %v6762
        %v6847 = vpack.c.b16 %v6767, %v6765
        %v6848 = vpack.c.b16 %v6768, %v6766
        %v6849 = vpack.c.b16 %v6771, %v6769
        %v6850 = vpack.c.b16 %v6772, %v6770
        %v6851 = vpack.c.b16 %v6775, %v6773
        %v6852 = vpack.c.b16 %v6776, %v6774
        %v6853 = vpack.c.b16 %v6779, %v6777
        %v6854 = vpack.c.b16 %v6780, %v6778
        %v6855 = vpack.c.b16 %v6783, %v6781
        %v6856 = vpack.c.b16 %v6784, %v6782
        %v6857 = vpack.c.b16 %v6787, %v6785
        %v6858 = vpack.c.b16 %v6788, %v6786
        %v6859 = vpack.c.b16 %v6791, %v6789
        %v6860 = vpack.c.b16 %v6792, %v6790
        %v6861 = vpack.c.b16 %v6795, %v6793
        %v6862 = vpack.c.b16 %v6796, %v6794
        %v6863 = vpack.c.b16 %v6799, %v6797
        %v6864 = vpack.c.b16 %v6800, %v6798
        %6929 = vmatprep.subr.bf16.mxu0 %v6802
        %6930 = vmatpush1.bf16.msra.mxu0 %v6801
        %6931 = vmatprep.subr.bf16.mxu0 %v6804
        %6932 = vmatpush1.bf16.msra.mxu0 %v6803
        %6933 = vmatprep.subr.bf16.mxu0 %v6806
        %6934 = vmatpush1.bf16.msra.mxu0 %v6805
        %6935 = vmatprep.subr.bf16.mxu0 %v6808
        %6936 = vmatpush1.bf16.msra.mxu0 %v6807
        %6937 = vmatprep.subr.bf16.mxu0 %v6810
        %6938 = vmatpush1.bf16.msra.mxu0 %v6809
        %6939 = vmatprep.subr.bf16.mxu0 %v6812
        %6940 = vmatpush1.bf16.msra.mxu0 %v6811
        %6941 = vmatprep.subr.bf16.mxu0 %v6814
        %6942 = vmatpush1.bf16.msra.mxu0 %v6813
        %6943 = vmatprep.subr.bf16.mxu0 %v6816
        %6944 = vmatpush1.bf16.msra.mxu0 %v6815
        %6945 = vmatprep.subr.bf16.mxu0 %v6818
        %6946 = vmatpush1.bf16.msra.mxu0 %v6817
        %6947 = vmatprep.subr.bf16.mxu0 %v6820
        %6948 = vmatpush1.bf16.msra.mxu0 %v6819
        %6949 = vmatprep.subr.bf16.mxu0 %v6822
        %6950 = vmatpush1.bf16.msra.mxu0 %v6821
        %6951 = vmatprep.subr.bf16.mxu0 %v6824
        %6952 = vmatpush1.bf16.msra.mxu0 %v6823
        %6953 = vmatprep.subr.bf16.mxu0 %v6826
        %6954 = vmatpush1.bf16.msra.mxu0 %v6825
        %6955 = vmatprep.subr.bf16.mxu0 %v6828
        %6956 = vmatpush1.bf16.msra.mxu0 %v6827
        %6957 = vmatprep.subr.bf16.mxu0 %v6830
        %6958 = vmatpush1.bf16.msra.mxu0 %v6829
        %6959 = vmatprep.subr.bf16.mxu0 %v6832
        %6960 = vmatpush1.bf16.msra.mxu0 %v6831
        %6961 = vmatprep.mubr.bf16.mxu0 %v6530
        %6962 = vmatmul.mubr.bf16.gmra.mrb[0].mxu0 %v6529
        %v6963 = vpop.f32.mrb[0].mxu0
        %v6964 = vadd.f32 %v6602, %v6963
        %v6965 = vpop.f32.mrb[0].mxu0
        %v6966 = vadd.f32 %v6606, %v6965
        %v6967 = vpop.f32.mrb[0].mxu0
        %v6968 = vadd.f32 %v6602, %v6967
        %v6969 = vpop.f32.mrb[0].mxu0
        %v6970 = vadd.f32 %v6606, %v6969
        %6971 = vdwg.mxu0
        %6972 = vmatprep.subr.bf16.mxu0 %v6834
        %6973 = vmatpush1.bf16.msra.mxu0 %v6833
        %6974 = vmatprep.subr.bf16.mxu0 %v6836
        %6975 = vmatpush1.bf16.msra.mxu0 %v6835
        %6976 = vmatprep.subr.bf16.mxu0 %v6838
        %6977 = vmatpush1.bf16.msra.mxu0 %v6837
        %6978 = vmatprep.subr.bf16.mxu0 %v6840
        %6979 = vmatpush1.bf16.msra.mxu0 %v6839
        %6980 = vmatprep.subr.bf16.mxu0 %v6842
        %6981 = vmatpush1.bf16.msra.mxu0 %v6841
        %6982 = vmatprep.subr.bf16.mxu0 %v6844
        %6983 = vmatpush1.bf16.msra.mxu0 %v6843
        %6984 = vmatprep.subr.bf16.mxu0 %v6846
        %6985 = vmatpush1.bf16.msra.mxu0 %v6845
        %6986 = vmatprep.subr.bf16.mxu0 %v6848
        %6987 = vmatpush1.bf16.msra.mxu0 %v6847
        %6988 = vmatprep.subr.bf16.mxu0 %v6850
        %6989 = vmatpush1.bf16.msra.mxu0 %v6849
        %6990 = vmatprep.subr.bf16.mxu0 %v6852
        %6991 = vmatpush1.bf16.msra.mxu0 %v6851
        %6992 = vmatprep.subr.bf16.mxu0 %v6854
        %6993 = vmatpush1.bf16.msra.mxu0 %v6853
        %6994 = vmatprep.subr.bf16.mxu0 %v6856
        %6995 = vmatpush1.bf16.msra.mxu0 %v6855
        %6996 = vmatprep.subr.bf16.mxu0 %v6858
        %6997 = vmatpush1.bf16.msra.mxu0 %v6857
        %6998 = vmatprep.subr.bf16.mxu0 %v6860
        %6999 = vmatpush1.bf16.msra.mxu0 %v6859
        %7000 = vmatprep.subr.bf16.mxu0 %v6862
        %7001 = vmatpush1.bf16.msra.mxu0 %v6861
        %7002 = vmatprep.subr.bf16.mxu0 %v6864
        %7003 = vmatpush1.bf16.msra.mxu0 %v6863
        %7004 = vmatprep.mubr.bf16.mxu0 %v6532
        %7005 = vmatmul.mubr.bf16.gmra.mrb[0].mxu0 %v6531
        %v7006 = vpop.f32.mrb[0].mxu0
        %v7007 = vadd.f32 %v6964, %v7006
        %v7008 = vpop.f32.mrb[0].mxu0
        %v7009 = vadd.f32 %v6966, %v7008
        %v7010 = vpop.f32.mrb[0].mxu0
        %v7011 = vadd.f32 %v6968, %v7010
        %v7012 = vpop.f32.mrb[0].mxu0
        %v7013 = vadd.f32 %v6970, %v7012
        %7014 = vdwg.mxu0
        %vm7015 = vcmp.gt.f32.partialorder %v7007, 0.0
        %vm7016 = vcmp.gt.f32.partialorder %v7009, 0.0
        %vm7017 = vcmp.gt.f32.partialorder %v7011, 0.0
        %vm7018 = vcmp.gt.f32.partialorder %v7013, 0.0
        %v7019 = vmul.f32 %v7007, 0.2
        %v7020 = vmul.f32 %v7009, 0.2
        %v7021 = vmul.f32 %v7011, 0.2
        %v7022 = vmul.f32 %v7013, 0.2
        %v7023 = vsel %vm7015, %v7007, %v7019
        %v7024 = vsel %vm7016, %v7009, %v7020
        %v7025 = vsel %vm7017, %v7011, %v7021
        %v7026 = vsel %vm7018, %v7013, %v7022
        %s7027 = scalar_lea.vmem [#allocation11], 1
        %v7028 = vld [vmem:[%s7027] ss:$4 sm:$0x3]
        %v7030 = vlaneseq
        %v7031 = vshrl.u32 %v7030, 7
        %v7032 = vsub.s32 0, %v7031
        %v7033 = vrot.slane %v7028, %v7032
        %v7034 = vlaneseq
        %v7035 = vshrl.u32 %v7034, 7
        %v7036 = vsub.s32 1, %v7035
        %v7037 = vrot.slane %v7028, %v7036
        %v7040 = vmul.f32 %v7023, %v7033
        %v7041 = vmul.f32 %v7024, %v7037
        %v7042 = vmul.f32 %v7025, %v7033
        %v7043 = vmul.f32 %v7026, %v7037
        %s7044 = scalar_lea.vmem [#allocation11], 2
        %v7045 = vld [vmem:[%s7044] ss:$4 sm:$0x3]
        %v7047 = vlaneseq
        %v7048 = vshrl.u32 %v7047, 7
        %v7049 = vsub.s32 0, %v7048
        %v7050 = vrot.slane %v7045, %v7049
        %v7051 = vlaneseq
        %v7052 = vshrl.u32 %v7051, 7
        %v7053 = vsub.s32 1, %v7052
        %v7054 = vrot.slane %v7045, %v7053
        %v7057 = vadd.f32 %v7040, %v7050
        %v7058 = vadd.f32 %v7041, %v7054
        %v7059 = vadd.f32 %v7042, %v7050
        %v7060 = vadd.f32 %v7043, %v7054
        %v7061 = vpack.c.bf16 %v7059, %v7057
        %v7062 = vpack.c.bf16 %v7060, %v7058
        %v7063 = vld [vmem:[#allocation13] sm:$0xf]
        %v7064 = vld [vmem:[#allocation13 + $0x4] sm:$0xf]
        %v7065 = vld [vmem:[#allocation13 + $0x8] sm:$0xf]
        %v7066 = vld [vmem:[#allocation13 + $0xc] sm:$0xf]
        %v7067 = vld [vmem:[#allocation13 + $0x10] sm:$0xf]
        %v7068 = vld [vmem:[#allocation13 + $0x14] sm:$0xf]
        %v7069 = vld [vmem:[#allocation13 + $0x18] sm:$0xf]
        %v7070 = vld [vmem:[#allocation13 + $0x1c] sm:$0xf]
        %v7071 = vld [vmem:[#allocation13 + $0x20] sm:$0xf]
        %v7072 = vld [vmem:[#allocation13 + $0x24] sm:$0xf]
        %v7073 = vld [vmem:[#allocation13 + $0x28] sm:$0xf]
        %v7074 = vld [vmem:[#allocation13 + $0x2c] sm:$0xf]
        %v7075 = vld [vmem:[#allocation13 + $0x30] sm:$0xf]
        %v7076 = vld [vmem:[#allocation13 + $0x34] sm:$0xf]
        %v7077 = vld [vmem:[#allocation13 + $0x38] sm:$0xf]
        %v7078 = vld [vmem:[#allocation13 + $0x3c] sm:$0xf]
        %v7079 = vld [vmem:[#allocation13 + $0x40] sm:$0xf]
        %v7080 = vld [vmem:[#allocation13 + $0x44] sm:$0xf]
        %v7081 = vld [vmem:[#allocation13 + $0x48] sm:$0xf]
        %v7082 = vld [vmem:[#allocation13 + $0x4c] sm:$0xf]
        %v7083 = vld [vmem:[#allocation13 + $0x50] sm:$0xf]
        %v7084 = vld [vmem:[#allocation13 + $0x54] sm:$0xf]
        %v7085 = vld [vmem:[#allocation13 + $0x58] sm:$0xf]
        %v7086 = vld [vmem:[#allocation13 + $0x5c] sm:$0xf]
        %v7087 = vld [vmem:[#allocation13 + $0x60] sm:$0xf]
        %v7088 = vld [vmem:[#allocation13 + $0x64] sm:$0xf]
        %v7089 = vld [vmem:[#allocation13 + $0x68] sm:$0xf]
        %v7090 = vld [vmem:[#allocation13 + $0x6c] sm:$0xf]
        %v7091 = vld [vmem:[#allocation13 + $0x70] sm:$0xf]
        %v7092 = vld [vmem:[#allocation13 + $0x74] sm:$0xf]
        %v7093 = vld [vmem:[#allocation13 + $0x78] sm:$0xf]
        %v7094 = vld [vmem:[#allocation13 + $0x7c] sm:$0xf]
        %v7095 = vld [vmem:[#allocation14] sm:$0x1]
        %v7096 = vlaneseq
        %v7097 = vshrl.u32 %v7096, 7
        %v7098 = vsub.s32 0, %v7097
        %v7099 = vrot.slane %v7095, %v7098
        %v7132 = vunpack.c.l.b16 %v7063
        %v7133 = vunpack.c.l.b16 %v7064
        %v7134 = vunpack.c.l.b16 %v7065
        %v7135 = vunpack.c.l.b16 %v7066
        %v7136 = vunpack.c.l.b16 %v7067
        %v7137 = vunpack.c.l.b16 %v7068
        %v7138 = vunpack.c.l.b16 %v7069
        %v7139 = vunpack.c.l.b16 %v7070
        %v7140 = vunpack.c.l.b16 %v7071
        %v7141 = vunpack.c.l.b16 %v7072
        %v7142 = vunpack.c.l.b16 %v7073
        %v7143 = vunpack.c.l.b16 %v7074
        %v7144 = vunpack.c.l.b16 %v7075
        %v7145 = vunpack.c.l.b16 %v7076
        %v7146 = vunpack.c.l.b16 %v7077
        %v7147 = vunpack.c.l.b16 %v7078
        %v7148 = vunpack.c.l.b16 %v7079
        %v7149 = vunpack.c.l.b16 %v7080
        %v7150 = vunpack.c.l.b16 %v7081
        %v7151 = vunpack.c.l.b16 %v7082
        %v7152 = vunpack.c.l.b16 %v7083
        %v7153 = vunpack.c.l.b16 %v7084
        %v7154 = vunpack.c.l.b16 %v7085
        %v7155 = vunpack.c.l.b16 %v7086
        %v7156 = vunpack.c.l.b16 %v7087
        %v7157 = vunpack.c.l.b16 %v7088
        %v7158 = vunpack.c.l.b16 %v7089
        %v7159 = vunpack.c.l.b16 %v7090
        %v7160 = vunpack.c.l.b16 %v7091
        %v7161 = vunpack.c.l.b16 %v7092
        %v7162 = vunpack.c.l.b16 %v7093
        %v7163 = vunpack.c.l.b16 %v7094
        %v7164 = vpack.c.b16 %v7133, %v7132
        %v7165 = vpack.c.b16 %v7135, %v7134
        %v7166 = vpack.c.b16 %v7137, %v7136
        %v7167 = vpack.c.b16 %v7139, %v7138
        %v7168 = vpack.c.b16 %v7141, %v7140
        %v7169 = vpack.c.b16 %v7143, %v7142
        %v7170 = vpack.c.b16 %v7145, %v7144
        %v7171 = vpack.c.b16 %v7147, %v7146
        %v7172 = vpack.c.b16 %v7149, %v7148
        %v7173 = vpack.c.b16 %v7151, %v7150
        %v7174 = vpack.c.b16 %v7153, %v7152
        %v7175 = vpack.c.b16 %v7155, %v7154
        %v7176 = vpack.c.b16 %v7157, %v7156
        %v7177 = vpack.c.b16 %v7159, %v7158
        %v7178 = vpack.c.b16 %v7161, %v7160
        %v7179 = vpack.c.b16 %v7163, %v7162
        %7196 = vmatprep.subr.bf16.mxu0 0
        %7197 = vmatpush1.bf16.msra.mxu0 %v7164
        %7198 = vmatprep.subr.bf16.mxu0 0
        %7199 = vmatpush1.bf16.msra.mxu0 %v7165
        %7200 = vmatprep.subr.bf16.mxu0 0
        %7201 = vmatpush1.bf16.msra.mxu0 %v7166
        %7202 = vmatprep.subr.bf16.mxu0 0
        %7203 = vmatpush1.bf16.msra.mxu0 %v7167
        %7204 = vmatprep.subr.bf16.mxu0 0
        %7205 = vmatpush1.bf16.msra.mxu0 %v7168
        %7206 = vmatprep.subr.bf16.mxu0 0
        %7207 = vmatpush1.bf16.msra.mxu0 %v7169
        %7208 = vmatprep.subr.bf16.mxu0 0
        %7209 = vmatpush1.bf16.msra.mxu0 %v7170
        %7210 = vmatprep.subr.bf16.mxu0 0
        %7211 = vmatpush1.bf16.msra.mxu0 %v7171
        %7212 = vmatprep.subr.bf16.mxu0 0
        %7213 = vmatpush1.bf16.msra.mxu0 %v7172
        %7214 = vmatprep.subr.bf16.mxu0 0
        %7215 = vmatpush1.bf16.msra.mxu0 %v7173
        %7216 = vmatprep.subr.bf16.mxu0 0
        %7217 = vmatpush1.bf16.msra.mxu0 %v7174
        %7218 = vmatprep.subr.bf16.mxu0 0
        %7219 = vmatpush1.bf16.msra.mxu0 %v7175
        %7220 = vmatprep.subr.bf16.mxu0 0
        %7221 = vmatpush1.bf16.msra.mxu0 %v7176
        %7222 = vmatprep.subr.bf16.mxu0 0
        %7223 = vmatpush1.bf16.msra.mxu0 %v7177
        %7224 = vmatprep.subr.bf16.mxu0 0
        %7225 = vmatpush1.bf16.msra.mxu0 %v7178
        %7226 = vmatprep.subr.bf16.mxu0 0
        %7227 = vmatpush1.bf16.msra.mxu0 %v7179
        %7228 = vmatprep.mubr.bf16.mxu0 %v7062
        %7229 = vmatmul.mubr.bf16.gmra.mrb[0].mxu0 %v7061
        %v7230 = vpop.f32.mrb[0].mxu0
        %v7231 = vadd.f32 %v7099, %v7230
        %v7232 = vpop.f32.mrb[0].mxu0
        %v7233 = vpop.f32.mrb[0].mxu0
        %v7234 = vadd.f32 %v7099, %v7233
        %v7235 = vpop.f32.mrb[0].mxu0
        %7236 = vdwg.mxu0
        %vm7237 = vcmp.gt.f32.partialorder %v7231, 0.0
        %vm7238 = vcmp.gt.f32.partialorder %v7234, 0.0
        %v7239 = vmul.f32 %v7231, 0.2
        %v7240 = vmul.f32 %v7234, 0.2
        %v7241 = vsel %vm7237, %v7231, %v7239
        %v7242 = vsel %vm7238, %v7234, %v7240
        %v7243 = vld [vmem:[#allocation14 + $0x1] sm:$0x1]
        %v7244 = vlaneseq
        %v7245 = vshrl.u32 %v7244, 7
        %v7246 = vsub.s32 0, %v7245
        %v7247 = vrot.slane %v7243, %v7246
        %v7248 = vmul.f32 %v7241, %v7247
        %v7249 = vmul.f32 %v7242, %v7247
        %v7250 = vld [vmem:[#allocation14 + $0x2] sm:$0x1]
        %v7251 = vlaneseq
        %v7252 = vshrl.u32 %v7251, 7
        %v7253 = vsub.s32 0, %v7252
        %v7254 = vrot.slane %v7250, %v7253
        %v7255 = vadd.f32 %v7248, %v7254
        %v7256 = vadd.f32 %v7249, %v7254
        %v7257 = vpack.c.bf16 %v7256, %v7255
        %v7258 = vunpack.c.l.bf16 %v7257
        %v7259 = vunpack.c.h.bf16 %v7257
        %v7260 = vld [vmem:[#allocation16] sm:$0x1]
        %v7262 = vlaneseq
        %v7263 = vshrl.u32 %v7262, 7
        %v7264 = vsub.s32 0, %v7263
        %v7265 = vrot.slane %v7260, %v7264
        %v7267 = vmul.f32 %v7258, %v7265
        %v7268 = vmul.f32 %v7259, %v7265
        %7269 = vadd.xlane.f32.xlu0 %v7267
        %v7270 = vpop.xlane.xlu0 %7269
        %7271 = vadd.xlane.f32.xlu0 %v7268
        %v7272 = vpop.xlane.xlu0 %7271
        %v7273 = vld [vmem:[#allocation2] sm:$0x1]
        %v7275 = vlaneseq
        %v7276 = vshrl.u32 %v7275, 7
        %v7277 = vsub.s32 0, %v7276
        %v7278 = vrot.slane %v7273, %v7277
        %v7280 = vadd.f32 %v7270, %v7278
        %v7281 = vadd.f32 %v7272, %v7278
        %v7282 = vsub.f32 0.0, %v7280
        %v7283 = vsub.f32 0.0, %v7281
        %v7284 = vmul.f32 %v7282, 1.442695
        %v7285 = vpow.pop %v7284
        %v7286 = vmul.f32 %v7283, 1.442695
        %v7287 = vpow.pop %v7286
        %v7288 = vadd.f32 %v7285, 1.0
        %v7289 = vadd.f32 %v7287, 1.0
        %v7290 = vrcp.pop %v7288
        %v7291 = vmul.f32 1.0, %v7290
        %v7292 = vrcp.pop %v7289
        %v7293 = vmul.f32 1.0, %v7292
        %vm7294 = vcmask 7168
        %7295 = vst.msk [vmem:[%s514] sm:$0xff] %vm7294, %v7291
        %7296 = vst.msk [vmem:[%s514 + $0x8] sm:$0xff] %vm7294, %v7293
        %s7297 = smul.u32 2, %s29
        %p7298 = scmp.lt.s32.totalorder %s7297, 3
        %s7299 = scalar_select %p7298, %s7297, 3
        %s7300 = smul.addr %s7299, 8
        %s7301 = scalar_lea.vmem %s11, %s7300
        // Predicated region
        $region101: #{discriminator_forward.1} parent=63 // pred_check
          %p7302 = pneg %p283
        $region102: #{discriminator_forward.1} parent=63 // pred_check_branch
          %7304 = sbr.rel (%p7302) target = $region104
        $region103: #{discriminator_forward.1} parent=63 // pred_region
          %s7305 = smul.u32 2, %s29
        $region104: #{discriminator_forward.1} parent=63 // pred_fallthru
          _
      $region64: #{discriminator_forward.1} parent=5 // pred_fallthru
        _
      %p7306 = scmp.le.s32.totalorder 2, %s24
      // Predicated region
      $region105: #{discriminator_forward.1} parent=5 // pred_check
        %p7307 = pneg %p7306
      $region106: #{discriminator_forward.1} parent=5 // pred_check_branch
        %7309 = sbr.rel (%p7307) target = $region108
      $region107: #{discriminator_forward.1} parent=5 // pred_region
        %s7310 = ssub.s32 %s24, 2
        // Predicated region
        $region109: #{discriminator_forward.1} parent=107 // pred_check
          %p7311 = pneg %p289
        $region110: #{discriminator_forward.1} parent=107 // pred_check_branch
          %7313 = sbr.rel (%p7311) target = $region112
        $region111: #{discriminator_forward.1} parent=107 // pred_region
          %s7314 = smul.u32 2, %s30
          %p7315 = scmp.lt.s32.totalorder %s7314, 3
          %s7316 = scalar_select %p7315, %s7314, 3
          %s7317 = smul.addr %s7316, 8
          %s7318 = scalar_lea.vmem %s11, %s7317
        $region112: #{discriminator_forward.1} parent=107 // pred_fallthru
          _
      $region108: #{discriminator_forward.1} parent=5 // pred_fallthru
        _
    $region6: #{discriminator_forward.1} parent=1 // loop_footer
      %s28 = sadd.s32 1, %s24
    $region7: #{discriminator_forward.1} parent=1 // loop_footer_branch
      %23 = sbr.rel target = $region3
    $region8: #{discriminator_forward.1} parent=1 // loop_exit
      _
    %7319 = vsyncpa [#allocation4], 1
    %s7320 = scalar_lea.sflag [#allocation4], 1
    %7321 = vsyncpa %s7320, 1
    %7322 = vsyncpa [#allocation6], 1
    %7323 = vsyncpa [#allocation9], 1
    %7324 = vsyncpa [#allocation12], 1
    %7325 = vsyncpa [#allocation15], 1

</llo_original>
